<compile_context>
chip_gen: v5e
topology: v5e:2x2
jax: 0.10.0
libtpu: 0.0.40
codegen_flags: <defaults>
</compile_context>

<pallas_src>
import functools
import math

import jax
import jax.numpy as jnp
from jax.experimental import pallas as pl
from jax.experimental.pallas import tpu as pltpu


def _round_up(x, m):
    return ((x + m - 1) // m) * m


_TM_MAX = 256     # batch-row tile (sublane axis)
_TN_MAX = 1536    # fc2 output-feature tile (lane axis); 512x1536 bf16 = 1.5 MiB


# --------------------------------------------------------------------------
# Fused Pallas kernel:  o = tanh( leaky_relu(x @ w1 + b1) @ w2 + b2 )
# --------------------------------------------------------------------------

def _generator_fused_kernel(x_ref, w1_ref, b1_ref, w2_ref, b2_ref, o_ref):
    # fc1: (tm, K1p) @ (K1p, Hp) on the MXU, f32 accumulate, bias + LeakyReLU.
    h = jnp.dot(x_ref[...], w1_ref[...], preferred_element_type=jnp.float32)
    h = h + b1_ref[...]
    h = jnp.where(h > 0, h, 0.01 * h).astype(jnp.bfloat16)   # bf16 for fc2 MXU
    # fc2: (tm, Hp) @ (Hp, tn) on the MXU, f32 accumulate, bias + tanh (EUP).
    y = jnp.dot(h, w2_ref[...], preferred_element_type=jnp.float32)
    o_ref[...] = jnp.tanh(y + b2_ref[...]).astype(o_ref.dtype)


# --------------------------------------------------------------------------
# Parameter preparation (pad + cast ONCE at init time)
# --------------------------------------------------------------------------

def prepare_generator_params(w1, b1, w2, b2):
    """w1: (latent, H), b1: (H,), w2: (H, out_dim), b2: (out_dim,)."""
    latent, H = w1.shape
    H2, out_dim = w2.shape
    assert H == H2

    K1p = _round_up(latent, 128)
    Hp = _round_up(H, 128)
    Np128 = _round_up(out_dim, 128)
    tn = min(_TN_MAX, Np128)
    N2p = _round_up(Np128, tn)

    # Fused kernel keeps the whole fc1 weight and one fc2 weight tile resident;
    # assert the footprint is comfortably inside scoped VMEM on every chip gen.
    assert K1p * Hp * 2 + Hp * tn * 2 <= (24 << 20), \
        "weights too large for the fused VMEM-resident kernel"
    # TODO(synk): add a K-grid inside the fused kernel for very large latent dims.

    w1p = jnp.pad(w1.astype(jnp.float32),
                  ((0, K1p - latent), (0, Hp - H))).astype(jnp.bfloat16)
    b1p = jnp.pad(b1.astype(jnp.float32), (0, Hp - H)).reshape(1, Hp)
    w2p = jnp.pad(w2.astype(jnp.float32),
                  ((0, Hp - H), (0, N2p - out_dim))).astype(jnp.bfloat16)
    b2p = jnp.pad(b2.astype(jnp.float32), (0, N2p - out_dim)).reshape(1, N2p)

    return {"w1": w1p, "b1": b1p, "w2": w2p, "b2": b2p,
            "latent": latent, "hidden": H, "out_dim": out_dim, "tn": tn}


# --------------------------------------------------------------------------
# Forward pass
# --------------------------------------------------------------------------

def generator_apply(params, z):
    """z: (B, latent) f32 -> (B, out_dim) f32, fused Linear/LeakyReLU/Linear/Tanh."""
    M, K = z.shape
    assert K == params["latent"]
    K1p, Hp = params["w1"].shape
    _, N2p = params["w2"].shape
    N = params["out_dim"]
    tn = params["tn"]

    Mp = _round_up(max(M, 1), 16)              # 16-row packing for bf16 vregs
    tm = min(_TM_MAX, Mp)
    Mp = _round_up(Mp, tm)

    # Only the (small) activation is padded / cast per call.
    zp = jnp.pad(z.astype(jnp.float32),
                 ((0, Mp - M), (0, K1p - K))).astype(jnp.bfloat16)

    n_i = Mp // tm
    n_j = N2p // tn

    # VMEM budget: double-buffered tiles + in-kernel h temporaries, 2x headroom,
    # capped at 48 MiB (safe under v7x's 64 MiB physical VMEM).
    vmem_bytes = (2 * (tm * K1p * 2)           # x tiles (bf16)
                  + 2 * (K1p * Hp * 2)         # w1 (resident; count both buffers)
                  + 2 * (Hp * 4)               # b1
                  + 2 * (Hp * tn * 2)          # w2 tiles (bf16)
                  + 2 * (tn * 4)               # b2 tiles
                  + 2 * (tm * tn * 4)          # out tiles (f32)
                  + tm * Hp * 6)               # h f32 + bf16 temporaries
    vmem_limit = int(min(max(2 * vmem_bytes, 16 << 20), 48 << 20))

    cost = pl.CostEstimate(
        flops=2 * Mp * Hp * (K1p * n_j + N2p),
        transcendentals=Mp * N2p,
        bytes_accessed=(zp.size * 2 + params["w1"].size * 2 + params["w2"].size * 2
                        + params["b1"].size * 4 + params["b2"].size * 4
                        + Mp * N2p * 4))

    out = pl.pallas_call(
        _generator_fused_kernel,
        out_shape=jax.ShapeDtypeStruct((Mp, N2p), jnp.float32),
        grid_spec=pltpu.PrefetchScalarGridSpec(
            num_scalar_prefetch=0,
            grid=(n_i, n_j),
            in_specs=[pl.BlockSpec((tm, K1p), lambda i, j: (i, 0)),   # z tile
                      pl.BlockSpec((K1p, Hp), lambda i, j: (0, 0)),   # w1 (resident)
                      pl.BlockSpec((1, Hp), lambda i, j: (0, 0)),     # b1 (resident)
                      pl.BlockSpec((Hp, tn), lambda i, j: (0, j)),    # w2 tile
                      pl.BlockSpec((1, tn), lambda i, j: (0, j))],    # b2 tile
            out_specs=pl.BlockSpec((tm, tn), lambda i, j: (i, j))),
        compiler_params=pltpu.CompilerParams(
            dimension_semantics=("parallel", "parallel"),
            vmem_limit_bytes=vmem_limit),
        cost_estimate=cost,
    )(zp, params["w1"], params["b1"], params["w2"], params["b2"])

    # out_dim is already lane-aligned in the common case -> slice only when padded.
    if N2p != N:
        out = out[:, :N]
    if Mp != M:
        out = out[:M]
    return out


def generator_forward(params, z, img_shape):
    img = generator_apply(params, z)
    return img.reshape(z.shape[0], *img_shape)


# --------------------------------------------------------------------------
# Init (block(latent,512,normalize=False) -> Linear(512, prod(img_shape)) -> Tanh)
# --------------------------------------------------------------------------

def init_generator_params(key, latent_dim, img_shape):
    out_dim = int(img_shape[0] * img_shape[1] * img_shape[2])
    k1, k2, k3, k4 = jax.random.split(key, 4)
    w1 = jax.random.normal(k1, (latent_dim, 512), jnp.float32) / math.sqrt(latent_dim)
    b1 = 0.01 * jax.random.normal(k2, (512,), jnp.float32)
    w2 = jax.random.normal(k3, (512, out_dim), jnp.float32) / math.sqrt(512.0)
    b2 = 0.01 * jax.random.normal(k4, (out_dim,), jnp.float32)
    return prepare_generator_params(w1, b1, w2, b2)


def generator_reference(params, z, img_shape):
    """Pure-JAX reference on the same bf16-rounded operands."""
    latent, H, N = params["latent"], params["hidden"], params["out_dim"]
    w1 = params["w1"][:latent, :H].astype(jnp.float32)
    b1 = params["b1"][0, :H]
    w2 = params["w2"][:H, :N].astype(jnp.float32)
    b2 = params["b2"][0, :N]

    zb = z.astype(jnp.bfloat16).astype(jnp.float32)
    h = jax.lax.dot(zb, w1, precision=jax.lax.Precision.HIGHEST,
                    preferred_element_type=jnp.float32) + b1
    h = jnp.where(h > 0, h, 0.01 * h)
    hb = h.astype(jnp.bfloat16).astype(jnp.float32)
    y = jax.lax.dot(hb, w2, precision=jax.lax.Precision.HIGHEST,
                    preferred_element_type=jnp.float32) + b2
    return jnp.tanh(y).reshape(z.shape[0], *img_shape)


# --------------------------------------------------------------------------
# Main
# --------------------------------------------------------------------------

if __name__ == "__main__":
    B = 2
    LATENT = 100
    IMG_SHAPE = (3, 32, 32)

    key = jax.random.PRNGKey(0)
    kz, kg = jax.random.split(key)
    z = jax.random.normal(kz, (B, LATENT), jnp.float32)
    gen_params = init_generator_params(kg, LATENT, IMG_SHAPE)

    fwd = jax.jit(functools.partial(generator_forward, gen_params,
                                    img_shape=IMG_SHAPE))
    img = fwd(z)
    jax.block_until_ready(img)

    assert img.shape == (B,) + IMG_SHAPE and img.dtype == jnp.float32
    assert bool(jnp.all(jnp.isfinite(img)))
    assert bool(jnp.all(jnp.abs(img) <= 1.0 + 1e-6))          # tanh range

    ref = generator_reference(gen_params, z, IMG_SHAPE)
    max_err = float(jnp.max(jnp.abs(img - ref)))
    assert max_err < 5e-2, f"mismatch vs reference: {max_err}"

    print("KERNEL_OK")
</pallas_src>

<mosaic_0001>
module attributes {stable_mosaic.version = 11 : i64} {
  func.func @_generator_fused_kernel(%arg0: i32, %arg1: i32, %arg2: memref<16x128xbf16, #tpu.memory_space<vmem>>, %arg3: memref<128x512xbf16, #tpu.memory_space<vmem>>, %arg4: memref<1x512xf32, #tpu.memory_space<vmem>>, %arg5: memref<512x1536xbf16, #tpu.memory_space<vmem>>, %arg6: memref<1x1536xf32, #tpu.memory_space<vmem>>, %arg7: memref<16x1536xf32, #tpu.memory_space<vmem>>) attributes {dimension_semantics = [#tpu.dimension_semantics<parallel>, #tpu.dimension_semantics<parallel>], iteration_bounds = array<i64: 1, 2>, scalar_prefetch = 0 : i64, scratch_operands = 0 : i64, tpu.core_type = #tpu.core_type<tc>, window_params = [{transform_indices = @transform_0, window_bounds = array<i64: 16, 128>}, {pipeline_mode = #tpu.pipeline_mode<synchronous>, transform_indices = @transform_1, window_bounds = array<i64: 128, 512>}, {pipeline_mode = #tpu.pipeline_mode<synchronous>, transform_indices = @transform_2, window_bounds = array<i64: 1, 512>}, {transform_indices = @transform_3, window_bounds = array<i64: 512, 1536>}, {transform_indices = @transform_4, window_bounds = array<i64: 1, 1536>}, {transform_indices = @transform_5, window_bounds = array<i64: 16, 1536>}]} {
    %c0 = arith.constant 0 : index
    %c0_0 = arith.constant 0 : index
    %0 = vector.load %arg2[%c0, %c0_0] : memref<16x128xbf16, #tpu.memory_space<vmem>>, vector<16x128xbf16>
    %c0_1 = arith.constant 0 : index
    %c0_2 = arith.constant 0 : index
    %1 = vector.load %arg3[%c0_1, %c0_2] : memref<128x512xbf16, #tpu.memory_space<vmem>>, vector<128x512xbf16>
    %cst = arith.constant dense<0.000000e+00> : vector<16x512xf32>
    %2 = tpu.matmul %0, %1, %cst {dimension_numbers = #tpu.dot_dimension_numbers<[1], [0], [0], [1], [0, 0, 1, 1], [], []>} : vector<16x128xbf16>, vector<128x512xbf16>, vector<16x512xf32> -> vector<16x512xf32>
    %c0_3 = arith.constant 0 : index
    %c0_4 = arith.constant 0 : index
    %3 = vector.load %arg4[%c0_3, %c0_4] : memref<1x512xf32, #tpu.memory_space<vmem>>, vector<1x512xf32>
    %4 = vector.broadcast %3 : vector<1x512xf32> to vector<16x512xf32>
    %5 = arith.addf %2, %4 : vector<16x512xf32>
    %cst_5 = arith.constant 0.000000e+00 : f32
    %6 = vector.broadcast %cst_5 : f32 to vector<16x512xf32>
    %7 = arith.cmpf ogt, %5, %6 : vector<16x512xf32>
    %cst_6 = arith.constant 0.00999999977 : f32
    %8 = vector.broadcast %cst_6 : f32 to vector<16x512xf32>
    %9 = arith.mulf %8, %5 : vector<16x512xf32>
    %10 = arith.select %7, %5, %9 : vector<16x512xi1>, vector<16x512xf32>
    %11 = arith.truncf %10 : vector<16x512xf32> to vector<16x512xbf16>
    %c0_7 = arith.constant 0 : index
    %c0_8 = arith.constant 0 : index
    %12 = vector.load %arg5[%c0_7, %c0_8] : memref<512x1536xbf16, #tpu.memory_space<vmem>>, vector<512x1536xbf16>
    %cst_9 = arith.constant dense<0.000000e+00> : vector<16x1536xf32>
    %13 = tpu.matmul %11, %12, %cst_9 {dimension_numbers = #tpu.dot_dimension_numbers<[1], [0], [0], [1], [0, 0, 1, 1], [], []>} : vector<16x512xbf16>, vector<512x1536xbf16>, vector<16x1536xf32> -> vector<16x1536xf32>
    %c0_10 = arith.constant 0 : index
    %c0_11 = arith.constant 0 : index
    %14 = vector.load %arg6[%c0_10, %c0_11] : memref<1x1536xf32, #tpu.memory_space<vmem>>, vector<1x1536xf32>
    %15 = vector.broadcast %14 : vector<1x1536xf32> to vector<16x1536xf32>
    %16 = arith.addf %13, %15 : vector<16x1536xf32>
    %17 = math.tanh %16 : vector<16x1536xf32>
    %c0_12 = arith.constant 0 : index
    %c0_13 = arith.constant 0 : index
    %18 = vector.load %arg7[%c0_12, %c0_13] : memref<16x1536xf32, #tpu.memory_space<vmem>>, vector<16x1536xf32>
    tpu.vector_store %arg7[%c0_12, %c0_13], %17 {strides = array<i32>} : memref<16x1536xf32, #tpu.memory_space<vmem>>, vector<16x1536xf32>,
    return
  }
  func.func @transform_0(%arg0: i32, %arg1: i32) -> (i32, i32) {
    %c0_i32 = arith.constant 0 : i32
    %c0_i32_0 = arith.constant 0 : i32
    return %arg0, %c0_i32 : i32, i32
  }
  func.func @transform_1(%arg0: i32, %arg1: i32) -> (i32, i32) {
    %c0_i32 = arith.constant 0 : i32
    %c0_i32_0 = arith.constant 0 : i32
    %c0_i32_1 = arith.constant 0 : i32
    return %c0_i32, %c0_i32_0 : i32, i32
  }
  func.func @transform_2(%arg0: i32, %arg1: i32) -> (i32, i32) {
    %c0_i32 = arith.constant 0 : i32
    %c0_i32_0 = arith.constant 0 : i32
    %c0_i32_1 = arith.constant 0 : i32
    return %c0_i32, %c0_i32_0 : i32, i32
  }
  func.func @transform_3(%arg0: i32, %arg1: i32) -> (i32, i32) {
    %c0_i32 = arith.constant 0 : i32
    %c0_i32_0 = arith.constant 0 : i32
    return %c0_i32, %arg1 : i32, i32
  }
  func.func @transform_4(%arg0: i32, %arg1: i32) -> (i32, i32) {
    %c0_i32 = arith.constant 0 : i32
    %c0_i32_0 = arith.constant 0 : i32
    return %c0_i32, %arg1 : i32, i32
  }
  func.func @transform_5(%arg0: i32, %arg1: i32) -> (i32, i32) {
    %c0_i32 = arith.constant 0 : i32
    return %arg0, %arg1 : i32, i32
  }
}

</mosaic_0001>

<llo_original>
// kernel: generator_forward.1
$region0: #{generator_forward.1}
  #allocation0 [shape = 'u32[]', space=smem, size = 0x4, offset = 0x4, fixed_abs, tag = 'smem constant byte address 0x4 - core index']
  #allocation1 [shape = 'u32[72,128]{1,0:T(1,128)}', space=vmem, size = 0x9000, scoped, tag = 'internal scratch']
  %s0 = inlined_call_operand.vmem [shape: bf16[16,128], index: 0, kind: input, shape index: {}]
  %s1 = inlined_call_operand.hbm [shape: bf16[128,512], index: 1, kind: input, shape index: {}]
  %s2 = inlined_call_operand.hbm [shape: f32[1,512], index: 2, kind: input, shape index: {}]
  %s3 = inlined_call_operand.hbm [shape: bf16[512,3072], index: 3, kind: input, shape index: {}]
  %s4 = inlined_call_operand.hbm [shape: f32[1,3072], index: 4, kind: input, shape index: {}]
  %s5 = inlined_call_operand.vmem [shape: f32[16,3072], index: 5, kind: output, shape index: {}]
  %s6 = sld [smem:[#allocation0]]
  $region88: #{generator_forward.1} parent=0
    _
  %s8 = ssub.s32 1, %s6
  %s9 = scalar_select 0, %s8, %s6
  $region1: #{generator_forward.1} parent=0
    #allocation2 [shape = 'u8[131072]{0}', space=vmem, size = 0x20000, scoped, tag = 'input window, operand 1, single buffered']
    #allocation3 [shape = 's32[2]{0}', space=sflag, size = 0x8, scoped, tag = 'scoped memory for generator_forward.1']
    #allocation4 [shape = 'u8[2048]{0}', space=vmem, size = 0x800, scoped, tag = 'input window, operand 2, single buffered']
    #allocation5 [shape = 's32[1]{0}', space=sflag, size = 0x4, scoped, tag = 'scoped memory for generator_forward.1']
    #allocation6 [shape = 'u8[3145728]{0}', space=vmem, size = 0x300000, scoped, tag = 'input window, operand 3']
    #allocation7 [shape = 'u8[12288]{0}', space=vmem, size = 0x3000, scoped, tag = 'input window, operand 4']
    #allocation8 [shape = 'u8[196608]{0}', space=vmem, size = 0x30000, scoped, tag = 'output window, operand 0']
    %10 = vsyncpa [#allocation3], 0
    %11 = vsyncpa [#allocation5], 0
    loop: start=0, step=1, limit=4
    $region2: #{generator_forward.1} parent=1 // loop_pre_header
      _
    $region3: #{generator_forward.1} parent=1 // loop_header
      %s13 = sphi 0, %s17
      %p14 = scmp.ge.s32.totalorder %s13, 4
      %s20 = sphi 0, %s32
      %s21 = sphi 0, %s28
      %s22 = sphi 0, %s20
      %s23 = sphi 0, %s21
      %s24 = sphi 0, %s22
      %s25 = sphi 0, %s23
      %s35 = sphi 0, %s37
      %s38 = sphi 0, %s35
      %s39 = sphi 0, %s38
      %s55 = sphi 0, %s39
      %s59 = sphi 0, %s59
      %s61 = sphi 0, %s59
      %s62 = sphi 0, %s61
      %s76 = sphi 0, %s62
      %s80 = sphi 0, %s80
      %s82 = sphi 0, %s80
      %s83 = sphi 0, %s82
      %s97 = sphi 0, %s83
      %s103 = sphi 0, %s105
      %s106 = sphi 0, %s103
      %s107 = sphi 0, %s106
      %s123 = sphi 0, %s107
      %s129 = sphi 0, %s131
      %s132 = sphi 0, %s129
      %s133 = sphi 0, %s132
      %s149 = sphi 0, %s133
      %s157 = sphi 0, %s159
      %s160 = sphi 0, %s157
      %s161 = sphi 0, %s160
      %s177 = sphi 0, %s161
    $region4: #{generator_forward.1} parent=1 // loop_header_branch
      %16 = sbr.rel (%p14) target = $region8
    $region5: #{generator_forward.1} parent=1 // loop_body
      %s18 = ssub.s32 %s13, 1
      %s19 = ssub.s32 %s13, 2
      %s26 = sadd.s32 1, %s21
      %p27 = scmp.ge.s32.totalorder %s26, 2
      %s28 = scalar_select %p27, 0, %s26
      %s29 = sadd.s32 1, %s20
      %s30 = scalar_select %p27, %s29, %s20
      %p31 = scmp.ge.s32.totalorder %s30, 1
      %s32 = scalar_select %p31, 0, %s30
      %s33 = ssub.s32 %s20, %s32
      %p34 = scmp.eq.s32.totalorder %s33, 0
      %s36 = sadd.s32 %s35, 1
      %s37 = scalar_select %p34, %s35, %s36
      %p40 = pneg %p34
      %p41 = scmp.eq.s32.totalorder %s13, 1
      %p42 = por %p40, %p41
      %p43 = scmp.ne.s32.totalorder %s35, %s38
      %p44 = scmp.eq.s32.totalorder %s13, 0
      %p45 = por %p43, %p44
      %p46 = scmp.ne.s32.totalorder %s35, %s38
      %p47 = scmp.eq.s32.totalorder %s18, 1
      %p48 = por %p46, %p47
      %p49 = scmp.ne.s32.totalorder %s38, %s39
      %p50 = scmp.eq.s32.totalorder %s18, 0
      %p51 = por %p49, %p50
      %p52 = scmp.ne.s32.totalorder %s38, %s39
      %p53 = scmp.eq.s32.totalorder %s19, 1
      %p54 = por %p52, %p53
      %p56 = scmp.ne.s32.totalorder %s39, %s55
      %p57 = scmp.eq.s32.totalorder %s19, 0
      %p58 = por %p56, %p57
      %s60 = sadd.s32 %s59, 1
      %p63 = scmp.eq.s32.totalorder %s13, 1
      %p64 = scmp.ne.s32.totalorder %s59, %s61
      %p65 = scmp.eq.s32.totalorder %s13, 0
      %p66 = por %p64, %p65
      %p67 = scmp.ne.s32.totalorder %s59, %s61
      %p68 = scmp.eq.s32.totalorder %s18, 1
      %p69 = por %p67, %p68
      %p70 = scmp.ne.s32.totalorder %s61, %s62
      %p71 = scmp.eq.s32.totalorder %s18, 0
      %p72 = por %p70, %p71
      %p73 = scmp.ne.s32.totalorder %s61, %s62
      %p74 = scmp.eq.s32.totalorder %s19, 1
      %p75 = por %p73, %p74
      %p77 = scmp.ne.s32.totalorder %s62, %s76
      %p78 = scmp.eq.s32.totalorder %s19, 0
      %p79 = por %p77, %p78
      %s81 = sadd.s32 %s80, 1
      %p84 = scmp.eq.s32.totalorder %s13, 1
      %p85 = scmp.ne.s32.totalorder %s80, %s82
      %p86 = scmp.eq.s32.totalorder %s13, 0
      %p87 = por %p85, %p86
      %p88 = scmp.ne.s32.totalorder %s80, %s82
      %p89 = scmp.eq.s32.totalorder %s18, 1
      %p90 = por %p88, %p89
      %p91 = scmp.ne.s32.totalorder %s82, %s83
      %p92 = scmp.eq.s32.totalorder %s18, 0
      %p93 = por %p91, %p92
      %p94 = scmp.ne.s32.totalorder %s82, %s83
      %p95 = scmp.eq.s32.totalorder %s19, 1
      %p96 = por %p94, %p95
      %p98 = scmp.ne.s32.totalorder %s83, %s97
      %p99 = scmp.eq.s32.totalorder %s19, 0
      %p100 = por %p98, %p99
      %s101 = ssub.s32 %s21, %s28
      %p102 = scmp.eq.s32.totalorder %s101, 0
      %s104 = sadd.s32 %s103, 1
      %s105 = scalar_select %p102, %s103, %s104
      %p108 = pneg %p102
      %p109 = scmp.eq.s32.totalorder %s13, 1
      %p110 = por %p108, %p109
      %p111 = scmp.ne.s32.totalorder %s103, %s106
      %p112 = scmp.eq.s32.totalorder %s13, 0
      %p113 = por %p111, %p112
      %p114 = scmp.ne.s32.totalorder %s103, %s106
      %p115 = scmp.eq.s32.totalorder %s18, 1
      %p116 = por %p114, %p115
      %p117 = scmp.ne.s32.totalorder %s106, %s107
      %p118 = scmp.eq.s32.totalorder %s18, 0
      %p119 = por %p117, %p118
      %p120 = scmp.ne.s32.totalorder %s106, %s107
      %p121 = scmp.eq.s32.totalorder %s19, 1
      %p122 = por %p120, %p121
      %p124 = scmp.ne.s32.totalorder %s107, %s123
      %p125 = scmp.eq.s32.totalorder %s19, 0
      %p126 = por %p124, %p125
      %s127 = ssub.s32 %s21, %s28
      %p128 = scmp.eq.s32.totalorder %s127, 0
      %s130 = sadd.s32 %s129, 1
      %s131 = scalar_select %p128, %s129, %s130
      %p134 = pneg %p128
      %p135 = scmp.eq.s32.totalorder %s13, 1
      %p136 = por %p134, %p135
      %p137 = scmp.ne.s32.totalorder %s129, %s132
      %p138 = scmp.eq.s32.totalorder %s13, 0
      %p139 = por %p137, %p138
      %p140 = scmp.ne.s32.totalorder %s129, %s132
      %p141 = scmp.eq.s32.totalorder %s18, 1
      %p142 = por %p140, %p141
      %p143 = scmp.ne.s32.totalorder %s132, %s133
      %p144 = scmp.eq.s32.totalorder %s18, 0
      %p145 = por %p143, %p144
      %p146 = scmp.ne.s32.totalorder %s132, %s133
      %p147 = scmp.eq.s32.totalorder %s19, 1
      %p148 = por %p146, %p147
      %p150 = scmp.ne.s32.totalorder %s133, %s149
      %p151 = scmp.eq.s32.totalorder %s19, 0
      %p152 = por %p150, %p151
      %s153 = ssub.s32 %s20, %s32
      %s154 = ssub.s32 %s21, %s28
      %s155 = sor.u32 %s153, %s154
      %p156 = scmp.eq.s32.totalorder %s155, 0
      %s158 = sadd.s32 %s157, 1
      %s159 = scalar_select %p156, %s157, %s158
      %p162 = pneg %p156
      %p163 = scmp.eq.s32.totalorder %s13, 1
      %p164 = por %p162, %p163
      %p165 = scmp.ne.s32.totalorder %s157, %s160
      %p166 = scmp.eq.s32.totalorder %s13, 0
      %p167 = por %p165, %p166
      %p168 = scmp.ne.s32.totalorder %s157, %s160
      %p169 = scmp.eq.s32.totalorder %s18, 1
      %p170 = por %p168, %p169
      %p171 = scmp.ne.s32.totalorder %s160, %s161
      %p172 = scmp.eq.s32.totalorder %s18, 0
      %p173 = por %p171, %p172
      %p174 = scmp.ne.s32.totalorder %s160, %s161
      %p175 = scmp.eq.s32.totalorder %s19, 1
      %p176 = por %p174, %p175
      %p178 = scmp.ne.s32.totalorder %s161, %s177
      %p179 = scmp.eq.s32.totalorder %s19, 0
      %p180 = por %p178, %p179
      %p181 = scmp.le.s32.totalorder 1, %s13
      %p182 = scmp.lt.s32.totalorder %s13, 3
      %p183 = pnand %p181, %p182
      %p184 = pneg %p183
      // Predicated region
      $region9: #{generator_forward.1} parent=5 // pred_check
        _
      $region10: #{generator_forward.1} parent=5 // pred_check_branch
        %186 = sbr.rel (%p183) target = $region12
      $region11: #{generator_forward.1} parent=5 // pred_region
        %s187 = ssub.s32 %s13, 1
        // Predicated region
        $region13: #{generator_forward.1} parent=11 // pred_check
          %p188 = pneg %p51
        $region14: #{generator_forward.1} parent=11 // pred_check_branch
          %190 = sbr.rel (%p188) target = $region16
        $region15: #{generator_forward.1} parent=11 // pred_region
          %s191 = smul.u32 2, %s22
          %p192 = scmp.lt.s32.totalorder %s191, 1
          %s193 = scalar_select %p192, %s191, 1
          %s194 = smul.addr %s193, 4
          %s195 = scalar_lea.vmem %s0, %s194
          %s196 = smul.u32 2, %s22
        $region16: #{generator_forward.1} parent=11 // pred_fallthru
          _
        // Predicated region
        $region17: #{generator_forward.1} parent=11 // pred_check
          %p197 = pneg %p72
        $region18: #{generator_forward.1} parent=11 // pred_check_branch
          %199 = sbr.rel (%p197) target = $region20
        $region19: #{generator_forward.1} parent=11 // pred_region
          %201 = vsyncadd [#allocation3], 0
          %s202 = sshll.u32 %s1, 4
          %s203 = int_to_ptr.hbm [resolvable:$true] %s202
          %s204 = sshll.u32 [#allocation2], 4
          %s205 = int_to_ptr.vmem [resolvable:$true] %s204
          %210 = dma.hbm_to_vmem [thread:$0]  %s203, 4096, %s205, [#allocation3], 256, 256, 16
        $region20: #{generator_forward.1} parent=11 // pred_fallthru
          _
        // Predicated region
        $region21: #{generator_forward.1} parent=11 // pred_check
          %p211 = pneg %p93
        $region22: #{generator_forward.1} parent=11 // pred_check_branch
          %213 = sbr.rel (%p211) target = $region24
        $region23: #{generator_forward.1} parent=11 // pred_region
          %215 = vsyncadd [#allocation5], 0
          %s217 = sshll.u32 %s2, 4
          %s218 = int_to_ptr.hbm [resolvable:$true] %s217
          %s219 = sshll.u32 [#allocation4], 4
          %s220 = int_to_ptr.vmem [resolvable:$true] %s219
          %222 = dma.hbm_to_vmem [thread:$0]  %s218, 64, %s220, [#allocation5]
        $region24: #{generator_forward.1} parent=11 // pred_fallthru
          _
      $region12: #{generator_forward.1} parent=5 // pred_fallthru
        _
      %p223 = scmp.lt.s32.totalorder %s13, 2
      // Predicated region
      $region25: #{generator_forward.1} parent=5 // pred_check
        %p224 = pneg %p223
      $region26: #{generator_forward.1} parent=5 // pred_check_branch
        %226 = sbr.rel (%p224) target = $region28
      $region27: #{generator_forward.1} parent=5 // pred_region
        // Predicated region
        $region29: #{generator_forward.1} parent=27 // pred_check
          %p227 = pneg %p113
        $region30: #{generator_forward.1} parent=27 // pred_check_branch
          %229 = sbr.rel (%p227) target = $region32
        $region31: #{generator_forward.1} parent=27 // pred_region
          %s230 = sand.u32 %s13, 1
          %s231 = scalar_lea.sflag [#allocation3], %s230
          %s232 = sand.u32 %s103, 1
          %s233 = smul.addr %s232, 3072
          %s234 = scalar_lea.vmem [#allocation6], %s233
          %s235 = smul.u32 12, %s21
          %237 = vsyncadd %s231, 0
          %s238 = smul.addr %s235, 4
          %s239 = scalar_lea.hbm %s3, %s238
          %s240 = sshll.u32 %s239, 4
          %s241 = int_to_ptr.hbm [resolvable:$true] %s240
          %s242 = sshll.u32 %s234, 4
          %s243 = int_to_ptr.vmem [resolvable:$true] %s242
          %248 = dma.hbm_to_vmem [thread:$0]  %s241, 49152, %s243, %s231, 1536, 768, 48
        $region32: #{generator_forward.1} parent=27 // pred_fallthru
          _
        // Predicated region
        $region33: #{generator_forward.1} parent=27 // pred_check
          %p249 = pneg %p139
        $region34: #{generator_forward.1} parent=27 // pred_check_branch
          %251 = sbr.rel (%p249) target = $region36
        $region35: #{generator_forward.1} parent=27 // pred_region
          %s252 = sand.u32 %s13, 1
          %s253 = scalar_lea.sflag [#allocation3], %s252
          %s254 = sand.u32 %s129, 1
          %s255 = smul.addr %s254, 12
          %s256 = scalar_lea.vmem [#allocation7], %s255
          %s257 = smul.u32 12, %s21
          %259 = vsyncadd %s253, 0
          %s260 = scalar_lea.hbm %s4, %s257
          %s262 = sshll.u32 %s260, 4
          %s263 = int_to_ptr.hbm [resolvable:$true] %s262
          %s264 = sshll.u32 %s256, 4
          %s265 = int_to_ptr.vmem [resolvable:$true] %s264
          %267 = dma.hbm_to_vmem [thread:$0]  %s263, 192, %s265, %s253
        $region36: #{generator_forward.1} parent=27 // pred_fallthru
          _
      $region28: #{generator_forward.1} parent=5 // pred_fallthru
        _
      %p268 = scmp.le.s32.totalorder 1, %s13
      %p269 = scmp.lt.s32.totalorder %s13, 3
      %p270 = pnand %p268, %p269
      %p271 = pneg %p270
      // Predicated region
      $region37: #{generator_forward.1} parent=5 // pred_check
        _
      $region38: #{generator_forward.1} parent=5 // pred_check_branch
        %273 = sbr.rel (%p270) target = $region40
      $region39: #{generator_forward.1} parent=5 // pred_region
        %s274 = ssub.s32 %s13, 1
        // Predicated region
        $region41: #{generator_forward.1} parent=39 // pred_check
          %p275 = pneg %p72
        $region42: #{generator_forward.1} parent=39 // pred_check_branch
          %277 = sbr.rel (%p275) target = $region44
        $region43: #{generator_forward.1} parent=39 // pred_region
          %279 = dma.done [#allocation3], 4096
        $region44: #{generator_forward.1} parent=39 // pred_fallthru
          _
        // Predicated region
        $region45: #{generator_forward.1} parent=39 // pred_check
          %p280 = pneg %p93
        $region46: #{generator_forward.1} parent=39 // pred_check_branch
          %282 = sbr.rel (%p280) target = $region48
        $region47: #{generator_forward.1} parent=39 // pred_region
          %284 = dma.done [#allocation5], 64
        $region48: #{generator_forward.1} parent=39 // pred_fallthru
          _
        %s285 = sand.u32 %s18, 1
        %s286 = scalar_lea.sflag [#allocation3], %s285
        %s287 = sand.u32 %s106, 1
        %s288 = smul.addr %s287, 3072
        %s289 = scalar_lea.vmem [#allocation6], %s288
        // Predicated region
        $region49: #{generator_forward.1} parent=39 // pred_check
          %p290 = pneg %p119
        $region50: #{generator_forward.1} parent=39 // pred_check_branch
          %292 = sbr.rel (%p290) target = $region52
        $region51: #{generator_forward.1} parent=39 // pred_region
          %294 = dma.done %s286, 49152
        $region52: #{generator_forward.1} parent=39 // pred_fallthru
          _
        %s295 = sand.u32 %s18, 1
        %s296 = scalar_lea.sflag [#allocation3], %s295
        %s297 = sand.u32 %s132, 1
        %s298 = smul.addr %s297, 12
        %s299 = scalar_lea.vmem [#allocation7], %s298
        // Predicated region
        $region53: #{generator_forward.1} parent=39 // pred_check
          %p300 = pneg %p145
        $region54: #{generator_forward.1} parent=39 // pred_check_branch
          %302 = sbr.rel (%p300) target = $region56
        $region55: #{generator_forward.1} parent=39 // pred_region
          %304 = dma.done %s296, 192
        $region56: #{generator_forward.1} parent=39 // pred_fallthru
          _
        %s305 = smul.u32 2, %s22
        %p306 = scmp.lt.s32.totalorder %s305, 1
        %s307 = scalar_select %p306, %s305, 1
        %s308 = smul.addr %s307, 4
        %s309 = scalar_lea.vmem %s0, %s308
        %p310 = pneg %p51
        %p311 = pneg %p48
        %p312 = pneg %p72
        %p313 = pneg %p69
        %p314 = pneg %p93
        %p315 = pneg %p90
        %s316 = sand.u32 %s18, 1
        %s317 = scalar_lea.sflag [#allocation3], %s316
        %s318 = sand.u32 %s106, 1
        %s319 = smul.addr %s318, 3072
        %s320 = scalar_lea.vmem [#allocation6], %s319
        %p321 = pneg %p119
        %p322 = pneg %p116
        %s323 = sand.u32 %s18, 1
        %s324 = scalar_lea.sflag [#allocation3], %s323
        %s325 = sand.u32 %s132, 1
        %s326 = smul.addr %s325, 12
        %s327 = scalar_lea.vmem [#allocation7], %s326
        %p328 = pneg %p145
        %p329 = pneg %p142
        %p330 = pneg %p173
        %p331 = pneg %p170
        %s332 = sand.u32 %s160, 1
        %s333 = sand.u32 %s160, 1
        %s334 = smul.addr %s333, 192
        %s335 = scalar_lea.vmem [#allocation8], %s334
        %s336 = smul.u32 2, %s22
        %p337 = scmp.lt.s32.totalorder %s336, 1
        %s338 = scalar_select %p337, %s336, 1
        %s339 = smul.addr %s338, 4
        %s340 = scalar_lea.vmem %s0, %s339
        %s341 = smul.u32 2, %s22
        %s342 = smul.u32 12, %s23
        %s343 = smul.u32 12, %s23
        %s344 = smul.u32 2, %s22
        %s345 = smul.u32 12, %s23
        %v346 = vld [vmem:[%s340] sm:$0xf]
        %v347 = vld [vmem:[%s340 + $0x4] sm:$0xf]
        %v348 = vld [vmem:[#allocation2] sm:$0xff]
        %v349 = vld [vmem:[#allocation2 + $0x8] sm:$0xff]
        %v350 = vld [vmem:[#allocation2 + $0x10] sm:$0xff]
        %v351 = vld [vmem:[#allocation2 + $0x18] sm:$0xff]
        %v352 = vld [vmem:[#allocation2 + $0x20] sm:$0xff]
        %v353 = vld [vmem:[#allocation2 + $0x28] sm:$0xff]
        %v354 = vld [vmem:[#allocation2 + $0x30] sm:$0xff]
        %v355 = vld [vmem:[#allocation2 + $0x38] sm:$0xff]
        %v356 = vld [vmem:[#allocation2 + $0x40] sm:$0xff]
        %v357 = vld [vmem:[#allocation2 + $0x48] sm:$0xff]
        %v358 = vld [vmem:[#allocation2 + $0x50] sm:$0xff]
        %v359 = vld [vmem:[#allocation2 + $0x58] sm:$0xff]
        %v360 = vld [vmem:[#allocation2 + $0x60] sm:$0xff]
        %v361 = vld [vmem:[#allocation2 + $0x68] sm:$0xff]
        %v362 = vld [vmem:[#allocation2 + $0x70] sm:$0xff]
        %v363 = vld [vmem:[#allocation2 + $0x78] sm:$0xff]
        %v364 = vld [vmem:[#allocation2 + $0x80] sm:$0xff]
        %v365 = vld [vmem:[#allocation2 + $0x88] sm:$0xff]
        %v366 = vld [vmem:[#allocation2 + $0x90] sm:$0xff]
        %v367 = vld [vmem:[#allocation2 + $0x98] sm:$0xff]
        %v368 = vld [vmem:[#allocation2 + $0xa0] sm:$0xff]
        %v369 = vld [vmem:[#allocation2 + $0xa8] sm:$0xff]
        %v370 = vld [vmem:[#allocation2 + $0xb0] sm:$0xff]
        %v371 = vld [vmem:[#allocation2 + $0xb8] sm:$0xff]
        %v372 = vld [vmem:[#allocation2 + $0xc0] sm:$0xff]
        %v373 = vld [vmem:[#allocation2 + $0xc8] sm:$0xff]
        %v374 = vld [vmem:[#allocation2 + $0xd0] sm:$0xff]
        %v375 = vld [vmem:[#allocation2 + $0xd8] sm:$0xff]
        %v376 = vld [vmem:[#allocation2 + $0xe0] sm:$0xff]
        %v377 = vld [vmem:[#allocation2 + $0xe8] sm:$0xff]
        %v378 = vld [vmem:[#allocation2 + $0xf0] sm:$0xff]
        %v379 = vld [vmem:[#allocation2 + $0xf8] sm:$0xff]
        %v380 = vld [vmem:[#allocation4] sm:$0xf]
        %v382 = vperm.slane %v380, 0
        %v383 = vperm.slane %v380, 1
        %v384 = vperm.slane %v380, 2
        %v385 = vperm.slane %v380, 3
        %v392 = vunpack.c.l.b16 %v346
        %v393 = vunpack.c.l.b16 %v347
        %v394 = vpack.c.b16 %v393, %v392
        %v428 = vunpack.c.l.b16 %v348
        %v429 = vunpack.c.h.b16 %v348
        %v430 = vunpack.c.l.b16 %v349
        %v431 = vunpack.c.h.b16 %v349
        %v432 = vunpack.c.l.b16 %v350
        %v433 = vunpack.c.h.b16 %v350
        %v434 = vunpack.c.l.b16 %v351
        %v435 = vunpack.c.h.b16 %v351
        %v436 = vunpack.c.l.b16 %v352
        %v437 = vunpack.c.h.b16 %v352
        %v438 = vunpack.c.l.b16 %v353
        %v439 = vunpack.c.h.b16 %v353
        %v440 = vunpack.c.l.b16 %v354
        %v441 = vunpack.c.h.b16 %v354
        %v442 = vunpack.c.l.b16 %v355
        %v443 = vunpack.c.h.b16 %v355
        %v444 = vunpack.c.l.b16 %v356
        %v445 = vunpack.c.h.b16 %v356
        %v446 = vunpack.c.l.b16 %v357
        %v447 = vunpack.c.h.b16 %v357
        %v448 = vunpack.c.l.b16 %v358
        %v449 = vunpack.c.h.b16 %v358
        %v450 = vunpack.c.l.b16 %v359
        %v451 = vunpack.c.h.b16 %v359
        %v452 = vunpack.c.l.b16 %v360
        %v453 = vunpack.c.h.b16 %v360
        %v454 = vunpack.c.l.b16 %v361
        %v455 = vunpack.c.h.b16 %v361
        %v456 = vunpack.c.l.b16 %v362
        %v457 = vunpack.c.h.b16 %v362
        %v458 = vunpack.c.l.b16 %v363
        %v459 = vunpack.c.h.b16 %v363
        %v460 = vunpack.c.l.b16 %v364
        %v461 = vunpack.c.h.b16 %v364
        %v462 = vunpack.c.l.b16 %v365
        %v463 = vunpack.c.h.b16 %v365
        %v464 = vunpack.c.l.b16 %v366
        %v465 = vunpack.c.h.b16 %v366
        %v466 = vunpack.c.l.b16 %v367
        %v467 = vunpack.c.h.b16 %v367
        %v468 = vunpack.c.l.b16 %v368
        %v469 = vunpack.c.h.b16 %v368
        %v470 = vunpack.c.l.b16 %v369
        %v471 = vunpack.c.h.b16 %v369
        %v472 = vunpack.c.l.b16 %v370
        %v473 = vunpack.c.h.b16 %v370
        %v474 = vunpack.c.l.b16 %v371
        %v475 = vunpack.c.h.b16 %v371
        %v476 = vunpack.c.l.b16 %v372
        %v477 = vunpack.c.h.b16 %v372
        %v478 = vunpack.c.l.b16 %v373
        %v479 = vunpack.c.h.b16 %v373
        %v480 = vunpack.c.l.b16 %v374
        %v481 = vunpack.c.h.b16 %v374
        %v482 = vunpack.c.l.b16 %v375
        %v483 = vunpack.c.h.b16 %v375
        %v484 = vunpack.c.l.b16 %v376
        %v485 = vunpack.c.h.b16 %v376
        %v486 = vunpack.c.l.b16 %v377
        %v487 = vunpack.c.h.b16 %v377
        %v488 = vunpack.c.l.b16 %v378
        %v489 = vunpack.c.h.b16 %v378
        %v490 = vunpack.c.l.b16 %v379
        %v491 = vunpack.c.h.b16 %v379
        %v492 = vpack.c.b16 %v432, %v428
        %v493 = vpack.c.b16 %v433, %v429
        %v494 = vpack.c.b16 %v434, %v430
        %v495 = vpack.c.b16 %v435, %v431
        %v496 = vpack.c.b16 %v440, %v436
        %v497 = vpack.c.b16 %v441, %v437
        %v498 = vpack.c.b16 %v442, %v438
        %v499 = vpack.c.b16 %v443, %v439
        %v500 = vpack.c.b16 %v448, %v444
        %v501 = vpack.c.b16 %v449, %v445
        %v502 = vpack.c.b16 %v450, %v446
        %v503 = vpack.c.b16 %v451, %v447
        %v504 = vpack.c.b16 %v456, %v452
        %v505 = vpack.c.b16 %v457, %v453
        %v506 = vpack.c.b16 %v458, %v454
        %v507 = vpack.c.b16 %v459, %v455
        %v508 = vpack.c.b16 %v464, %v460
        %v509 = vpack.c.b16 %v465, %v461
        %v510 = vpack.c.b16 %v466, %v462
        %v511 = vpack.c.b16 %v467, %v463
        %v512 = vpack.c.b16 %v472, %v468
        %v513 = vpack.c.b16 %v473, %v469
        %v514 = vpack.c.b16 %v474, %v470
        %v515 = vpack.c.b16 %v475, %v471
        %v516 = vpack.c.b16 %v480, %v476
        %v517 = vpack.c.b16 %v481, %v477
        %v518 = vpack.c.b16 %v482, %v478
        %v519 = vpack.c.b16 %v483, %v479
        %v520 = vpack.c.b16 %v488, %v484
        %v521 = vpack.c.b16 %v489, %v485
        %v522 = vpack.c.b16 %v490, %v486
        %v523 = vpack.c.b16 %v491, %v487
        %556 = vmatpush.bf16.msra.mxu0 %v520
        %557 = vmatpush.bf16.msra.mxu0 %v516
        %558 = vmatpush.bf16.msra.mxu0 %v512
        %559 = vmatpush.bf16.msra.mxu0 %v508
        %560 = vmatpush.bf16.msra.mxu0 %v504
        %561 = vmatpush.bf16.msra.mxu0 %v500
        %562 = vmatpush.bf16.msra.mxu0 %v496
        %563 = vmatpush.bf16.msra.mxu0 %v492
        %564 = vmatmul.bf16.gmra.mxu0 %v394
        %v565 = vpop.f32.mrf.mxu0
        %v566 = vadd.f32 %v382, %v565
        %v567 = vpop.f32.mrf.mxu0
        %v568 = vadd.f32 %v382, %v567
        %569 = vdwg.mxu0
        %570 = vmatpush.bf16.msra.mxu0 %v521
        %571 = vmatpush.bf16.msra.mxu0 %v517
        %572 = vmatpush.bf16.msra.mxu0 %v513
        %573 = vmatpush.bf16.msra.mxu0 %v509
        %574 = vmatpush.bf16.msra.mxu0 %v505
        %575 = vmatpush.bf16.msra.mxu0 %v501
        %576 = vmatpush.bf16.msra.mxu0 %v497
        %577 = vmatpush.bf16.msra.mxu0 %v493
        %578 = vmatmul.bf16.gmra.mxu0 %v394
        %v579 = vpop.f32.mrf.mxu0
        %v580 = vadd.f32 %v383, %v579
        %v581 = vpop.f32.mrf.mxu0
        %v582 = vadd.f32 %v383, %v581
        %583 = vdwg.mxu0
        %584 = vmatpush.bf16.msra.mxu0 %v522
        %585 = vmatpush.bf16.msra.mxu0 %v518
        %586 = vmatpush.bf16.msra.mxu0 %v514
        %587 = vmatpush.bf16.msra.mxu0 %v510
        %588 = vmatpush.bf16.msra.mxu0 %v506
        %589 = vmatpush.bf16.msra.mxu0 %v502
        %590 = vmatpush.bf16.msra.mxu0 %v498
        %591 = vmatpush.bf16.msra.mxu0 %v494
        %592 = vmatmul.bf16.gmra.mxu0 %v394
        %v593 = vpop.f32.mrf.mxu0
        %v594 = vadd.f32 %v384, %v593
        %v595 = vpop.f32.mrf.mxu0
        %v596 = vadd.f32 %v384, %v595
        %597 = vdwg.mxu0
        %598 = vmatpush.bf16.msra.mxu0 %v523
        %599 = vmatpush.bf16.msra.mxu0 %v519
        %600 = vmatpush.bf16.msra.mxu0 %v515
        %601 = vmatpush.bf16.msra.mxu0 %v511
        %602 = vmatpush.bf16.msra.mxu0 %v507
        %603 = vmatpush.bf16.msra.mxu0 %v503
        %604 = vmatpush.bf16.msra.mxu0 %v499
        %605 = vmatpush.bf16.msra.mxu0 %v495
        %606 = vmatmul.bf16.gmra.mxu0 %v394
        %v607 = vpop.f32.mrf.mxu0
        %v608 = vadd.f32 %v385, %v607
        %v609 = vpop.f32.mrf.mxu0
        %v610 = vadd.f32 %v385, %v609
        %611 = vdwg.mxu0
        %vm612 = vcmp.gt.f32.partialorder %v566, 0.0
        %vm613 = vcmp.gt.f32.partialorder %v580, 0.0
        %vm614 = vcmp.gt.f32.partialorder %v594, 0.0
        %vm615 = vcmp.gt.f32.partialorder %v608, 0.0
        %vm616 = vcmp.gt.f32.partialorder %v568, 0.0
        %vm617 = vcmp.gt.f32.partialorder %v582, 0.0
        %vm618 = vcmp.gt.f32.partialorder %v596, 0.0
        %vm619 = vcmp.gt.f32.partialorder %v610, 0.0
        %v620 = vmul.f32 %v566, 0.01
        %v621 = vmul.f32 %v580, 0.01
        %v622 = vmul.f32 %v594, 0.01
        %v623 = vmul.f32 %v608, 0.01
        %v624 = vmul.f32 %v568, 0.01
        %v625 = vmul.f32 %v582, 0.01
        %v626 = vmul.f32 %v596, 0.01
        %v627 = vmul.f32 %v610, 0.01
        %v628 = vsel %vm612, %v566, %v620
        %v629 = vsel %vm613, %v580, %v621
        %v630 = vsel %vm614, %v594, %v622
        %v631 = vsel %vm615, %v608, %v623
        %v632 = vsel %vm616, %v568, %v624
        %v633 = vsel %vm617, %v582, %v625
        %v634 = vsel %vm618, %v596, %v626
        %v635 = vsel %vm619, %v610, %v627
        %v636 = vpack.c.bf16 %v632, %v628
        %v637 = vpack.c.bf16 %v633, %v629
        %v638 = vpack.c.bf16 %v634, %v630
        %v639 = vpack.c.bf16 %v635, %v631
        %v640 = vld [vmem:[%s289] sm:$0xff]
        %v641 = vld [vmem:[%s289 + $0x8] sm:$0xff]
        %v642 = vld [vmem:[%s289 + $0x10] sm:$0xff]
        %v643 = vld [vmem:[%s289 + $0x18] sm:$0xff]
        %v644 = vld [vmem:[%s289 + $0x20] sm:$0xff]
        %v645 = vld [vmem:[%s289 + $0x28] sm:$0xff]
        %v646 = vld [vmem:[%s289 + $0x30] sm:$0xff]
        %v647 = vld [vmem:[%s289 + $0x38] sm:$0xff]
        %v648 = vld [vmem:[%s289 + $0x40] sm:$0xff]
        %v649 = vld [vmem:[%s289 + $0x48] sm:$0xff]
        %v650 = vld [vmem:[%s289 + $0x50] sm:$0xff]
        %v651 = vld [vmem:[%s289 + $0x58] sm:$0xff]
        %v652 = vld [vmem:[%s289 + $0x60] sm:$0xff]
        %v653 = vld [vmem:[%s289 + $0x68] sm:$0xff]
        %v654 = vld [vmem:[%s289 + $0x70] sm:$0xff]
        %v655 = vld [vmem:[%s289 + $0x78] sm:$0xff]
        %v656 = vld [vmem:[%s289 + $0x80] sm:$0xff]
        %v657 = vld [vmem:[%s289 + $0x88] sm:$0xff]
        %v658 = vld [vmem:[%s289 + $0x90] sm:$0xff]
        %v659 = vld [vmem:[%s289 + $0x98] sm:$0xff]
        %v660 = vld [vmem:[%s289 + $0xa0] sm:$0xff]
        %v661 = vld [vmem:[%s289 + $0xa8] sm:$0xff]
        %v662 = vld [vmem:[%s289 + $0xb0] sm:$0xff]
        %v663 = vld [vmem:[%s289 + $0xb8] sm:$0xff]
        %v664 = vld [vmem:[%s289 + $0xc0] sm:$0xff]
        %v665 = vld [vmem:[%s289 + $0xc8] sm:$0xff]
        %v666 = vld [vmem:[%s289 + $0xd0] sm:$0xff]
        %v667 = vld [vmem:[%s289 + $0xd8] sm:$0xff]
        %v668 = vld [vmem:[%s289 + $0xe0] sm:$0xff]
        %v669 = vld [vmem:[%s289 + $0xe8] sm:$0xff]
        %v670 = vld [vmem:[%s289 + $0xf0] sm:$0xff]
        %v671 = vld [vmem:[%s289 + $0xf8] sm:$0xff]
        %v672 = vld [vmem:[%s289 + $0x100] sm:$0xff]
        %v673 = vld [vmem:[%s289 + $0x108] sm:$0xff]
        %v674 = vld [vmem:[%s289 + $0x110] sm:$0xff]
        %v675 = vld [vmem:[%s289 + $0x118] sm:$0xff]
        %v676 = vld [vmem:[%s289 + $0x120] sm:$0xff]
        %v677 = vld [vmem:[%s289 + $0x128] sm:$0xff]
        %v678 = vld [vmem:[%s289 + $0x130] sm:$0xff]
        %v679 = vld [vmem:[%s289 + $0x138] sm:$0xff]
        %v680 = vld [vmem:[%s289 + $0x140] sm:$0xff]
        %v681 = vld [vmem:[%s289 + $0x148] sm:$0xff]
        %v682 = vld [vmem:[%s289 + $0x150] sm:$0xff]
        %v683 = vld [vmem:[%s289 + $0x158] sm:$0xff]
        %v684 = vld [vmem:[%s289 + $0x160] sm:$0xff]
        %v685 = vld [vmem:[%s289 + $0x168] sm:$0xff]
        %v686 = vld [vmem:[%s289 + $0x170] sm:$0xff]
        %v687 = vld [vmem:[%s289 + $0x178] sm:$0xff]
        %v688 = vld [vmem:[%s289 + $0x180] sm:$0xff]
        %v689 = vld [vmem:[%s289 + $0x188] sm:$0xff]
        %v690 = vld [vmem:[%s289 + $0x190] sm:$0xff]
        %v691 = vld [vmem:[%s289 + $0x198] sm:$0xff]
        %v692 = vld [vmem:[%s289 + $0x1a0] sm:$0xff]
        %v693 = vld [vmem:[%s289 + $0x1a8] sm:$0xff]
        %v694 = vld [vmem:[%s289 + $0x1b0] sm:$0xff]
        %v695 = vld [vmem:[%s289 + $0x1b8] sm:$0xff]
        %v696 = vld [vmem:[%s289 + $0x1c0] sm:$0xff]
        %v697 = vld [vmem:[%s289 + $0x1c8] sm:$0xff]
        %v698 = vld [vmem:[%s289 + $0x1d0] sm:$0xff]
        %v699 = vld [vmem:[%s289 + $0x1d8] sm:$0xff]
        %v700 = vld [vmem:[%s289 + $0x1e0] sm:$0xff]
        %v701 = vld [vmem:[%s289 + $0x1e8] sm:$0xff]
        %v702 = vld [vmem:[%s289 + $0x1f0] sm:$0xff]
        %v703 = vld [vmem:[%s289 + $0x1f8] sm:$0xff]
        %v704 = vld [vmem:[%s289 + $0x200] sm:$0xff]
        %v705 = vld [vmem:[%s289 + $0x208] sm:$0xff]
        %v706 = vld [vmem:[%s289 + $0x210] sm:$0xff]
        %v707 = vld [vmem:[%s289 + $0x218] sm:$0xff]
        %v708 = vld [vmem:[%s289 + $0x220] sm:$0xff]
        %v709 = vld [vmem:[%s289 + $0x228] sm:$0xff]
        %v710 = vld [vmem:[%s289 + $0x230] sm:$0xff]
        %v711 = vld [vmem:[%s289 + $0x238] sm:$0xff]
        %v712 = vld [vmem:[%s289 + $0x240] sm:$0xff]
        %v713 = vld [vmem:[%s289 + $0x248] sm:$0xff]
        %v714 = vld [vmem:[%s289 + $0x250] sm:$0xff]
        %v715 = vld [vmem:[%s289 + $0x258] sm:$0xff]
        %v716 = vld [vmem:[%s289 + $0x260] sm:$0xff]
        %v717 = vld [vmem:[%s289 + $0x268] sm:$0xff]
        %v718 = vld [vmem:[%s289 + $0x270] sm:$0xff]
        %v719 = vld [vmem:[%s289 + $0x278] sm:$0xff]
        %v720 = vld [vmem:[%s289 + $0x280] sm:$0xff]
        %v721 = vld [vmem:[%s289 + $0x288] sm:$0xff]
        %v722 = vld [vmem:[%s289 + $0x290] sm:$0xff]
        %v723 = vld [vmem:[%s289 + $0x298] sm:$0xff]
        %v724 = vld [vmem:[%s289 + $0x2a0] sm:$0xff]
        %v725 = vld [vmem:[%s289 + $0x2a8] sm:$0xff]
        %v726 = vld [vmem:[%s289 + $0x2b0] sm:$0xff]
        %v727 = vld [vmem:[%s289 + $0x2b8] sm:$0xff]
        %v728 = vld [vmem:[%s289 + $0x2c0] sm:$0xff]
        %v729 = vld [vmem:[%s289 + $0x2c8] sm:$0xff]
        %v730 = vld [vmem:[%s289 + $0x2d0] sm:$0xff]
        %v731 = vld [vmem:[%s289 + $0x2d8] sm:$0xff]
        %v732 = vld [vmem:[%s289 + $0x2e0] sm:$0xff]
        %v733 = vld [vmem:[%s289 + $0x2e8] sm:$0xff]
        %v734 = vld [vmem:[%s289 + $0x2f0] sm:$0xff]
        %v735 = vld [vmem:[%s289 + $0x2f8] sm:$0xff]
        %v736 = vld [vmem:[%s289 + $0x300] sm:$0xff]
        %v737 = vld [vmem:[%s289 + $0x308] sm:$0xff]
        %v738 = vld [vmem:[%s289 + $0x310] sm:$0xff]
        %v739 = vld [vmem:[%s289 + $0x318] sm:$0xff]
        %v740 = vld [vmem:[%s289 + $0x320] sm:$0xff]
        %v741 = vld [vmem:[%s289 + $0x328] sm:$0xff]
        %v742 = vld [vmem:[%s289 + $0x330] sm:$0xff]
        %v743 = vld [vmem:[%s289 + $0x338] sm:$0xff]
        %v744 = vld [vmem:[%s289 + $0x340] sm:$0xff]
        %v745 = vld [vmem:[%s289 + $0x348] sm:$0xff]
        %v746 = vld [vmem:[%s289 + $0x350] sm:$0xff]
        %v747 = vld [vmem:[%s289 + $0x358] sm:$0xff]
        %v748 = vld [vmem:[%s289 + $0x360] sm:$0xff]
        %v749 = vld [vmem:[%s289 + $0x368] sm:$0xff]
        %v750 = vld [vmem:[%s289 + $0x370] sm:$0xff]
        %v751 = vld [vmem:[%s289 + $0x378] sm:$0xff]
        %v752 = vld [vmem:[%s289 + $0x380] sm:$0xff]
        %v753 = vld [vmem:[%s289 + $0x388] sm:$0xff]
        %v754 = vld [vmem:[%s289 + $0x390] sm:$0xff]
        %v755 = vld [vmem:[%s289 + $0x398] sm:$0xff]
        %v756 = vld [vmem:[%s289 + $0x3a0] sm:$0xff]
        %v757 = vld [vmem:[%s289 + $0x3a8] sm:$0xff]
        %v758 = vld [vmem:[%s289 + $0x3b0] sm:$0xff]
        %v759 = vld [vmem:[%s289 + $0x3b8] sm:$0xff]
        %v760 = vld [vmem:[%s289 + $0x3c0] sm:$0xff]
        %v761 = vld [vmem:[%s289 + $0x3c8] sm:$0xff]
        %v762 = vld [vmem:[%s289 + $0x3d0] sm:$0xff]
        %v763 = vld [vmem:[%s289 + $0x3d8] sm:$0xff]
        %v764 = vld [vmem:[%s289 + $0x3e0] sm:$0xff]
        %v765 = vld [vmem:[%s289 + $0x3e8] sm:$0xff]
        %v766 = vld [vmem:[%s289 + $0x3f0] sm:$0xff]
        %v767 = vld [vmem:[%s289 + $0x3f8] sm:$0xff]
        %v768 = vld [vmem:[%s289 + $0x400] sm:$0xff]
        %v769 = vld [vmem:[%s289 + $0x408] sm:$0xff]
        %v770 = vld [vmem:[%s289 + $0x410] sm:$0xff]
        %v771 = vld [vmem:[%s289 + $0x418] sm:$0xff]
        %v772 = vld [vmem:[%s289 + $0x420] sm:$0xff]
        %v773 = vld [vmem:[%s289 + $0x428] sm:$0xff]
        %v774 = vld [vmem:[%s289 + $0x430] sm:$0xff]
        %v775 = vld [vmem:[%s289 + $0x438] sm:$0xff]
        %v776 = vld [vmem:[%s289 + $0x440] sm:$0xff]
        %v777 = vld [vmem:[%s289 + $0x448] sm:$0xff]
        %v778 = vld [vmem:[%s289 + $0x450] sm:$0xff]
        %v779 = vld [vmem:[%s289 + $0x458] sm:$0xff]
        %v780 = vld [vmem:[%s289 + $0x460] sm:$0xff]
        %v781 = vld [vmem:[%s289 + $0x468] sm:$0xff]
        %v782 = vld [vmem:[%s289 + $0x470] sm:$0xff]
        %v783 = vld [vmem:[%s289 + $0x478] sm:$0xff]
        %v784 = vld [vmem:[%s289 + $0x480] sm:$0xff]
        %v785 = vld [vmem:[%s289 + $0x488] sm:$0xff]
        %v786 = vld [vmem:[%s289 + $0x490] sm:$0xff]
        %v787 = vld [vmem:[%s289 + $0x498] sm:$0xff]
        %v788 = vld [vmem:[%s289 + $0x4a0] sm:$0xff]
        %v789 = vld [vmem:[%s289 + $0x4a8] sm:$0xff]
        %v790 = vld [vmem:[%s289 + $0x4b0] sm:$0xff]
        %v791 = vld [vmem:[%s289 + $0x4b8] sm:$0xff]
        %v792 = vld [vmem:[%s289 + $0x4c0] sm:$0xff]
        %v793 = vld [vmem:[%s289 + $0x4c8] sm:$0xff]
        %v794 = vld [vmem:[%s289 + $0x4d0] sm:$0xff]
        %v795 = vld [vmem:[%s289 + $0x4d8] sm:$0xff]
        %v796 = vld [vmem:[%s289 + $0x4e0] sm:$0xff]
        %v797 = vld [vmem:[%s289 + $0x4e8] sm:$0xff]
        %v798 = vld [vmem:[%s289 + $0x4f0] sm:$0xff]
        %v799 = vld [vmem:[%s289 + $0x4f8] sm:$0xff]
        %v800 = vld [vmem:[%s289 + $0x500] sm:$0xff]
        %v801 = vld [vmem:[%s289 + $0x508] sm:$0xff]
        %v802 = vld [vmem:[%s289 + $0x510] sm:$0xff]
        %v803 = vld [vmem:[%s289 + $0x518] sm:$0xff]
        %v804 = vld [vmem:[%s289 + $0x520] sm:$0xff]
        %v805 = vld [vmem:[%s289 + $0x528] sm:$0xff]
        %v806 = vld [vmem:[%s289 + $0x530] sm:$0xff]
        %v807 = vld [vmem:[%s289 + $0x538] sm:$0xff]
        %v808 = vld [vmem:[%s289 + $0x540] sm:$0xff]
        %v809 = vld [vmem:[%s289 + $0x548] sm:$0xff]
        %v810 = vld [vmem:[%s289 + $0x550] sm:$0xff]
        %v811 = vld [vmem:[%s289 + $0x558] sm:$0xff]
        %v812 = vld [vmem:[%s289 + $0x560] sm:$0xff]
        %v813 = vld [vmem:[%s289 + $0x568] sm:$0xff]
        %v814 = vld [vmem:[%s289 + $0x570] sm:$0xff]
        %v815 = vld [vmem:[%s289 + $0x578] sm:$0xff]
        %v816 = vld [vmem:[%s289 + $0x580] sm:$0xff]
        %v817 = vld [vmem:[%s289 + $0x588] sm:$0xff]
        %v818 = vld [vmem:[%s289 + $0x590] sm:$0xff]
        %v819 = vld [vmem:[%s289 + $0x598] sm:$0xff]
        %v820 = vld [vmem:[%s289 + $0x5a0] sm:$0xff]
        %v821 = vld [vmem:[%s289 + $0x5a8] sm:$0xff]
        %v822 = vld [vmem:[%s289 + $0x5b0] sm:$0xff]
        %v823 = vld [vmem:[%s289 + $0x5b8] sm:$0xff]
        %v824 = vld [vmem:[%s289 + $0x5c0] sm:$0xff]
        %v825 = vld [vmem:[%s289 + $0x5c8] sm:$0xff]
        %v826 = vld [vmem:[%s289 + $0x5d0] sm:$0xff]
        %v827 = vld [vmem:[%s289 + $0x5d8] sm:$0xff]
        %v828 = vld [vmem:[%s289 + $0x5e0] sm:$0xff]
        %v829 = vld [vmem:[%s289 + $0x5e8] sm:$0xff]
        %v830 = vld [vmem:[%s289 + $0x5f0] sm:$0xff]
        %v831 = vld [vmem:[%s289 + $0x5f8] sm:$0xff]
        %v832 = vld [vmem:[%s289 + $0x600] sm:$0xff]
        %v833 = vld [vmem:[%s289 + $0x608] sm:$0xff]
        %v834 = vld [vmem:[%s289 + $0x610] sm:$0xff]
        %v835 = vld [vmem:[%s289 + $0x618] sm:$0xff]
        %v836 = vld [vmem:[%s289 + $0x620] sm:$0xff]
        %v837 = vld [vmem:[%s289 + $0x628] sm:$0xff]
        %v838 = vld [vmem:[%s289 + $0x630] sm:$0xff]
        %v839 = vld [vmem:[%s289 + $0x638] sm:$0xff]
        %v840 = vld [vmem:[%s289 + $0x640] sm:$0xff]
        %v841 = vld [vmem:[%s289 + $0x648] sm:$0xff]
        %v842 = vld [vmem:[%s289 + $0x650] sm:$0xff]
        %v843 = vld [vmem:[%s289 + $0x658] sm:$0xff]
        %v844 = vld [vmem:[%s289 + $0x660] sm:$0xff]
        %v845 = vld [vmem:[%s289 + $0x668] sm:$0xff]
        %v846 = vld [vmem:[%s289 + $0x670] sm:$0xff]
        %v847 = vld [vmem:[%s289 + $0x678] sm:$0xff]
        %v848 = vld [vmem:[%s289 + $0x680] sm:$0xff]
        %v849 = vld [vmem:[%s289 + $0x688] sm:$0xff]
        %v850 = vld [vmem:[%s289 + $0x690] sm:$0xff]
        %v851 = vld [vmem:[%s289 + $0x698] sm:$0xff]
        %v852 = vld [vmem:[%s289 + $0x6a0] sm:$0xff]
        %v853 = vld [vmem:[%s289 + $0x6a8] sm:$0xff]
        %v854 = vld [vmem:[%s289 + $0x6b0] sm:$0xff]
        %v855 = vld [vmem:[%s289 + $0x6b8] sm:$0xff]
        %v856 = vld [vmem:[%s289 + $0x6c0] sm:$0xff]
        %v857 = vld [vmem:[%s289 + $0x6c8] sm:$0xff]
        %v858 = vld [vmem:[%s289 + $0x6d0] sm:$0xff]
        %v859 = vld [vmem:[%s289 + $0x6d8] sm:$0xff]
        %v860 = vld [vmem:[%s289 + $0x6e0] sm:$0xff]
        %v861 = vld [vmem:[%s289 + $0x6e8] sm:$0xff]
        %v862 = vld [vmem:[%s289 + $0x6f0] sm:$0xff]
        %v863 = vld [vmem:[%s289 + $0x6f8] sm:$0xff]
        %v864 = vld [vmem:[%s289 + $0x700] sm:$0xff]
        %v865 = vld [vmem:[%s289 + $0x708] sm:$0xff]
        %v866 = vld [vmem:[%s289 + $0x710] sm:$0xff]
        %v867 = vld [vmem:[%s289 + $0x718] sm:$0xff]
        %v868 = vld [vmem:[%s289 + $0x720] sm:$0xff]
        %v869 = vld [vmem:[%s289 + $0x728] sm:$0xff]
        %v870 = vld [vmem:[%s289 + $0x730] sm:$0xff]
        %v871 = vld [vmem:[%s289 + $0x738] sm:$0xff]
        %v872 = vld [vmem:[%s289 + $0x740] sm:$0xff]
        %v873 = vld [vmem:[%s289 + $0x748] sm:$0xff]
        %v874 = vld [vmem:[%s289 + $0x750] sm:$0xff]
        %v875 = vld [vmem:[%s289 + $0x758] sm:$0xff]
        %v876 = vld [vmem:[%s289 + $0x760] sm:$0xff]
        %v877 = vld [vmem:[%s289 + $0x768] sm:$0xff]
        %v878 = vld [vmem:[%s289 + $0x770] sm:$0xff]
        %v879 = vld [vmem:[%s289 + $0x778] sm:$0xff]
        %v880 = vld [vmem:[%s289 + $0x780] sm:$0xff]
        %v881 = vld [vmem:[%s289 + $0x788] sm:$0xff]
        %v882 = vld [vmem:[%s289 + $0x790] sm:$0xff]
        %v883 = vld [vmem:[%s289 + $0x798] sm:$0xff]
        %v884 = vld [vmem:[%s289 + $0x7a0] sm:$0xff]
        %v885 = vld [vmem:[%s289 + $0x7a8] sm:$0xff]
        %v886 = vld [vmem:[%s289 + $0x7b0] sm:$0xff]
        %v887 = vld [vmem:[%s289 + $0x7b8] sm:$0xff]
        %v888 = vld [vmem:[%s289 + $0x7c0] sm:$0xff]
        %v889 = vld [vmem:[%s289 + $0x7c8] sm:$0xff]
        %v890 = vld [vmem:[%s289 + $0x7d0] sm:$0xff]
        %v891 = vld [vmem:[%s289 + $0x7d8] sm:$0xff]
        %v892 = vld [vmem:[%s289 + $0x7e0] sm:$0xff]
        %v893 = vld [vmem:[%s289 + $0x7e8] sm:$0xff]
        %v894 = vld [vmem:[%s289 + $0x7f0] sm:$0xff]
        %v895 = vld [vmem:[%s289 + $0x7f8] sm:$0xff]
        %v896 = vld [vmem:[%s289 + $0x800] sm:$0xff]
        %v897 = vld [vmem:[%s289 + $0x808] sm:$0xff]
        %v898 = vld [vmem:[%s289 + $0x810] sm:$0xff]
        %v899 = vld [vmem:[%s289 + $0x818] sm:$0xff]
        %v900 = vld [vmem:[%s289 + $0x820] sm:$0xff]
        %v901 = vld [vmem:[%s289 + $0x828] sm:$0xff]
        %v902 = vld [vmem:[%s289 + $0x830] sm:$0xff]
        %v903 = vld [vmem:[%s289 + $0x838] sm:$0xff]
        %v904 = vld [vmem:[%s289 + $0x840] sm:$0xff]
        %v905 = vld [vmem:[%s289 + $0x848] sm:$0xff]
        %v906 = vld [vmem:[%s289 + $0x850] sm:$0xff]
        %v907 = vld [vmem:[%s289 + $0x858] sm:$0xff]
        %v908 = vld [vmem:[%s289 + $0x860] sm:$0xff]
        %v909 = vld [vmem:[%s289 + $0x868] sm:$0xff]
        %v910 = vld [vmem:[%s289 + $0x870] sm:$0xff]
        %v911 = vld [vmem:[%s289 + $0x878] sm:$0xff]
        %v912 = vld [vmem:[%s289 + $0x880] sm:$0xff]
        %v913 = vld [vmem:[%s289 + $0x888] sm:$0xff]
        %v914 = vld [vmem:[%s289 + $0x890] sm:$0xff]
        %v915 = vld [vmem:[%s289 + $0x898] sm:$0xff]
        %v916 = vld [vmem:[%s289 + $0x8a0] sm:$0xff]
        %v917 = vld [vmem:[%s289 + $0x8a8] sm:$0xff]
        %v918 = vld [vmem:[%s289 + $0x8b0] sm:$0xff]
        %v919 = vld [vmem:[%s289 + $0x8b8] sm:$0xff]
        %v920 = vld [vmem:[%s289 + $0x8c0] sm:$0xff]
        %v921 = vld [vmem:[%s289 + $0x8c8] sm:$0xff]
        %v922 = vld [vmem:[%s289 + $0x8d0] sm:$0xff]
        %v923 = vld [vmem:[%s289 + $0x8d8] sm:$0xff]
        %v924 = vld [vmem:[%s289 + $0x8e0] sm:$0xff]
        %v925 = vld [vmem:[%s289 + $0x8e8] sm:$0xff]
        %v926 = vld [vmem:[%s289 + $0x8f0] sm:$0xff]
        %v927 = vld [vmem:[%s289 + $0x8f8] sm:$0xff]
        %v928 = vld [vmem:[%s289 + $0x900] sm:$0xff]
        %v929 = vld [vmem:[%s289 + $0x908] sm:$0xff]
        %v930 = vld [vmem:[%s289 + $0x910] sm:$0xff]
        %v931 = vld [vmem:[%s289 + $0x918] sm:$0xff]
        %v932 = vld [vmem:[%s289 + $0x920] sm:$0xff]
        %v933 = vld [vmem:[%s289 + $0x928] sm:$0xff]
        %v934 = vld [vmem:[%s289 + $0x930] sm:$0xff]
        %v935 = vld [vmem:[%s289 + $0x938] sm:$0xff]
        %v936 = vld [vmem:[%s289 + $0x940] sm:$0xff]
        %v937 = vld [vmem:[%s289 + $0x948] sm:$0xff]
        %v938 = vld [vmem:[%s289 + $0x950] sm:$0xff]
        %v939 = vld [vmem:[%s289 + $0x958] sm:$0xff]
        %v940 = vld [vmem:[%s289 + $0x960] sm:$0xff]
        %v941 = vld [vmem:[%s289 + $0x968] sm:$0xff]
        %v942 = vld [vmem:[%s289 + $0x970] sm:$0xff]
        %v943 = vld [vmem:[%s289 + $0x978] sm:$0xff]
        %v944 = vld [vmem:[%s289 + $0x980] sm:$0xff]
        %v945 = vld [vmem:[%s289 + $0x988] sm:$0xff]
        %v946 = vld [vmem:[%s289 + $0x990] sm:$0xff]
        %v947 = vld [vmem:[%s289 + $0x998] sm:$0xff]
        %v948 = vld [vmem:[%s289 + $0x9a0] sm:$0xff]
        %v949 = vld [vmem:[%s289 + $0x9a8] sm:$0xff]
        %v950 = vld [vmem:[%s289 + $0x9b0] sm:$0xff]
        %v951 = vld [vmem:[%s289 + $0x9b8] sm:$0xff]
        %v952 = vld [vmem:[%s289 + $0x9c0] sm:$0xff]
        %v953 = vld [vmem:[%s289 + $0x9c8] sm:$0xff]
        %v954 = vld [vmem:[%s289 + $0x9d0] sm:$0xff]
        %v955 = vld [vmem:[%s289 + $0x9d8] sm:$0xff]
        %v956 = vld [vmem:[%s289 + $0x9e0] sm:$0xff]
        %v957 = vld [vmem:[%s289 + $0x9e8] sm:$0xff]
        %v958 = vld [vmem:[%s289 + $0x9f0] sm:$0xff]
        %v959 = vld [vmem:[%s289 + $0x9f8] sm:$0xff]
        %v960 = vld [vmem:[%s289 + $0xa00] sm:$0xff]
        %v961 = vld [vmem:[%s289 + $0xa08] sm:$0xff]
        %v962 = vld [vmem:[%s289 + $0xa10] sm:$0xff]
        %v963 = vld [vmem:[%s289 + $0xa18] sm:$0xff]
        %v964 = vld [vmem:[%s289 + $0xa20] sm:$0xff]
        %v965 = vld [vmem:[%s289 + $0xa28] sm:$0xff]
        %v966 = vld [vmem:[%s289 + $0xa30] sm:$0xff]
        %v967 = vld [vmem:[%s289 + $0xa38] sm:$0xff]
        %v968 = vld [vmem:[%s289 + $0xa40] sm:$0xff]
        %v969 = vld [vmem:[%s289 + $0xa48] sm:$0xff]
        %v970 = vld [vmem:[%s289 + $0xa50] sm:$0xff]
        %v971 = vld [vmem:[%s289 + $0xa58] sm:$0xff]
        %v972 = vld [vmem:[%s289 + $0xa60] sm:$0xff]
        %v973 = vld [vmem:[%s289 + $0xa68] sm:$0xff]
        %v974 = vld [vmem:[%s289 + $0xa70] sm:$0xff]
        %v975 = vld [vmem:[%s289 + $0xa78] sm:$0xff]
        %v976 = vld [vmem:[%s289 + $0xa80] sm:$0xff]
        %v977 = vld [vmem:[%s289 + $0xa88] sm:$0xff]
        %v978 = vld [vmem:[%s289 + $0xa90] sm:$0xff]
        %v979 = vld [vmem:[%s289 + $0xa98] sm:$0xff]
        %v980 = vld [vmem:[%s289 + $0xaa0] sm:$0xff]
        %v981 = vld [vmem:[%s289 + $0xaa8] sm:$0xff]
        %v982 = vld [vmem:[%s289 + $0xab0] sm:$0xff]
        %v983 = vld [vmem:[%s289 + $0xab8] sm:$0xff]
        %v984 = vld [vmem:[%s289 + $0xac0] sm:$0xff]
        %v985 = vld [vmem:[%s289 + $0xac8] sm:$0xff]
        %v986 = vld [vmem:[%s289 + $0xad0] sm:$0xff]
        %v987 = vld [vmem:[%s289 + $0xad8] sm:$0xff]
        %v988 = vld [vmem:[%s289 + $0xae0] sm:$0xff]
        %v989 = vld [vmem:[%s289 + $0xae8] sm:$0xff]
        %v990 = vld [vmem:[%s289 + $0xaf0] sm:$0xff]
        %v991 = vld [vmem:[%s289 + $0xaf8] sm:$0xff]
        %v992 = vld [vmem:[%s289 + $0xb00] sm:$0xff]
        %v993 = vld [vmem:[%s289 + $0xb08] sm:$0xff]
        %v994 = vld [vmem:[%s289 + $0xb10] sm:$0xff]
        %v995 = vld [vmem:[%s289 + $0xb18] sm:$0xff]
        %v996 = vld [vmem:[%s289 + $0xb20] sm:$0xff]
        %v997 = vld [vmem:[%s289 + $0xb28] sm:$0xff]
        %v998 = vld [vmem:[%s289 + $0xb30] sm:$0xff]
        %v999 = vld [vmem:[%s289 + $0xb38] sm:$0xff]
        %v1000 = vld [vmem:[%s289 + $0xb40] sm:$0xff]
        %v1001 = vld [vmem:[%s289 + $0xb48] sm:$0xff]
        %v1002 = vld [vmem:[%s289 + $0xb50] sm:$0xff]
        %v1003 = vld [vmem:[%s289 + $0xb58] sm:$0xff]
        %v1004 = vld [vmem:[%s289 + $0xb60] sm:$0xff]
        %v1005 = vld [vmem:[%s289 + $0xb68] sm:$0xff]
        %v1006 = vld [vmem:[%s289 + $0xb70] sm:$0xff]
        %v1007 = vld [vmem:[%s289 + $0xb78] sm:$0xff]
        %v1008 = vld [vmem:[%s289 + $0xb80] sm:$0xff]
        %v1009 = vld [vmem:[%s289 + $0xb88] sm:$0xff]
        %v1010 = vld [vmem:[%s289 + $0xb90] sm:$0xff]
        %v1011 = vld [vmem:[%s289 + $0xb98] sm:$0xff]
        %v1012 = vld [vmem:[%s289 + $0xba0] sm:$0xff]
        %v1013 = vld [vmem:[%s289 + $0xba8] sm:$0xff]
        %v1014 = vld [vmem:[%s289 + $0xbb0] sm:$0xff]
        %v1015 = vld [vmem:[%s289 + $0xbb8] sm:$0xff]
        %v1016 = vld [vmem:[%s289 + $0xbc0] sm:$0xff]
        %v1017 = vld [vmem:[%s289 + $0xbc8] sm:$0xff]
        %v1018 = vld [vmem:[%s289 + $0xbd0] sm:$0xff]
        %v1019 = vld [vmem:[%s289 + $0xbd8] sm:$0xff]
        %v1020 = vld [vmem:[%s289 + $0xbe0] sm:$0xff]
        %v1021 = vld [vmem:[%s289 + $0xbe8] sm:$0xff]
        %v1022 = vld [vmem:[%s289 + $0xbf0] sm:$0xff]
        %v1023 = vld [vmem:[%s289 + $0xbf8] sm:$0xff]
        %v1024 = vld [vmem:[%s299] sm:$0xff]
        %v1025 = vld [vmem:[%s299 + $0x8] sm:$0xf]
        %v1028 = vperm.slane %v1024, 0
        %v1029 = vperm.slane %v1024, 1
        %v1030 = vperm.slane %v1024, 2
        %v1031 = vperm.slane %v1024, 3
        %v1032 = vperm.slane %v1024, 4
        %v1033 = vperm.slane %v1024, 5
        %v1034 = vperm.slane %v1024, 6
        %v1035 = vperm.slane %v1024, 7
        %v1036 = vperm.slane %v1025, 0
        %v1037 = vperm.slane %v1025, 1
        %v1038 = vperm.slane %v1025, 2
        %v1039 = vperm.slane %v1025, 3
        %v1436 = vunpack.c.l.b16 %v640
        %v1437 = vunpack.c.h.b16 %v640
        %v1438 = vunpack.c.l.b16 %v641
        %v1439 = vunpack.c.h.b16 %v641
        %v1440 = vunpack.c.l.b16 %v642
        %v1441 = vunpack.c.h.b16 %v642
        %v1442 = vunpack.c.l.b16 %v643
        %v1443 = vunpack.c.h.b16 %v643
        %v1444 = vunpack.c.l.b16 %v644
        %v1445 = vunpack.c.h.b16 %v644
        %v1446 = vunpack.c.l.b16 %v645
        %v1447 = vunpack.c.h.b16 %v645
        %v1448 = vunpack.c.l.b16 %v646
        %v1449 = vunpack.c.h.b16 %v646
        %v1450 = vunpack.c.l.b16 %v647
        %v1451 = vunpack.c.h.b16 %v647
        %v1452 = vunpack.c.l.b16 %v648
        %v1453 = vunpack.c.h.b16 %v648
        %v1454 = vunpack.c.l.b16 %v649
        %v1455 = vunpack.c.h.b16 %v649
        %v1456 = vunpack.c.l.b16 %v650
        %v1457 = vunpack.c.h.b16 %v650
        %v1458 = vunpack.c.l.b16 %v651
        %v1459 = vunpack.c.h.b16 %v651
        %v1460 = vunpack.c.l.b16 %v652
        %v1461 = vunpack.c.h.b16 %v652
        %v1462 = vunpack.c.l.b16 %v653
        %v1463 = vunpack.c.h.b16 %v653
        %v1464 = vunpack.c.l.b16 %v654
        %v1465 = vunpack.c.h.b16 %v654
        %v1466 = vunpack.c.l.b16 %v655
        %v1467 = vunpack.c.h.b16 %v655
        %v1468 = vunpack.c.l.b16 %v656
        %v1469 = vunpack.c.h.b16 %v656
        %v1470 = vunpack.c.l.b16 %v657
        %v1471 = vunpack.c.h.b16 %v657
        %v1472 = vunpack.c.l.b16 %v658
        %v1473 = vunpack.c.h.b16 %v658
        %v1474 = vunpack.c.l.b16 %v659
        %v1475 = vunpack.c.h.b16 %v659
        %v1476 = vunpack.c.l.b16 %v660
        %v1477 = vunpack.c.h.b16 %v660
        %v1478 = vunpack.c.l.b16 %v661
        %v1479 = vunpack.c.h.b16 %v661
        %v1480 = vunpack.c.l.b16 %v662
        %v1481 = vunpack.c.h.b16 %v662
        %v1482 = vunpack.c.l.b16 %v663
        %v1483 = vunpack.c.h.b16 %v663
        %v1484 = vunpack.c.l.b16 %v664
        %v1485 = vunpack.c.h.b16 %v664
        %v1486 = vunpack.c.l.b16 %v665
        %v1487 = vunpack.c.h.b16 %v665
        %v1488 = vunpack.c.l.b16 %v666
        %v1489 = vunpack.c.h.b16 %v666
        %v1490 = vunpack.c.l.b16 %v667
        %v1491 = vunpack.c.h.b16 %v667
        %v1492 = vunpack.c.l.b16 %v668
        %v1493 = vunpack.c.h.b16 %v668
        %v1494 = vunpack.c.l.b16 %v669
        %v1495 = vunpack.c.h.b16 %v669
        %v1496 = vunpack.c.l.b16 %v670
        %v1497 = vunpack.c.h.b16 %v670
        %v1498 = vunpack.c.l.b16 %v671
        %v1499 = vunpack.c.h.b16 %v671
        %v1500 = vunpack.c.l.b16 %v672
        %v1501 = vunpack.c.h.b16 %v672
        %v1502 = vunpack.c.l.b16 %v673
        %v1503 = vunpack.c.h.b16 %v673
        %v1504 = vunpack.c.l.b16 %v674
        %v1505 = vunpack.c.h.b16 %v674
        %v1506 = vunpack.c.l.b16 %v675
        %v1507 = vunpack.c.h.b16 %v675
        %v1508 = vunpack.c.l.b16 %v676
        %v1509 = vunpack.c.h.b16 %v676
        %v1510 = vunpack.c.l.b16 %v677
        %v1511 = vunpack.c.h.b16 %v677
        %v1512 = vunpack.c.l.b16 %v678
        %v1513 = vunpack.c.h.b16 %v678
        %v1514 = vunpack.c.l.b16 %v679
        %v1515 = vunpack.c.h.b16 %v679
        %v1516 = vunpack.c.l.b16 %v680
        %v1517 = vunpack.c.h.b16 %v680
        %v1518 = vunpack.c.l.b16 %v681
        %v1519 = vunpack.c.h.b16 %v681
        %v1520 = vunpack.c.l.b16 %v682
        %v1521 = vunpack.c.h.b16 %v682
        %v1522 = vunpack.c.l.b16 %v683
        %v1523 = vunpack.c.h.b16 %v683
        %v1524 = vunpack.c.l.b16 %v684
        %v1525 = vunpack.c.h.b16 %v684
        %v1526 = vunpack.c.l.b16 %v685
        %v1527 = vunpack.c.h.b16 %v685
        %v1528 = vunpack.c.l.b16 %v686
        %v1529 = vunpack.c.h.b16 %v686
        %v1530 = vunpack.c.l.b16 %v687
        %v1531 = vunpack.c.h.b16 %v687
        %v1532 = vunpack.c.l.b16 %v688
        %v1533 = vunpack.c.h.b16 %v688
        %v1534 = vunpack.c.l.b16 %v689
        %v1535 = vunpack.c.h.b16 %v689
        %v1536 = vunpack.c.l.b16 %v690
        %v1537 = vunpack.c.h.b16 %v690
        %v1538 = vunpack.c.l.b16 %v691
        %v1539 = vunpack.c.h.b16 %v691
        %v1540 = vunpack.c.l.b16 %v692
        %v1541 = vunpack.c.h.b16 %v692
        %v1542 = vunpack.c.l.b16 %v693
        %v1543 = vunpack.c.h.b16 %v693
        %v1544 = vunpack.c.l.b16 %v694
        %v1545 = vunpack.c.h.b16 %v694
        %v1546 = vunpack.c.l.b16 %v695
        %v1547 = vunpack.c.h.b16 %v695
        %v1548 = vunpack.c.l.b16 %v696
        %v1549 = vunpack.c.h.b16 %v696
        %v1550 = vunpack.c.l.b16 %v697
        %v1551 = vunpack.c.h.b16 %v697
        %v1552 = vunpack.c.l.b16 %v698
        %v1553 = vunpack.c.h.b16 %v698
        %v1554 = vunpack.c.l.b16 %v699
        %v1555 = vunpack.c.h.b16 %v699
        %v1556 = vunpack.c.l.b16 %v700
        %v1557 = vunpack.c.h.b16 %v700
        %v1558 = vunpack.c.l.b16 %v701
        %v1559 = vunpack.c.h.b16 %v701
        %v1560 = vunpack.c.l.b16 %v702
        %v1561 = vunpack.c.h.b16 %v702
        %v1562 = vunpack.c.l.b16 %v703
        %v1563 = vunpack.c.h.b16 %v703
        %v1564 = vunpack.c.l.b16 %v704
        %v1565 = vunpack.c.h.b16 %v704
        %v1566 = vunpack.c.l.b16 %v705
        %v1567 = vunpack.c.h.b16 %v705
        %v1568 = vunpack.c.l.b16 %v706
        %v1569 = vunpack.c.h.b16 %v706
        %v1570 = vunpack.c.l.b16 %v707
        %v1571 = vunpack.c.h.b16 %v707
        %v1572 = vunpack.c.l.b16 %v708
        %v1573 = vunpack.c.h.b16 %v708
        %v1574 = vunpack.c.l.b16 %v709
        %v1575 = vunpack.c.h.b16 %v709
        %v1576 = vunpack.c.l.b16 %v710
        %v1577 = vunpack.c.h.b16 %v710
        %v1578 = vunpack.c.l.b16 %v711
        %v1579 = vunpack.c.h.b16 %v711
        %v1580 = vunpack.c.l.b16 %v712
        %v1581 = vunpack.c.h.b16 %v712
        %v1582 = vunpack.c.l.b16 %v713
        %v1583 = vunpack.c.h.b16 %v713
        %v1584 = vunpack.c.l.b16 %v714
        %v1585 = vunpack.c.h.b16 %v714
        %v1586 = vunpack.c.l.b16 %v715
        %v1587 = vunpack.c.h.b16 %v715
        %v1588 = vunpack.c.l.b16 %v716
        %v1589 = vunpack.c.h.b16 %v716
        %v1590 = vunpack.c.l.b16 %v717
        %v1591 = vunpack.c.h.b16 %v717
        %v1592 = vunpack.c.l.b16 %v718
        %v1593 = vunpack.c.h.b16 %v718
        %v1594 = vunpack.c.l.b16 %v719
        %v1595 = vunpack.c.h.b16 %v719
        %v1596 = vunpack.c.l.b16 %v720
        %v1597 = vunpack.c.h.b16 %v720
        %v1598 = vunpack.c.l.b16 %v721
        %v1599 = vunpack.c.h.b16 %v721
        %v1600 = vunpack.c.l.b16 %v722
        %v1601 = vunpack.c.h.b16 %v722
        %v1602 = vunpack.c.l.b16 %v723
        %v1603 = vunpack.c.h.b16 %v723
        %v1604 = vunpack.c.l.b16 %v724
        %v1605 = vunpack.c.h.b16 %v724
        %v1606 = vunpack.c.l.b16 %v725
        %v1607 = vunpack.c.h.b16 %v725
        %v1608 = vunpack.c.l.b16 %v726
        %v1609 = vunpack.c.h.b16 %v726
        %v1610 = vunpack.c.l.b16 %v727
        %v1611 = vunpack.c.h.b16 %v727
        %v1612 = vunpack.c.l.b16 %v728
        %v1613 = vunpack.c.h.b16 %v728
        %v1614 = vunpack.c.l.b16 %v729
        %v1615 = vunpack.c.h.b16 %v729
        %v1616 = vunpack.c.l.b16 %v730
        %v1617 = vunpack.c.h.b16 %v730
        %v1618 = vunpack.c.l.b16 %v731
        %v1619 = vunpack.c.h.b16 %v731
        %v1620 = vunpack.c.l.b16 %v732
        %v1621 = vunpack.c.h.b16 %v732
        %v1622 = vunpack.c.l.b16 %v733
        %v1623 = vunpack.c.h.b16 %v733
        %v1624 = vunpack.c.l.b16 %v734
        %v1625 = vunpack.c.h.b16 %v734
        %v1626 = vunpack.c.l.b16 %v735
        %v1627 = vunpack.c.h.b16 %v735
        %v1628 = vunpack.c.l.b16 %v736
        %v1629 = vunpack.c.h.b16 %v736
        %v1630 = vunpack.c.l.b16 %v737
        %v1631 = vunpack.c.h.b16 %v737
        %v1632 = vunpack.c.l.b16 %v738
        %v1633 = vunpack.c.h.b16 %v738
        %v1634 = vunpack.c.l.b16 %v739
        %v1635 = vunpack.c.h.b16 %v739
        %v1636 = vunpack.c.l.b16 %v740
        %v1637 = vunpack.c.h.b16 %v740
        %v1638 = vunpack.c.l.b16 %v741
        %v1639 = vunpack.c.h.b16 %v741
        %v1640 = vunpack.c.l.b16 %v742
        %v1641 = vunpack.c.h.b16 %v742
        %v1642 = vunpack.c.l.b16 %v743
        %v1643 = vunpack.c.h.b16 %v743
        %v1644 = vunpack.c.l.b16 %v744
        %v1645 = vunpack.c.h.b16 %v744
        %v1646 = vunpack.c.l.b16 %v745
        %v1647 = vunpack.c.h.b16 %v745
        %v1648 = vunpack.c.l.b16 %v746
        %v1649 = vunpack.c.h.b16 %v746
        %v1650 = vunpack.c.l.b16 %v747
        %v1651 = vunpack.c.h.b16 %v747
        %v1652 = vunpack.c.l.b16 %v748
        %v1653 = vunpack.c.h.b16 %v748
        %v1654 = vunpack.c.l.b16 %v749
        %v1655 = vunpack.c.h.b16 %v749
        %v1656 = vunpack.c.l.b16 %v750
        %v1657 = vunpack.c.h.b16 %v750
        %v1658 = vunpack.c.l.b16 %v751
        %v1659 = vunpack.c.h.b16 %v751
        %v1660 = vunpack.c.l.b16 %v752
        %v1661 = vunpack.c.h.b16 %v752
        %v1662 = vunpack.c.l.b16 %v753
        %v1663 = vunpack.c.h.b16 %v753
        %v1664 = vunpack.c.l.b16 %v754
        %v1665 = vunpack.c.h.b16 %v754
        %v1666 = vunpack.c.l.b16 %v755
        %v1667 = vunpack.c.h.b16 %v755
        %v1668 = vunpack.c.l.b16 %v756
        %v1669 = vunpack.c.h.b16 %v756
        %v1670 = vunpack.c.l.b16 %v757
        %v1671 = vunpack.c.h.b16 %v757
        %v1672 = vunpack.c.l.b16 %v758
        %v1673 = vunpack.c.h.b16 %v758
        %v1674 = vunpack.c.l.b16 %v759
        %v1675 = vunpack.c.h.b16 %v759
        %v1676 = vunpack.c.l.b16 %v760
        %v1677 = vunpack.c.h.b16 %v760
        %v1678 = vunpack.c.l.b16 %v761
        %v1679 = vunpack.c.h.b16 %v761
        %v1680 = vunpack.c.l.b16 %v762
        %v1681 = vunpack.c.h.b16 %v762
        %v1682 = vunpack.c.l.b16 %v763
        %v1683 = vunpack.c.h.b16 %v763
        %v1684 = vunpack.c.l.b16 %v764
        %v1685 = vunpack.c.h.b16 %v764
        %v1686 = vunpack.c.l.b16 %v765
        %v1687 = vunpack.c.h.b16 %v765
        %v1688 = vunpack.c.l.b16 %v766
        %v1689 = vunpack.c.h.b16 %v766
        %v1690 = vunpack.c.l.b16 %v767
        %v1691 = vunpack.c.h.b16 %v767
        %v1692 = vunpack.c.l.b16 %v768
        %v1693 = vunpack.c.h.b16 %v768
        %v1694 = vunpack.c.l.b16 %v769
        %v1695 = vunpack.c.h.b16 %v769
        %v1696 = vunpack.c.l.b16 %v770
        %v1697 = vunpack.c.h.b16 %v770
        %v1698 = vunpack.c.l.b16 %v771
        %v1699 = vunpack.c.h.b16 %v771
        %v1700 = vunpack.c.l.b16 %v772
        %v1701 = vunpack.c.h.b16 %v772
        %v1702 = vunpack.c.l.b16 %v773
        %v1703 = vunpack.c.h.b16 %v773
        %v1704 = vunpack.c.l.b16 %v774
        %v1705 = vunpack.c.h.b16 %v774
        %v1706 = vunpack.c.l.b16 %v775
        %v1707 = vunpack.c.h.b16 %v775
        %v1708 = vunpack.c.l.b16 %v776
        %v1709 = vunpack.c.h.b16 %v776
        %v1710 = vunpack.c.l.b16 %v777
        %v1711 = vunpack.c.h.b16 %v777
        %v1712 = vunpack.c.l.b16 %v778
        %v1713 = vunpack.c.h.b16 %v778
        %v1714 = vunpack.c.l.b16 %v779
        %v1715 = vunpack.c.h.b16 %v779
        %v1716 = vunpack.c.l.b16 %v780
        %v1717 = vunpack.c.h.b16 %v780
        %v1718 = vunpack.c.l.b16 %v781
        %v1719 = vunpack.c.h.b16 %v781
        %v1720 = vunpack.c.l.b16 %v782
        %v1721 = vunpack.c.h.b16 %v782
        %v1722 = vunpack.c.l.b16 %v783
        %v1723 = vunpack.c.h.b16 %v783
        %v1724 = vunpack.c.l.b16 %v784
        %v1725 = vunpack.c.h.b16 %v784
        %v1726 = vunpack.c.l.b16 %v785
        %v1727 = vunpack.c.h.b16 %v785
        %v1728 = vunpack.c.l.b16 %v786
        %v1729 = vunpack.c.h.b16 %v786
        %v1730 = vunpack.c.l.b16 %v787
        %v1731 = vunpack.c.h.b16 %v787
        %v1732 = vunpack.c.l.b16 %v788
        %v1733 = vunpack.c.h.b16 %v788
        %v1734 = vunpack.c.l.b16 %v789
        %v1735 = vunpack.c.h.b16 %v789
        %v1736 = vunpack.c.l.b16 %v790
        %v1737 = vunpack.c.h.b16 %v790
        %v1738 = vunpack.c.l.b16 %v791
        %v1739 = vunpack.c.h.b16 %v791
        %v1740 = vunpack.c.l.b16 %v792
        %v1741 = vunpack.c.h.b16 %v792
        %v1742 = vunpack.c.l.b16 %v793
        %v1743 = vunpack.c.h.b16 %v793
        %v1744 = vunpack.c.l.b16 %v794
        %v1745 = vunpack.c.h.b16 %v794
        %v1746 = vunpack.c.l.b16 %v795
        %v1747 = vunpack.c.h.b16 %v795
        %v1748 = vunpack.c.l.b16 %v796
        %v1749 = vunpack.c.h.b16 %v796
        %v1750 = vunpack.c.l.b16 %v797
        %v1751 = vunpack.c.h.b16 %v797
        %v1752 = vunpack.c.l.b16 %v798
        %v1753 = vunpack.c.h.b16 %v798
        %v1754 = vunpack.c.l.b16 %v799
        %v1755 = vunpack.c.h.b16 %v799
        %v1756 = vunpack.c.l.b16 %v800
        %v1757 = vunpack.c.h.b16 %v800
        %v1758 = vunpack.c.l.b16 %v801
        %v1759 = vunpack.c.h.b16 %v801
        %v1760 = vunpack.c.l.b16 %v802
        %v1761 = vunpack.c.h.b16 %v802
        %v1762 = vunpack.c.l.b16 %v803
        %v1763 = vunpack.c.h.b16 %v803
        %v1764 = vunpack.c.l.b16 %v804
        %v1765 = vunpack.c.h.b16 %v804
        %v1766 = vunpack.c.l.b16 %v805
        %v1767 = vunpack.c.h.b16 %v805
        %v1768 = vunpack.c.l.b16 %v806
        %v1769 = vunpack.c.h.b16 %v806
        %v1770 = vunpack.c.l.b16 %v807
        %v1771 = vunpack.c.h.b16 %v807
        %v1772 = vunpack.c.l.b16 %v808
        %v1773 = vunpack.c.h.b16 %v808
        %v1774 = vunpack.c.l.b16 %v809
        %v1775 = vunpack.c.h.b16 %v809
        %v1776 = vunpack.c.l.b16 %v810
        %v1777 = vunpack.c.h.b16 %v810
        %v1778 = vunpack.c.l.b16 %v811
        %v1779 = vunpack.c.h.b16 %v811
        %v1780 = vunpack.c.l.b16 %v812
        %v1781 = vunpack.c.h.b16 %v812
        %v1782 = vunpack.c.l.b16 %v813
        %v1783 = vunpack.c.h.b16 %v813
        %v1784 = vunpack.c.l.b16 %v814
        %v1785 = vunpack.c.h.b16 %v814
        %v1786 = vunpack.c.l.b16 %v815
        %v1787 = vunpack.c.h.b16 %v815
        %v1788 = vunpack.c.l.b16 %v816
        %v1789 = vunpack.c.h.b16 %v816
        %v1790 = vunpack.c.l.b16 %v817
        %v1791 = vunpack.c.h.b16 %v817
        %v1792 = vunpack.c.l.b16 %v818
        %v1793 = vunpack.c.h.b16 %v818
        %v1794 = vunpack.c.l.b16 %v819
        %v1795 = vunpack.c.h.b16 %v819
        %v1796 = vunpack.c.l.b16 %v820
        %v1797 = vunpack.c.h.b16 %v820
        %v1798 = vunpack.c.l.b16 %v821
        %v1799 = vunpack.c.h.b16 %v821
        %v1800 = vunpack.c.l.b16 %v822
        %v1801 = vunpack.c.h.b16 %v822
        %v1802 = vunpack.c.l.b16 %v823
        %v1803 = vunpack.c.h.b16 %v823
        %v1804 = vunpack.c.l.b16 %v824
        %v1805 = vunpack.c.h.b16 %v824
        %v1806 = vunpack.c.l.b16 %v825
        %v1807 = vunpack.c.h.b16 %v825
        %v1808 = vunpack.c.l.b16 %v826
        %v1809 = vunpack.c.h.b16 %v826
        %v1810 = vunpack.c.l.b16 %v827
        %v1811 = vunpack.c.h.b16 %v827
        %v1812 = vunpack.c.l.b16 %v828
        %v1813 = vunpack.c.h.b16 %v828
        %v1814 = vunpack.c.l.b16 %v829
        %v1815 = vunpack.c.h.b16 %v829
        %v1816 = vunpack.c.l.b16 %v830
        %v1817 = vunpack.c.h.b16 %v830
        %v1818 = vunpack.c.l.b16 %v831
        %v1819 = vunpack.c.h.b16 %v831
        %v1820 = vunpack.c.l.b16 %v832
        %v1821 = vunpack.c.h.b16 %v832
        %v1822 = vunpack.c.l.b16 %v833
        %v1823 = vunpack.c.h.b16 %v833
        %v1824 = vunpack.c.l.b16 %v834
        %v1825 = vunpack.c.h.b16 %v834
        %v1826 = vunpack.c.l.b16 %v835
        %v1827 = vunpack.c.h.b16 %v835
        %v1828 = vunpack.c.l.b16 %v836
        %v1829 = vunpack.c.h.b16 %v836
        %v1830 = vunpack.c.l.b16 %v837
        %v1831 = vunpack.c.h.b16 %v837
        %v1832 = vunpack.c.l.b16 %v838
        %v1833 = vunpack.c.h.b16 %v838
        %v1834 = vunpack.c.l.b16 %v839
        %v1835 = vunpack.c.h.b16 %v839
        %v1836 = vunpack.c.l.b16 %v840
        %v1837 = vunpack.c.h.b16 %v840
        %v1838 = vunpack.c.l.b16 %v841
        %v1839 = vunpack.c.h.b16 %v841
        %v1840 = vunpack.c.l.b16 %v842
        %v1841 = vunpack.c.h.b16 %v842
        %v1842 = vunpack.c.l.b16 %v843
        %v1843 = vunpack.c.h.b16 %v843
        %v1844 = vunpack.c.l.b16 %v844
        %v1845 = vunpack.c.h.b16 %v844
        %v1846 = vunpack.c.l.b16 %v845
        %v1847 = vunpack.c.h.b16 %v845
        %v1848 = vunpack.c.l.b16 %v846
        %v1849 = vunpack.c.h.b16 %v846
        %v1850 = vunpack.c.l.b16 %v847
        %v1851 = vunpack.c.h.b16 %v847
        %v1852 = vunpack.c.l.b16 %v848
        %v1853 = vunpack.c.h.b16 %v848
        %v1854 = vunpack.c.l.b16 %v849
        %v1855 = vunpack.c.h.b16 %v849
        %v1856 = vunpack.c.l.b16 %v850
        %v1857 = vunpack.c.h.b16 %v850
        %v1858 = vunpack.c.l.b16 %v851
        %v1859 = vunpack.c.h.b16 %v851
        %v1860 = vunpack.c.l.b16 %v852
        %v1861 = vunpack.c.h.b16 %v852
        %v1862 = vunpack.c.l.b16 %v853
        %v1863 = vunpack.c.h.b16 %v853
        %v1864 = vunpack.c.l.b16 %v854
        %v1865 = vunpack.c.h.b16 %v854
        %v1866 = vunpack.c.l.b16 %v855
        %v1867 = vunpack.c.h.b16 %v855
        %v1868 = vunpack.c.l.b16 %v856
        %v1869 = vunpack.c.h.b16 %v856
        %v1870 = vunpack.c.l.b16 %v857
        %v1871 = vunpack.c.h.b16 %v857
        %v1872 = vunpack.c.l.b16 %v858
        %v1873 = vunpack.c.h.b16 %v858
        %v1874 = vunpack.c.l.b16 %v859
        %v1875 = vunpack.c.h.b16 %v859
        %v1876 = vunpack.c.l.b16 %v860
        %v1877 = vunpack.c.h.b16 %v860
        %v1878 = vunpack.c.l.b16 %v861
        %v1879 = vunpack.c.h.b16 %v861
        %v1880 = vunpack.c.l.b16 %v862
        %v1881 = vunpack.c.h.b16 %v862
        %v1882 = vunpack.c.l.b16 %v863
        %v1883 = vunpack.c.h.b16 %v863
        %v1884 = vunpack.c.l.b16 %v864
        %v1885 = vunpack.c.h.b16 %v864
        %v1886 = vunpack.c.l.b16 %v865
        %v1887 = vunpack.c.h.b16 %v865
        %v1888 = vunpack.c.l.b16 %v866
        %v1889 = vunpack.c.h.b16 %v866
        %v1890 = vunpack.c.l.b16 %v867
        %v1891 = vunpack.c.h.b16 %v867
        %v1892 = vunpack.c.l.b16 %v868
        %v1893 = vunpack.c.h.b16 %v868
        %v1894 = vunpack.c.l.b16 %v869
        %v1895 = vunpack.c.h.b16 %v869
        %v1896 = vunpack.c.l.b16 %v870
        %v1897 = vunpack.c.h.b16 %v870
        %v1898 = vunpack.c.l.b16 %v871
        %v1899 = vunpack.c.h.b16 %v871
        %v1900 = vunpack.c.l.b16 %v872
        %v1901 = vunpack.c.h.b16 %v872
        %v1902 = vunpack.c.l.b16 %v873
        %v1903 = vunpack.c.h.b16 %v873
        %v1904 = vunpack.c.l.b16 %v874
        %v1905 = vunpack.c.h.b16 %v874
        %v1906 = vunpack.c.l.b16 %v875
        %v1907 = vunpack.c.h.b16 %v875
        %v1908 = vunpack.c.l.b16 %v876
        %v1909 = vunpack.c.h.b16 %v876
        %v1910 = vunpack.c.l.b16 %v877
        %v1911 = vunpack.c.h.b16 %v877
        %v1912 = vunpack.c.l.b16 %v878
        %v1913 = vunpack.c.h.b16 %v878
        %v1914 = vunpack.c.l.b16 %v879
        %v1915 = vunpack.c.h.b16 %v879
        %v1916 = vunpack.c.l.b16 %v880
        %v1917 = vunpack.c.h.b16 %v880
        %v1918 = vunpack.c.l.b16 %v881
        %v1919 = vunpack.c.h.b16 %v881
        %v1920 = vunpack.c.l.b16 %v882
        %v1921 = vunpack.c.h.b16 %v882
        %v1922 = vunpack.c.l.b16 %v883
        %v1923 = vunpack.c.h.b16 %v883
        %v1924 = vunpack.c.l.b16 %v884
        %v1925 = vunpack.c.h.b16 %v884
        %v1926 = vunpack.c.l.b16 %v885
        %v1927 = vunpack.c.h.b16 %v885
        %v1928 = vunpack.c.l.b16 %v886
        %v1929 = vunpack.c.h.b16 %v886
        %v1930 = vunpack.c.l.b16 %v887
        %v1931 = vunpack.c.h.b16 %v887
        %v1932 = vunpack.c.l.b16 %v888
        %v1933 = vunpack.c.h.b16 %v888
        %v1934 = vunpack.c.l.b16 %v889
        %v1935 = vunpack.c.h.b16 %v889
        %v1936 = vunpack.c.l.b16 %v890
        %v1937 = vunpack.c.h.b16 %v890
        %v1938 = vunpack.c.l.b16 %v891
        %v1939 = vunpack.c.h.b16 %v891
        %v1940 = vunpack.c.l.b16 %v892
        %v1941 = vunpack.c.h.b16 %v892
        %v1942 = vunpack.c.l.b16 %v893
        %v1943 = vunpack.c.h.b16 %v893
        %v1944 = vunpack.c.l.b16 %v894
        %v1945 = vunpack.c.h.b16 %v894
        %v1946 = vunpack.c.l.b16 %v895
        %v1947 = vunpack.c.h.b16 %v895
        %v1948 = vunpack.c.l.b16 %v896
        %v1949 = vunpack.c.h.b16 %v896
        %v1950 = vunpack.c.l.b16 %v897
        %v1951 = vunpack.c.h.b16 %v897
        %v1952 = vunpack.c.l.b16 %v898
        %v1953 = vunpack.c.h.b16 %v898
        %v1954 = vunpack.c.l.b16 %v899
        %v1955 = vunpack.c.h.b16 %v899
        %v1956 = vunpack.c.l.b16 %v900
        %v1957 = vunpack.c.h.b16 %v900
        %v1958 = vunpack.c.l.b16 %v901
        %v1959 = vunpack.c.h.b16 %v901
        %v1960 = vunpack.c.l.b16 %v902
        %v1961 = vunpack.c.h.b16 %v902
        %v1962 = vunpack.c.l.b16 %v903
        %v1963 = vunpack.c.h.b16 %v903
        %v1964 = vunpack.c.l.b16 %v904
        %v1965 = vunpack.c.h.b16 %v904
        %v1966 = vunpack.c.l.b16 %v905
        %v1967 = vunpack.c.h.b16 %v905
        %v1968 = vunpack.c.l.b16 %v906
        %v1969 = vunpack.c.h.b16 %v906
        %v1970 = vunpack.c.l.b16 %v907
        %v1971 = vunpack.c.h.b16 %v907
        %v1972 = vunpack.c.l.b16 %v908
        %v1973 = vunpack.c.h.b16 %v908
        %v1974 = vunpack.c.l.b16 %v909
        %v1975 = vunpack.c.h.b16 %v909
        %v1976 = vunpack.c.l.b16 %v910
        %v1977 = vunpack.c.h.b16 %v910
        %v1978 = vunpack.c.l.b16 %v911
        %v1979 = vunpack.c.h.b16 %v911
        %v1980 = vunpack.c.l.b16 %v912
        %v1981 = vunpack.c.h.b16 %v912
        %v1982 = vunpack.c.l.b16 %v913
        %v1983 = vunpack.c.h.b16 %v913
        %v1984 = vunpack.c.l.b16 %v914
        %v1985 = vunpack.c.h.b16 %v914
        %v1986 = vunpack.c.l.b16 %v915
        %v1987 = vunpack.c.h.b16 %v915
        %v1988 = vunpack.c.l.b16 %v916
        %v1989 = vunpack.c.h.b16 %v916
        %v1990 = vunpack.c.l.b16 %v917
        %v1991 = vunpack.c.h.b16 %v917
        %v1992 = vunpack.c.l.b16 %v918
        %v1993 = vunpack.c.h.b16 %v918
        %v1994 = vunpack.c.l.b16 %v919
        %v1995 = vunpack.c.h.b16 %v919
        %v1996 = vunpack.c.l.b16 %v920
        %v1997 = vunpack.c.h.b16 %v920
        %v1998 = vunpack.c.l.b16 %v921
        %v1999 = vunpack.c.h.b16 %v921
        %v2000 = vunpack.c.l.b16 %v922
        %v2001 = vunpack.c.h.b16 %v922
        %v2002 = vunpack.c.l.b16 %v923
        %v2003 = vunpack.c.h.b16 %v923
        %v2004 = vunpack.c.l.b16 %v924
        %v2005 = vunpack.c.h.b16 %v924
        %v2006 = vunpack.c.l.b16 %v925
        %v2007 = vunpack.c.h.b16 %v925
        %v2008 = vunpack.c.l.b16 %v926
        %v2009 = vunpack.c.h.b16 %v926
        %v2010 = vunpack.c.l.b16 %v927
        %v2011 = vunpack.c.h.b16 %v927
        %v2012 = vunpack.c.l.b16 %v928
        %v2013 = vunpack.c.h.b16 %v928
        %v2014 = vunpack.c.l.b16 %v929
        %v2015 = vunpack.c.h.b16 %v929
        %v2016 = vunpack.c.l.b16 %v930
        %v2017 = vunpack.c.h.b16 %v930
        %v2018 = vunpack.c.l.b16 %v931
        %v2019 = vunpack.c.h.b16 %v931
        %v2020 = vunpack.c.l.b16 %v932
        %v2021 = vunpack.c.h.b16 %v932
        %v2022 = vunpack.c.l.b16 %v933
        %v2023 = vunpack.c.h.b16 %v933
        %v2024 = vunpack.c.l.b16 %v934
        %v2025 = vunpack.c.h.b16 %v934
        %v2026 = vunpack.c.l.b16 %v935
        %v2027 = vunpack.c.h.b16 %v935
        %v2028 = vunpack.c.l.b16 %v936
        %v2029 = vunpack.c.h.b16 %v936
        %v2030 = vunpack.c.l.b16 %v937
        %v2031 = vunpack.c.h.b16 %v937
        %v2032 = vunpack.c.l.b16 %v938
        %v2033 = vunpack.c.h.b16 %v938
        %v2034 = vunpack.c.l.b16 %v939
        %v2035 = vunpack.c.h.b16 %v939
        %v2036 = vunpack.c.l.b16 %v940
        %v2037 = vunpack.c.h.b16 %v940
        %v2038 = vunpack.c.l.b16 %v941
        %v2039 = vunpack.c.h.b16 %v941
        %v2040 = vunpack.c.l.b16 %v942
        %v2041 = vunpack.c.h.b16 %v942
        %v2042 = vunpack.c.l.b16 %v943
        %v2043 = vunpack.c.h.b16 %v943
        %v2044 = vunpack.c.l.b16 %v944
        %v2045 = vunpack.c.h.b16 %v944
        %v2046 = vunpack.c.l.b16 %v945
        %v2047 = vunpack.c.h.b16 %v945
        %v2048 = vunpack.c.l.b16 %v946
        %v2049 = vunpack.c.h.b16 %v946
        %v2050 = vunpack.c.l.b16 %v947
        %v2051 = vunpack.c.h.b16 %v947
        %v2052 = vunpack.c.l.b16 %v948
        %v2053 = vunpack.c.h.b16 %v948
        %v2054 = vunpack.c.l.b16 %v949
        %v2055 = vunpack.c.h.b16 %v949
        %v2056 = vunpack.c.l.b16 %v950
        %v2057 = vunpack.c.h.b16 %v950
        %v2058 = vunpack.c.l.b16 %v951
        %v2059 = vunpack.c.h.b16 %v951
        %v2060 = vunpack.c.l.b16 %v952
        %v2061 = vunpack.c.h.b16 %v952
        %v2062 = vunpack.c.l.b16 %v953
        %v2063 = vunpack.c.h.b16 %v953
        %v2064 = vunpack.c.l.b16 %v954
        %v2065 = vunpack.c.h.b16 %v954
        %v2066 = vunpack.c.l.b16 %v955
        %v2067 = vunpack.c.h.b16 %v955
        %v2068 = vunpack.c.l.b16 %v956
        %v2069 = vunpack.c.h.b16 %v956
        %v2070 = vunpack.c.l.b16 %v957
        %v2071 = vunpack.c.h.b16 %v957
        %v2072 = vunpack.c.l.b16 %v958
        %v2073 = vunpack.c.h.b16 %v958
        %v2074 = vunpack.c.l.b16 %v959
        %v2075 = vunpack.c.h.b16 %v959
        %v2076 = vunpack.c.l.b16 %v960
        %v2077 = vunpack.c.h.b16 %v960
        %v2078 = vunpack.c.l.b16 %v961
        %v2079 = vunpack.c.h.b16 %v961
        %v2080 = vunpack.c.l.b16 %v962
        %v2081 = vunpack.c.h.b16 %v962
        %v2082 = vunpack.c.l.b16 %v963
        %v2083 = vunpack.c.h.b16 %v963
        %v2084 = vunpack.c.l.b16 %v964
        %v2085 = vunpack.c.h.b16 %v964
        %v2086 = vunpack.c.l.b16 %v965
        %v2087 = vunpack.c.h.b16 %v965
        %v2088 = vunpack.c.l.b16 %v966
        %v2089 = vunpack.c.h.b16 %v966
        %v2090 = vunpack.c.l.b16 %v967
        %v2091 = vunpack.c.h.b16 %v967
        %v2092 = vunpack.c.l.b16 %v968
        %v2093 = vunpack.c.h.b16 %v968
        %v2094 = vunpack.c.l.b16 %v969
        %v2095 = vunpack.c.h.b16 %v969
        %v2096 = vunpack.c.l.b16 %v970
        %v2097 = vunpack.c.h.b16 %v970
        %v2098 = vunpack.c.l.b16 %v971
        %v2099 = vunpack.c.h.b16 %v971
        %v2100 = vunpack.c.l.b16 %v972
        %v2101 = vunpack.c.h.b16 %v972
        %v2102 = vunpack.c.l.b16 %v973
        %v2103 = vunpack.c.h.b16 %v973
        %v2104 = vunpack.c.l.b16 %v974
        %v2105 = vunpack.c.h.b16 %v974
        %v2106 = vunpack.c.l.b16 %v975
        %v2107 = vunpack.c.h.b16 %v975
        %v2108 = vunpack.c.l.b16 %v976
        %v2109 = vunpack.c.h.b16 %v976
        %v2110 = vunpack.c.l.b16 %v977
        %v2111 = vunpack.c.h.b16 %v977
        %v2112 = vunpack.c.l.b16 %v978
        %v2113 = vunpack.c.h.b16 %v978
        %v2114 = vunpack.c.l.b16 %v979
        %v2115 = vunpack.c.h.b16 %v979
        %v2116 = vunpack.c.l.b16 %v980
        %v2117 = vunpack.c.h.b16 %v980
        %v2118 = vunpack.c.l.b16 %v981
        %v2119 = vunpack.c.h.b16 %v981
        %v2120 = vunpack.c.l.b16 %v982
        %v2121 = vunpack.c.h.b16 %v982
        %v2122 = vunpack.c.l.b16 %v983
        %v2123 = vunpack.c.h.b16 %v983
        %v2124 = vunpack.c.l.b16 %v984
        %v2125 = vunpack.c.h.b16 %v984
        %v2126 = vunpack.c.l.b16 %v985
        %v2127 = vunpack.c.h.b16 %v985
        %v2128 = vunpack.c.l.b16 %v986
        %v2129 = vunpack.c.h.b16 %v986
        %v2130 = vunpack.c.l.b16 %v987
        %v2131 = vunpack.c.h.b16 %v987
        %v2132 = vunpack.c.l.b16 %v988
        %v2133 = vunpack.c.h.b16 %v988
        %v2134 = vunpack.c.l.b16 %v989
        %v2135 = vunpack.c.h.b16 %v989
        %v2136 = vunpack.c.l.b16 %v990
        %v2137 = vunpack.c.h.b16 %v990
        %v2138 = vunpack.c.l.b16 %v991
        %v2139 = vunpack.c.h.b16 %v991
        %v2140 = vunpack.c.l.b16 %v992
        %v2141 = vunpack.c.h.b16 %v992
        %v2142 = vunpack.c.l.b16 %v993
        %v2143 = vunpack.c.h.b16 %v993
        %v2144 = vunpack.c.l.b16 %v994
        %v2145 = vunpack.c.h.b16 %v994
        %v2146 = vunpack.c.l.b16 %v995
        %v2147 = vunpack.c.h.b16 %v995
        %v2148 = vunpack.c.l.b16 %v996
        %v2149 = vunpack.c.h.b16 %v996
        %v2150 = vunpack.c.l.b16 %v997
        %v2151 = vunpack.c.h.b16 %v997
        %v2152 = vunpack.c.l.b16 %v998
        %v2153 = vunpack.c.h.b16 %v998
        %v2154 = vunpack.c.l.b16 %v999
        %v2155 = vunpack.c.h.b16 %v999
        %v2156 = vunpack.c.l.b16 %v1000
        %v2157 = vunpack.c.h.b16 %v1000
        %v2158 = vunpack.c.l.b16 %v1001
        %v2159 = vunpack.c.h.b16 %v1001
        %v2160 = vunpack.c.l.b16 %v1002
        %v2161 = vunpack.c.h.b16 %v1002
        %v2162 = vunpack.c.l.b16 %v1003
        %v2163 = vunpack.c.h.b16 %v1003
        %v2164 = vunpack.c.l.b16 %v1004
        %v2165 = vunpack.c.h.b16 %v1004
        %v2166 = vunpack.c.l.b16 %v1005
        %v2167 = vunpack.c.h.b16 %v1005
        %v2168 = vunpack.c.l.b16 %v1006
        %v2169 = vunpack.c.h.b16 %v1006
        %v2170 = vunpack.c.l.b16 %v1007
        %v2171 = vunpack.c.h.b16 %v1007
        %v2172 = vunpack.c.l.b16 %v1008
        %v2173 = vunpack.c.h.b16 %v1008
        %v2174 = vunpack.c.l.b16 %v1009
        %v2175 = vunpack.c.h.b16 %v1009
        %v2176 = vunpack.c.l.b16 %v1010
        %v2177 = vunpack.c.h.b16 %v1010
        %v2178 = vunpack.c.l.b16 %v1011
        %v2179 = vunpack.c.h.b16 %v1011
        %v2180 = vunpack.c.l.b16 %v1012
        %v2181 = vunpack.c.h.b16 %v1012
        %v2182 = vunpack.c.l.b16 %v1013
        %v2183 = vunpack.c.h.b16 %v1013
        %v2184 = vunpack.c.l.b16 %v1014
        %v2185 = vunpack.c.h.b16 %v1014
        %v2186 = vunpack.c.l.b16 %v1015
        %v2187 = vunpack.c.h.b16 %v1015
        %v2188 = vunpack.c.l.b16 %v1016
        %v2189 = vunpack.c.h.b16 %v1016
        %v2190 = vunpack.c.l.b16 %v1017
        %v2191 = vunpack.c.h.b16 %v1017
        %v2192 = vunpack.c.l.b16 %v1018
        %v2193 = vunpack.c.h.b16 %v1018
        %v2194 = vunpack.c.l.b16 %v1019
        %v2195 = vunpack.c.h.b16 %v1019
        %v2196 = vunpack.c.l.b16 %v1020
        %v2197 = vunpack.c.h.b16 %v1020
        %v2198 = vunpack.c.l.b16 %v1021
        %v2199 = vunpack.c.h.b16 %v1021
        %v2200 = vunpack.c.l.b16 %v1022
        %v2201 = vunpack.c.h.b16 %v1022
        %v2202 = vunpack.c.l.b16 %v1023
        %v2203 = vunpack.c.h.b16 %v1023
        %v2204 = vpack.c.b16 %v1448, %v1436
        %v2205 = vpack.c.b16 %v1449, %v1437
        %v2206 = vpack.c.b16 %v1450, %v1438
        %v2207 = vpack.c.b16 %v1451, %v1439
        %v2208 = vpack.c.b16 %v1452, %v1440
        %v2209 = vpack.c.b16 %v1453, %v1441
        %v2210 = vpack.c.b16 %v1454, %v1442
        %v2211 = vpack.c.b16 %v1455, %v1443
        %v2212 = vpack.c.b16 %v1456, %v1444
        %v2213 = vpack.c.b16 %v1457, %v1445
        %v2214 = vpack.c.b16 %v1458, %v1446
        %v2215 = vpack.c.b16 %v1459, %v1447
        %v2216 = vpack.c.b16 %v1472, %v1460
        %v2217 = vpack.c.b16 %v1473, %v1461
        %v2218 = vpack.c.b16 %v1474, %v1462
        %v2219 = vpack.c.b16 %v1475, %v1463
        %v2220 = vpack.c.b16 %v1476, %v1464
        %v2221 = vpack.c.b16 %v1477, %v1465
        %v2222 = vpack.c.b16 %v1478, %v1466
        %v2223 = vpack.c.b16 %v1479, %v1467
        %v2224 = vpack.c.b16 %v1480, %v1468
        %v2225 = vpack.c.b16 %v1481, %v1469
        %v2226 = vpack.c.b16 %v1482, %v1470
        %v2227 = vpack.c.b16 %v1483, %v1471
        %v2228 = vpack.c.b16 %v1496, %v1484
        %v2229 = vpack.c.b16 %v1497, %v1485
        %v2230 = vpack.c.b16 %v1498, %v1486
        %v2231 = vpack.c.b16 %v1499, %v1487
        %v2232 = vpack.c.b16 %v1500, %v1488
        %v2233 = vpack.c.b16 %v1501, %v1489
        %v2234 = vpack.c.b16 %v1502, %v1490
        %v2235 = vpack.c.b16 %v1503, %v1491
        %v2236 = vpack.c.b16 %v1504, %v1492
        %v2237 = vpack.c.b16 %v1505, %v1493
        %v2238 = vpack.c.b16 %v1506, %v1494
        %v2239 = vpack.c.b16 %v1507, %v1495
        %v2240 = vpack.c.b16 %v1520, %v1508
        %v2241 = vpack.c.b16 %v1521, %v1509
        %v2242 = vpack.c.b16 %v1522, %v1510
        %v2243 = vpack.c.b16 %v1523, %v1511
        %v2244 = vpack.c.b16 %v1524, %v1512
        %v2245 = vpack.c.b16 %v1525, %v1513
        %v2246 = vpack.c.b16 %v1526, %v1514
        %v2247 = vpack.c.b16 %v1527, %v1515
        %v2248 = vpack.c.b16 %v1528, %v1516
        %v2249 = vpack.c.b16 %v1529, %v1517
        %v2250 = vpack.c.b16 %v1530, %v1518
        %v2251 = vpack.c.b16 %v1531, %v1519
        %v2252 = vpack.c.b16 %v1544, %v1532
        %v2253 = vpack.c.b16 %v1545, %v1533
        %v2254 = vpack.c.b16 %v1546, %v1534
        %v2255 = vpack.c.b16 %v1547, %v1535
        %v2256 = vpack.c.b16 %v1548, %v1536
        %v2257 = vpack.c.b16 %v1549, %v1537
        %v2258 = vpack.c.b16 %v1550, %v1538
        %v2259 = vpack.c.b16 %v1551, %v1539
        %v2260 = vpack.c.b16 %v1552, %v1540
        %v2261 = vpack.c.b16 %v1553, %v1541
        %v2262 = vpack.c.b16 %v1554, %v1542
        %v2263 = vpack.c.b16 %v1555, %v1543
        %v2264 = vpack.c.b16 %v1568, %v1556
        %v2265 = vpack.c.b16 %v1569, %v1557
        %v2266 = vpack.c.b16 %v1570, %v1558
        %v2267 = vpack.c.b16 %v1571, %v1559
        %v2268 = vpack.c.b16 %v1572, %v1560
        %v2269 = vpack.c.b16 %v1573, %v1561
        %v2270 = vpack.c.b16 %v1574, %v1562
        %v2271 = vpack.c.b16 %v1575, %v1563
        %v2272 = vpack.c.b16 %v1576, %v1564
        %v2273 = vpack.c.b16 %v1577, %v1565
        %v2274 = vpack.c.b16 %v1578, %v1566
        %v2275 = vpack.c.b16 %v1579, %v1567
        %v2276 = vpack.c.b16 %v1592, %v1580
        %v2277 = vpack.c.b16 %v1593, %v1581
        %v2278 = vpack.c.b16 %v1594, %v1582
        %v2279 = vpack.c.b16 %v1595, %v1583
        %v2280 = vpack.c.b16 %v1596, %v1584
        %v2281 = vpack.c.b16 %v1597, %v1585
        %v2282 = vpack.c.b16 %v1598, %v1586
        %v2283 = vpack.c.b16 %v1599, %v1587
        %v2284 = vpack.c.b16 %v1600, %v1588
        %v2285 = vpack.c.b16 %v1601, %v1589
        %v2286 = vpack.c.b16 %v1602, %v1590
        %v2287 = vpack.c.b16 %v1603, %v1591
        %v2288 = vpack.c.b16 %v1616, %v1604
        %v2289 = vpack.c.b16 %v1617, %v1605
        %v2290 = vpack.c.b16 %v1618, %v1606
        %v2291 = vpack.c.b16 %v1619, %v1607
        %v2292 = vpack.c.b16 %v1620, %v1608
        %v2293 = vpack.c.b16 %v1621, %v1609
        %v2294 = vpack.c.b16 %v1622, %v1610
        %v2295 = vpack.c.b16 %v1623, %v1611
        %v2296 = vpack.c.b16 %v1624, %v1612
        %v2297 = vpack.c.b16 %v1625, %v1613
        %v2298 = vpack.c.b16 %v1626, %v1614
        %v2299 = vpack.c.b16 %v1627, %v1615
        %v2300 = vpack.c.b16 %v1640, %v1628
        %v2301 = vpack.c.b16 %v1641, %v1629
        %v2302 = vpack.c.b16 %v1642, %v1630
        %v2303 = vpack.c.b16 %v1643, %v1631
        %v2304 = vpack.c.b16 %v1644, %v1632
        %v2305 = vpack.c.b16 %v1645, %v1633
        %v2306 = vpack.c.b16 %v1646, %v1634
        %v2307 = vpack.c.b16 %v1647, %v1635
        %v2308 = vpack.c.b16 %v1648, %v1636
        %v2309 = vpack.c.b16 %v1649, %v1637
        %v2310 = vpack.c.b16 %v1650, %v1638
        %v2311 = vpack.c.b16 %v1651, %v1639
        %v2312 = vpack.c.b16 %v1664, %v1652
        %v2313 = vpack.c.b16 %v1665, %v1653
        %v2314 = vpack.c.b16 %v1666, %v1654
        %v2315 = vpack.c.b16 %v1667, %v1655
        %v2316 = vpack.c.b16 %v1668, %v1656
        %v2317 = vpack.c.b16 %v1669, %v1657
        %v2318 = vpack.c.b16 %v1670, %v1658
        %v2319 = vpack.c.b16 %v1671, %v1659
        %v2320 = vpack.c.b16 %v1672, %v1660
        %v2321 = vpack.c.b16 %v1673, %v1661
        %v2322 = vpack.c.b16 %v1674, %v1662
        %v2323 = vpack.c.b16 %v1675, %v1663
        %v2324 = vpack.c.b16 %v1688, %v1676
        %v2325 = vpack.c.b16 %v1689, %v1677
        %v2326 = vpack.c.b16 %v1690, %v1678
        %v2327 = vpack.c.b16 %v1691, %v1679
        %v2328 = vpack.c.b16 %v1692, %v1680
        %v2329 = vpack.c.b16 %v1693, %v1681
        %v2330 = vpack.c.b16 %v1694, %v1682
        %v2331 = vpack.c.b16 %v1695, %v1683
        %v2332 = vpack.c.b16 %v1696, %v1684
        %v2333 = vpack.c.b16 %v1697, %v1685
        %v2334 = vpack.c.b16 %v1698, %v1686
        %v2335 = vpack.c.b16 %v1699, %v1687
        %v2336 = vpack.c.b16 %v1712, %v1700
        %v2337 = vpack.c.b16 %v1713, %v1701
        %v2338 = vpack.c.b16 %v1714, %v1702
        %v2339 = vpack.c.b16 %v1715, %v1703
        %v2340 = vpack.c.b16 %v1716, %v1704
        %v2341 = vpack.c.b16 %v1717, %v1705
        %v2342 = vpack.c.b16 %v1718, %v1706
        %v2343 = vpack.c.b16 %v1719, %v1707
        %v2344 = vpack.c.b16 %v1720, %v1708
        %v2345 = vpack.c.b16 %v1721, %v1709
        %v2346 = vpack.c.b16 %v1722, %v1710
        %v2347 = vpack.c.b16 %v1723, %v1711
        %v2348 = vpack.c.b16 %v1736, %v1724
        %v2349 = vpack.c.b16 %v1737, %v1725
        %v2350 = vpack.c.b16 %v1738, %v1726
        %v2351 = vpack.c.b16 %v1739, %v1727
        %v2352 = vpack.c.b16 %v1740, %v1728
        %v2353 = vpack.c.b16 %v1741, %v1729
        %v2354 = vpack.c.b16 %v1742, %v1730
        %v2355 = vpack.c.b16 %v1743, %v1731
        %v2356 = vpack.c.b16 %v1744, %v1732
        %v2357 = vpack.c.b16 %v1745, %v1733
        %v2358 = vpack.c.b16 %v1746, %v1734
        %v2359 = vpack.c.b16 %v1747, %v1735
        %v2360 = vpack.c.b16 %v1760, %v1748
        %v2361 = vpack.c.b16 %v1761, %v1749
        %v2362 = vpack.c.b16 %v1762, %v1750
        %v2363 = vpack.c.b16 %v1763, %v1751
        %v2364 = vpack.c.b16 %v1764, %v1752
        %v2365 = vpack.c.b16 %v1765, %v1753
        %v2366 = vpack.c.b16 %v1766, %v1754
        %v2367 = vpack.c.b16 %v1767, %v1755
        %v2368 = vpack.c.b16 %v1768, %v1756
        %v2369 = vpack.c.b16 %v1769, %v1757
        %v2370 = vpack.c.b16 %v1770, %v1758
        %v2371 = vpack.c.b16 %v1771, %v1759
        %v2372 = vpack.c.b16 %v1784, %v1772
        %v2373 = vpack.c.b16 %v1785, %v1773
        %v2374 = vpack.c.b16 %v1786, %v1774
        %v2375 = vpack.c.b16 %v1787, %v1775
        %v2376 = vpack.c.b16 %v1788, %v1776
        %v2377 = vpack.c.b16 %v1789, %v1777
        %v2378 = vpack.c.b16 %v1790, %v1778
        %v2379 = vpack.c.b16 %v1791, %v1779
        %v2380 = vpack.c.b16 %v1792, %v1780
        %v2381 = vpack.c.b16 %v1793, %v1781
        %v2382 = vpack.c.b16 %v1794, %v1782
        %v2383 = vpack.c.b16 %v1795, %v1783
        %v2384 = vpack.c.b16 %v1808, %v1796
        %v2385 = vpack.c.b16 %v1809, %v1797
        %v2386 = vpack.c.b16 %v1810, %v1798
        %v2387 = vpack.c.b16 %v1811, %v1799
        %v2388 = vpack.c.b16 %v1812, %v1800
        %v2389 = vpack.c.b16 %v1813, %v1801
        %v2390 = vpack.c.b16 %v1814, %v1802
        %v2391 = vpack.c.b16 %v1815, %v1803
        %v2392 = vpack.c.b16 %v1816, %v1804
        %v2393 = vpack.c.b16 %v1817, %v1805
        %v2394 = vpack.c.b16 %v1818, %v1806
        %v2395 = vpack.c.b16 %v1819, %v1807
        %v2396 = vpack.c.b16 %v1832, %v1820
        %v2397 = vpack.c.b16 %v1833, %v1821
        %v2398 = vpack.c.b16 %v1834, %v1822
        %v2399 = vpack.c.b16 %v1835, %v1823
        %v2400 = vpack.c.b16 %v1836, %v1824
        %v2401 = vpack.c.b16 %v1837, %v1825
        %v2402 = vpack.c.b16 %v1838, %v1826
        %v2403 = vpack.c.b16 %v1839, %v1827
        %v2404 = vpack.c.b16 %v1840, %v1828
        %v2405 = vpack.c.b16 %v1841, %v1829
        %v2406 = vpack.c.b16 %v1842, %v1830
        %v2407 = vpack.c.b16 %v1843, %v1831
        %v2408 = vpack.c.b16 %v1856, %v1844
        %v2409 = vpack.c.b16 %v1857, %v1845
        %v2410 = vpack.c.b16 %v1858, %v1846
        %v2411 = vpack.c.b16 %v1859, %v1847
        %v2412 = vpack.c.b16 %v1860, %v1848
        %v2413 = vpack.c.b16 %v1861, %v1849
        %v2414 = vpack.c.b16 %v1862, %v1850
        %v2415 = vpack.c.b16 %v1863, %v1851
        %v2416 = vpack.c.b16 %v1864, %v1852
        %v2417 = vpack.c.b16 %v1865, %v1853
        %v2418 = vpack.c.b16 %v1866, %v1854
        %v2419 = vpack.c.b16 %v1867, %v1855
        %v2420 = vpack.c.b16 %v1880, %v1868
        %v2421 = vpack.c.b16 %v1881, %v1869
        %v2422 = vpack.c.b16 %v1882, %v1870
        %v2423 = vpack.c.b16 %v1883, %v1871
        %v2424 = vpack.c.b16 %v1884, %v1872
        %v2425 = vpack.c.b16 %v1885, %v1873
        %v2426 = vpack.c.b16 %v1886, %v1874
        %v2427 = vpack.c.b16 %v1887, %v1875
        %v2428 = vpack.c.b16 %v1888, %v1876
        %v2429 = vpack.c.b16 %v1889, %v1877
        %v2430 = vpack.c.b16 %v1890, %v1878
        %v2431 = vpack.c.b16 %v1891, %v1879
        %v2432 = vpack.c.b16 %v1904, %v1892
        %v2433 = vpack.c.b16 %v1905, %v1893
        %v2434 = vpack.c.b16 %v1906, %v1894
        %v2435 = vpack.c.b16 %v1907, %v1895
        %v2436 = vpack.c.b16 %v1908, %v1896
        %v2437 = vpack.c.b16 %v1909, %v1897
        %v2438 = vpack.c.b16 %v1910, %v1898
        %v2439 = vpack.c.b16 %v1911, %v1899
        %v2440 = vpack.c.b16 %v1912, %v1900
        %v2441 = vpack.c.b16 %v1913, %v1901
        %v2442 = vpack.c.b16 %v1914, %v1902
        %v2443 = vpack.c.b16 %v1915, %v1903
        %v2444 = vpack.c.b16 %v1928, %v1916
        %v2445 = vpack.c.b16 %v1929, %v1917
        %v2446 = vpack.c.b16 %v1930, %v1918
        %v2447 = vpack.c.b16 %v1931, %v1919
        %v2448 = vpack.c.b16 %v1932, %v1920
        %v2449 = vpack.c.b16 %v1933, %v1921
        %v2450 = vpack.c.b16 %v1934, %v1922
        %v2451 = vpack.c.b16 %v1935, %v1923
        %v2452 = vpack.c.b16 %v1936, %v1924
        %v2453 = vpack.c.b16 %v1937, %v1925
        %v2454 = vpack.c.b16 %v1938, %v1926
        %v2455 = vpack.c.b16 %v1939, %v1927
        %v2456 = vpack.c.b16 %v1952, %v1940
        %v2457 = vpack.c.b16 %v1953, %v1941
        %v2458 = vpack.c.b16 %v1954, %v1942
        %v2459 = vpack.c.b16 %v1955, %v1943
        %v2460 = vpack.c.b16 %v1956, %v1944
        %v2461 = vpack.c.b16 %v1957, %v1945
        %v2462 = vpack.c.b16 %v1958, %v1946
        %v2463 = vpack.c.b16 %v1959, %v1947
        %v2464 = vpack.c.b16 %v1960, %v1948
        %v2465 = vpack.c.b16 %v1961, %v1949
        %v2466 = vpack.c.b16 %v1962, %v1950
        %v2467 = vpack.c.b16 %v1963, %v1951
        %v2468 = vpack.c.b16 %v1976, %v1964
        %v2469 = vpack.c.b16 %v1977, %v1965
        %v2470 = vpack.c.b16 %v1978, %v1966
        %v2471 = vpack.c.b16 %v1979, %v1967
        %v2472 = vpack.c.b16 %v1980, %v1968
        %v2473 = vpack.c.b16 %v1981, %v1969
        %v2474 = vpack.c.b16 %v1982, %v1970
        %v2475 = vpack.c.b16 %v1983, %v1971
        %v2476 = vpack.c.b16 %v1984, %v1972
        %v2477 = vpack.c.b16 %v1985, %v1973
        %v2478 = vpack.c.b16 %v1986, %v1974
        %v2479 = vpack.c.b16 %v1987, %v1975
        %v2480 = vpack.c.b16 %v2000, %v1988
        %v2481 = vpack.c.b16 %v2001, %v1989
        %v2482 = vpack.c.b16 %v2002, %v1990
        %v2483 = vpack.c.b16 %v2003, %v1991
        %v2484 = vpack.c.b16 %v2004, %v1992
        %v2485 = vpack.c.b16 %v2005, %v1993
        %v2486 = vpack.c.b16 %v2006, %v1994
        %v2487 = vpack.c.b16 %v2007, %v1995
        %v2488 = vpack.c.b16 %v2008, %v1996
        %v2489 = vpack.c.b16 %v2009, %v1997
        %v2490 = vpack.c.b16 %v2010, %v1998
        %v2491 = vpack.c.b16 %v2011, %v1999
        %v2492 = vpack.c.b16 %v2024, %v2012
        %v2493 = vpack.c.b16 %v2025, %v2013
        %v2494 = vpack.c.b16 %v2026, %v2014
        %v2495 = vpack.c.b16 %v2027, %v2015
        %v2496 = vpack.c.b16 %v2028, %v2016
        %v2497 = vpack.c.b16 %v2029, %v2017
        %v2498 = vpack.c.b16 %v2030, %v2018
        %v2499 = vpack.c.b16 %v2031, %v2019
        %v2500 = vpack.c.b16 %v2032, %v2020
        %v2501 = vpack.c.b16 %v2033, %v2021
        %v2502 = vpack.c.b16 %v2034, %v2022
        %v2503 = vpack.c.b16 %v2035, %v2023
        %v2504 = vpack.c.b16 %v2048, %v2036
        %v2505 = vpack.c.b16 %v2049, %v2037
        %v2506 = vpack.c.b16 %v2050, %v2038
        %v2507 = vpack.c.b16 %v2051, %v2039
        %v2508 = vpack.c.b16 %v2052, %v2040
        %v2509 = vpack.c.b16 %v2053, %v2041
        %v2510 = vpack.c.b16 %v2054, %v2042
        %v2511 = vpack.c.b16 %v2055, %v2043
        %v2512 = vpack.c.b16 %v2056, %v2044
        %v2513 = vpack.c.b16 %v2057, %v2045
        %v2514 = vpack.c.b16 %v2058, %v2046
        %v2515 = vpack.c.b16 %v2059, %v2047
        %v2516 = vpack.c.b16 %v2072, %v2060
        %v2517 = vpack.c.b16 %v2073, %v2061
        %v2518 = vpack.c.b16 %v2074, %v2062
        %v2519 = vpack.c.b16 %v2075, %v2063
        %v2520 = vpack.c.b16 %v2076, %v2064
        %v2521 = vpack.c.b16 %v2077, %v2065
        %v2522 = vpack.c.b16 %v2078, %v2066
        %v2523 = vpack.c.b16 %v2079, %v2067
        %v2524 = vpack.c.b16 %v2080, %v2068
        %v2525 = vpack.c.b16 %v2081, %v2069
        %v2526 = vpack.c.b16 %v2082, %v2070
        %v2527 = vpack.c.b16 %v2083, %v2071
        %v2528 = vpack.c.b16 %v2096, %v2084
        %v2529 = vpack.c.b16 %v2097, %v2085
        %v2530 = vpack.c.b16 %v2098, %v2086
        %v2531 = vpack.c.b16 %v2099, %v2087
        %v2532 = vpack.c.b16 %v2100, %v2088
        %v2533 = vpack.c.b16 %v2101, %v2089
        %v2534 = vpack.c.b16 %v2102, %v2090
        %v2535 = vpack.c.b16 %v2103, %v2091
        %v2536 = vpack.c.b16 %v2104, %v2092
        %v2537 = vpack.c.b16 %v2105, %v2093
        %v2538 = vpack.c.b16 %v2106, %v2094
        %v2539 = vpack.c.b16 %v2107, %v2095
        %v2540 = vpack.c.b16 %v2120, %v2108
        %v2541 = vpack.c.b16 %v2121, %v2109
        %v2542 = vpack.c.b16 %v2122, %v2110
        %v2543 = vpack.c.b16 %v2123, %v2111
        %v2544 = vpack.c.b16 %v2124, %v2112
        %v2545 = vpack.c.b16 %v2125, %v2113
        %v2546 = vpack.c.b16 %v2126, %v2114
        %v2547 = vpack.c.b16 %v2127, %v2115
        %v2548 = vpack.c.b16 %v2128, %v2116
        %v2549 = vpack.c.b16 %v2129, %v2117
        %v2550 = vpack.c.b16 %v2130, %v2118
        %v2551 = vpack.c.b16 %v2131, %v2119
        %v2552 = vpack.c.b16 %v2144, %v2132
        %v2553 = vpack.c.b16 %v2145, %v2133
        %v2554 = vpack.c.b16 %v2146, %v2134
        %v2555 = vpack.c.b16 %v2147, %v2135
        %v2556 = vpack.c.b16 %v2148, %v2136
        %v2557 = vpack.c.b16 %v2149, %v2137
        %v2558 = vpack.c.b16 %v2150, %v2138
        %v2559 = vpack.c.b16 %v2151, %v2139
        %v2560 = vpack.c.b16 %v2152, %v2140
        %v2561 = vpack.c.b16 %v2153, %v2141
        %v2562 = vpack.c.b16 %v2154, %v2142
        %v2563 = vpack.c.b16 %v2155, %v2143
        %v2564 = vpack.c.b16 %v2168, %v2156
        %v2565 = vpack.c.b16 %v2169, %v2157
        %v2566 = vpack.c.b16 %v2170, %v2158
        %v2567 = vpack.c.b16 %v2171, %v2159
        %v2568 = vpack.c.b16 %v2172, %v2160
        %v2569 = vpack.c.b16 %v2173, %v2161
        %v2570 = vpack.c.b16 %v2174, %v2162
        %v2571 = vpack.c.b16 %v2175, %v2163
        %v2572 = vpack.c.b16 %v2176, %v2164
        %v2573 = vpack.c.b16 %v2177, %v2165
        %v2574 = vpack.c.b16 %v2178, %v2166
        %v2575 = vpack.c.b16 %v2179, %v2167
        %v2576 = vpack.c.b16 %v2192, %v2180
        %v2577 = vpack.c.b16 %v2193, %v2181
        %v2578 = vpack.c.b16 %v2194, %v2182
        %v2579 = vpack.c.b16 %v2195, %v2183
        %v2580 = vpack.c.b16 %v2196, %v2184
        %v2581 = vpack.c.b16 %v2197, %v2185
        %v2582 = vpack.c.b16 %v2198, %v2186
        %v2583 = vpack.c.b16 %v2199, %v2187
        %v2584 = vpack.c.b16 %v2200, %v2188
        %v2585 = vpack.c.b16 %v2201, %v2189
        %v2586 = vpack.c.b16 %v2202, %v2190
        %v2587 = vpack.c.b16 %v2203, %v2191
        %2972 = vmatpush.bf16.msra.mxu0 %v2288
        %2973 = vmatpush.bf16.msra.mxu0 %v2276
        %2974 = vmatpush.bf16.msra.mxu0 %v2264
        %2975 = vmatpush.bf16.msra.mxu0 %v2252
        %2976 = vmatpush.bf16.msra.mxu0 %v2240
        %2977 = vmatpush.bf16.msra.mxu0 %v2228
        %2978 = vmatpush.bf16.msra.mxu0 %v2216
        %2979 = vmatpush.bf16.msra.mxu0 %v2204
        %2980 = vmatmul.bf16.gmra.mxu0 %v636
        %v2981 = vpop.f32.mrf.mxu0
        %v2982 = vadd.f32 %v1028, %v2981
        %v2983 = vpop.f32.mrf.mxu0
        %v2984 = vadd.f32 %v1028, %v2983
        %2985 = vdwg.mxu0
        %2986 = vmatpush.bf16.msra.mxu0 %v2384
        %2987 = vmatpush.bf16.msra.mxu0 %v2372
        %2988 = vmatpush.bf16.msra.mxu0 %v2360
        %2989 = vmatpush.bf16.msra.mxu0 %v2348
        %2990 = vmatpush.bf16.msra.mxu0 %v2336
        %2991 = vmatpush.bf16.msra.mxu0 %v2324
        %2992 = vmatpush.bf16.msra.mxu0 %v2312
        %2993 = vmatpush.bf16.msra.mxu0 %v2300
        %2994 = vmatmul.bf16.gmra.mxu0 %v637
        %v2995 = vpop.f32.mrf.mxu0
        %v2996 = vadd.f32 %v2982, %v2995
        %v2997 = vpop.f32.mrf.mxu0
        %v2998 = vadd.f32 %v2984, %v2997
        %2999 = vdwg.mxu0
        %3000 = vmatpush.bf16.msra.mxu0 %v2480
        %3001 = vmatpush.bf16.msra.mxu0 %v2468
        %3002 = vmatpush.bf16.msra.mxu0 %v2456
        %3003 = vmatpush.bf16.msra.mxu0 %v2444
        %3004 = vmatpush.bf16.msra.mxu0 %v2432
        %3005 = vmatpush.bf16.msra.mxu0 %v2420
        %3006 = vmatpush.bf16.msra.mxu0 %v2408
        %3007 = vmatpush.bf16.msra.mxu0 %v2396
        %3008 = vmatmul.bf16.gmra.mxu0 %v638
        %v3009 = vpop.f32.mrf.mxu0
        %v3010 = vadd.f32 %v2996, %v3009
        %v3011 = vpop.f32.mrf.mxu0
        %v3012 = vadd.f32 %v2998, %v3011
        %3013 = vdwg.mxu0
        %3014 = vmatpush.bf16.msra.mxu0 %v2576
        %3015 = vmatpush.bf16.msra.mxu0 %v2564
        %3016 = vmatpush.bf16.msra.mxu0 %v2552
        %3017 = vmatpush.bf16.msra.mxu0 %v2540
        %3018 = vmatpush.bf16.msra.mxu0 %v2528
        %3019 = vmatpush.bf16.msra.mxu0 %v2516
        %3020 = vmatpush.bf16.msra.mxu0 %v2504
        %3021 = vmatpush.bf16.msra.mxu0 %v2492
        %3022 = vmatmul.bf16.gmra.mxu0 %v639
        %v3023 = vpop.f32.mrf.mxu0
        %v3024 = vadd.f32 %v3010, %v3023
        %v3025 = vpop.f32.mrf.mxu0
        %v3026 = vadd.f32 %v3012, %v3025
        %3027 = vdwg.mxu0
        %3028 = vmatpush.bf16.msra.mxu0 %v2289
        %3029 = vmatpush.bf16.msra.mxu0 %v2277
        %3030 = vmatpush.bf16.msra.mxu0 %v2265
        %3031 = vmatpush.bf16.msra.mxu0 %v2253
        %3032 = vmatpush.bf16.msra.mxu0 %v2241
        %3033 = vmatpush.bf16.msra.mxu0 %v2229
        %3034 = vmatpush.bf16.msra.mxu0 %v2217
        %3035 = vmatpush.bf16.msra.mxu0 %v2205
        %3036 = vmatmul.bf16.gmra.mxu0 %v636
        %v3037 = vpop.f32.mrf.mxu0
        %v3038 = vadd.f32 %v1029, %v3037
        %v3039 = vpop.f32.mrf.mxu0
        %v3040 = vadd.f32 %v1029, %v3039
        %3041 = vdwg.mxu0
        %3042 = vmatpush.bf16.msra.mxu0 %v2385
        %3043 = vmatpush.bf16.msra.mxu0 %v2373
        %3044 = vmatpush.bf16.msra.mxu0 %v2361
        %3045 = vmatpush.bf16.msra.mxu0 %v2349
        %3046 = vmatpush.bf16.msra.mxu0 %v2337
        %3047 = vmatpush.bf16.msra.mxu0 %v2325
        %3048 = vmatpush.bf16.msra.mxu0 %v2313
        %3049 = vmatpush.bf16.msra.mxu0 %v2301
        %3050 = vmatmul.bf16.gmra.mxu0 %v637
        %v3051 = vpop.f32.mrf.mxu0
        %v3052 = vadd.f32 %v3038, %v3051
        %v3053 = vpop.f32.mrf.mxu0
        %v3054 = vadd.f32 %v3040, %v3053
        %3055 = vdwg.mxu0
        %3056 = vmatpush.bf16.msra.mxu0 %v2481
        %3057 = vmatpush.bf16.msra.mxu0 %v2469
        %3058 = vmatpush.bf16.msra.mxu0 %v2457
        %3059 = vmatpush.bf16.msra.mxu0 %v2445
        %3060 = vmatpush.bf16.msra.mxu0 %v2433
        %3061 = vmatpush.bf16.msra.mxu0 %v2421
        %3062 = vmatpush.bf16.msra.mxu0 %v2409
        %3063 = vmatpush.bf16.msra.mxu0 %v2397
        %3064 = vmatmul.bf16.gmra.mxu0 %v638
        %v3065 = vpop.f32.mrf.mxu0
        %v3066 = vadd.f32 %v3052, %v3065
        %v3067 = vpop.f32.mrf.mxu0
        %v3068 = vadd.f32 %v3054, %v3067
        %3069 = vdwg.mxu0
        %3070 = vmatpush.bf16.msra.mxu0 %v2577
        %3071 = vmatpush.bf16.msra.mxu0 %v2565
        %3072 = vmatpush.bf16.msra.mxu0 %v2553
        %3073 = vmatpush.bf16.msra.mxu0 %v2541
        %3074 = vmatpush.bf16.msra.mxu0 %v2529
        %3075 = vmatpush.bf16.msra.mxu0 %v2517
        %3076 = vmatpush.bf16.msra.mxu0 %v2505
        %3077 = vmatpush.bf16.msra.mxu0 %v2493
        %3078 = vmatmul.bf16.gmra.mxu0 %v639
        %v3079 = vpop.f32.mrf.mxu0
        %v3080 = vadd.f32 %v3066, %v3079
        %v3081 = vpop.f32.mrf.mxu0
        %v3082 = vadd.f32 %v3068, %v3081
        %3083 = vdwg.mxu0
        %3084 = vmatpush.bf16.msra.mxu0 %v2290
        %3085 = vmatpush.bf16.msra.mxu0 %v2278
        %3086 = vmatpush.bf16.msra.mxu0 %v2266
        %3087 = vmatpush.bf16.msra.mxu0 %v2254
        %3088 = vmatpush.bf16.msra.mxu0 %v2242
        %3089 = vmatpush.bf16.msra.mxu0 %v2230
        %3090 = vmatpush.bf16.msra.mxu0 %v2218
        %3091 = vmatpush.bf16.msra.mxu0 %v2206
        %3092 = vmatmul.bf16.gmra.mxu0 %v636
        %v3093 = vpop.f32.mrf.mxu0
        %v3094 = vadd.f32 %v1030, %v3093
        %v3095 = vpop.f32.mrf.mxu0
        %v3096 = vadd.f32 %v1030, %v3095
        %3097 = vdwg.mxu0
        %3098 = vmatpush.bf16.msra.mxu0 %v2386
        %3099 = vmatpush.bf16.msra.mxu0 %v2374
        %3100 = vmatpush.bf16.msra.mxu0 %v2362
        %3101 = vmatpush.bf16.msra.mxu0 %v2350
        %3102 = vmatpush.bf16.msra.mxu0 %v2338
        %3103 = vmatpush.bf16.msra.mxu0 %v2326
        %3104 = vmatpush.bf16.msra.mxu0 %v2314
        %3105 = vmatpush.bf16.msra.mxu0 %v2302
        %3106 = vmatmul.bf16.gmra.mxu0 %v637
        %v3107 = vpop.f32.mrf.mxu0
        %v3108 = vadd.f32 %v3094, %v3107
        %v3109 = vpop.f32.mrf.mxu0
        %v3110 = vadd.f32 %v3096, %v3109
        %3111 = vdwg.mxu0
        %3112 = vmatpush.bf16.msra.mxu0 %v2482
        %3113 = vmatpush.bf16.msra.mxu0 %v2470
        %3114 = vmatpush.bf16.msra.mxu0 %v2458
        %3115 = vmatpush.bf16.msra.mxu0 %v2446
        %3116 = vmatpush.bf16.msra.mxu0 %v2434
        %3117 = vmatpush.bf16.msra.mxu0 %v2422
        %3118 = vmatpush.bf16.msra.mxu0 %v2410
        %3119 = vmatpush.bf16.msra.mxu0 %v2398
        %3120 = vmatmul.bf16.gmra.mxu0 %v638
        %v3121 = vpop.f32.mrf.mxu0
        %v3122 = vadd.f32 %v3108, %v3121
        %v3123 = vpop.f32.mrf.mxu0
        %v3124 = vadd.f32 %v3110, %v3123
        %3125 = vdwg.mxu0
        %3126 = vmatpush.bf16.msra.mxu0 %v2578
        %3127 = vmatpush.bf16.msra.mxu0 %v2566
        %3128 = vmatpush.bf16.msra.mxu0 %v2554
        %3129 = vmatpush.bf16.msra.mxu0 %v2542
        %3130 = vmatpush.bf16.msra.mxu0 %v2530
        %3131 = vmatpush.bf16.msra.mxu0 %v2518
        %3132 = vmatpush.bf16.msra.mxu0 %v2506
        %3133 = vmatpush.bf16.msra.mxu0 %v2494
        %3134 = vmatmul.bf16.gmra.mxu0 %v639
        %v3135 = vpop.f32.mrf.mxu0
        %v3136 = vadd.f32 %v3122, %v3135
        %v3137 = vpop.f32.mrf.mxu0
        %v3138 = vadd.f32 %v3124, %v3137
        %3139 = vdwg.mxu0
        %3140 = vmatpush.bf16.msra.mxu0 %v2291
        %3141 = vmatpush.bf16.msra.mxu0 %v2279
        %3142 = vmatpush.bf16.msra.mxu0 %v2267
        %3143 = vmatpush.bf16.msra.mxu0 %v2255
        %3144 = vmatpush.bf16.msra.mxu0 %v2243
        %3145 = vmatpush.bf16.msra.mxu0 %v2231
        %3146 = vmatpush.bf16.msra.mxu0 %v2219
        %3147 = vmatpush.bf16.msra.mxu0 %v2207
        %3148 = vmatmul.bf16.gmra.mxu0 %v636
        %v3149 = vpop.f32.mrf.mxu0
        %v3150 = vadd.f32 %v1031, %v3149
        %v3151 = vpop.f32.mrf.mxu0
        %v3152 = vadd.f32 %v1031, %v3151
        %3153 = vdwg.mxu0
        %3154 = vmatpush.bf16.msra.mxu0 %v2387
        %3155 = vmatpush.bf16.msra.mxu0 %v2375
        %3156 = vmatpush.bf16.msra.mxu0 %v2363
        %3157 = vmatpush.bf16.msra.mxu0 %v2351
        %3158 = vmatpush.bf16.msra.mxu0 %v2339
        %3159 = vmatpush.bf16.msra.mxu0 %v2327
        %3160 = vmatpush.bf16.msra.mxu0 %v2315
        %3161 = vmatpush.bf16.msra.mxu0 %v2303
        %3162 = vmatmul.bf16.gmra.mxu0 %v637
        %v3163 = vpop.f32.mrf.mxu0
        %v3164 = vadd.f32 %v3150, %v3163
        %v3165 = vpop.f32.mrf.mxu0
        %v3166 = vadd.f32 %v3152, %v3165
        %3167 = vdwg.mxu0
        %3168 = vmatpush.bf16.msra.mxu0 %v2483
        %3169 = vmatpush.bf16.msra.mxu0 %v2471
        %3170 = vmatpush.bf16.msra.mxu0 %v2459
        %3171 = vmatpush.bf16.msra.mxu0 %v2447
        %3172 = vmatpush.bf16.msra.mxu0 %v2435
        %3173 = vmatpush.bf16.msra.mxu0 %v2423
        %3174 = vmatpush.bf16.msra.mxu0 %v2411
        %3175 = vmatpush.bf16.msra.mxu0 %v2399
        %3176 = vmatmul.bf16.gmra.mxu0 %v638
        %v3177 = vpop.f32.mrf.mxu0
        %v3178 = vadd.f32 %v3164, %v3177
        %v3179 = vpop.f32.mrf.mxu0
        %v3180 = vadd.f32 %v3166, %v3179
        %3181 = vdwg.mxu0
        %3182 = vmatpush.bf16.msra.mxu0 %v2579
        %3183 = vmatpush.bf16.msra.mxu0 %v2567
        %3184 = vmatpush.bf16.msra.mxu0 %v2555
        %3185 = vmatpush.bf16.msra.mxu0 %v2543
        %3186 = vmatpush.bf16.msra.mxu0 %v2531
        %3187 = vmatpush.bf16.msra.mxu0 %v2519
        %3188 = vmatpush.bf16.msra.mxu0 %v2507
        %3189 = vmatpush.bf16.msra.mxu0 %v2495
        %3190 = vmatmul.bf16.gmra.mxu0 %v639
        %v3191 = vpop.f32.mrf.mxu0
        %v3192 = vadd.f32 %v3178, %v3191
        %v3193 = vpop.f32.mrf.mxu0
        %v3194 = vadd.f32 %v3180, %v3193
        %3195 = vdwg.mxu0
        %3196 = vmatpush.bf16.msra.mxu0 %v2292
        %3197 = vmatpush.bf16.msra.mxu0 %v2280
        %3198 = vmatpush.bf16.msra.mxu0 %v2268
        %3199 = vmatpush.bf16.msra.mxu0 %v2256
        %3200 = vmatpush.bf16.msra.mxu0 %v2244
        %3201 = vmatpush.bf16.msra.mxu0 %v2232
        %3202 = vmatpush.bf16.msra.mxu0 %v2220
        %3203 = vmatpush.bf16.msra.mxu0 %v2208
        %3204 = vmatmul.bf16.gmra.mxu0 %v636
        %v3205 = vpop.f32.mrf.mxu0
        %v3206 = vadd.f32 %v1032, %v3205
        %v3207 = vpop.f32.mrf.mxu0
        %v3208 = vadd.f32 %v1032, %v3207
        %3209 = vdwg.mxu0
        %3210 = vmatpush.bf16.msra.mxu0 %v2388
        %3211 = vmatpush.bf16.msra.mxu0 %v2376
        %3212 = vmatpush.bf16.msra.mxu0 %v2364
        %3213 = vmatpush.bf16.msra.mxu0 %v2352
        %3214 = vmatpush.bf16.msra.mxu0 %v2340
        %3215 = vmatpush.bf16.msra.mxu0 %v2328
        %3216 = vmatpush.bf16.msra.mxu0 %v2316
        %3217 = vmatpush.bf16.msra.mxu0 %v2304
        %3218 = vmatmul.bf16.gmra.mxu0 %v637
        %v3219 = vpop.f32.mrf.mxu0
        %v3220 = vadd.f32 %v3206, %v3219
        %v3221 = vpop.f32.mrf.mxu0
        %v3222 = vadd.f32 %v3208, %v3221
        %3223 = vdwg.mxu0
        %3224 = vmatpush.bf16.msra.mxu0 %v2484
        %3225 = vmatpush.bf16.msra.mxu0 %v2472
        %3226 = vmatpush.bf16.msra.mxu0 %v2460
        %3227 = vmatpush.bf16.msra.mxu0 %v2448
        %3228 = vmatpush.bf16.msra.mxu0 %v2436
        %3229 = vmatpush.bf16.msra.mxu0 %v2424
        %3230 = vmatpush.bf16.msra.mxu0 %v2412
        %3231 = vmatpush.bf16.msra.mxu0 %v2400
        %3232 = vmatmul.bf16.gmra.mxu0 %v638
        %v3233 = vpop.f32.mrf.mxu0
        %v3234 = vadd.f32 %v3220, %v3233
        %v3235 = vpop.f32.mrf.mxu0
        %v3236 = vadd.f32 %v3222, %v3235
        %3237 = vdwg.mxu0
        %3238 = vmatpush.bf16.msra.mxu0 %v2580
        %3239 = vmatpush.bf16.msra.mxu0 %v2568
        %3240 = vmatpush.bf16.msra.mxu0 %v2556
        %3241 = vmatpush.bf16.msra.mxu0 %v2544
        %3242 = vmatpush.bf16.msra.mxu0 %v2532
        %3243 = vmatpush.bf16.msra.mxu0 %v2520
        %3244 = vmatpush.bf16.msra.mxu0 %v2508
        %3245 = vmatpush.bf16.msra.mxu0 %v2496
        %3246 = vmatmul.bf16.gmra.mxu0 %v639
        %v3247 = vpop.f32.mrf.mxu0
        %v3248 = vadd.f32 %v3234, %v3247
        %v3249 = vpop.f32.mrf.mxu0
        %v3250 = vadd.f32 %v3236, %v3249
        %3251 = vdwg.mxu0
        %3252 = vmatpush.bf16.msra.mxu0 %v2293
        %3253 = vmatpush.bf16.msra.mxu0 %v2281
        %3254 = vmatpush.bf16.msra.mxu0 %v2269
        %3255 = vmatpush.bf16.msra.mxu0 %v2257
        %3256 = vmatpush.bf16.msra.mxu0 %v2245
        %3257 = vmatpush.bf16.msra.mxu0 %v2233
        %3258 = vmatpush.bf16.msra.mxu0 %v2221
        %3259 = vmatpush.bf16.msra.mxu0 %v2209
        %3260 = vmatmul.bf16.gmra.mxu0 %v636
        %v3261 = vpop.f32.mrf.mxu0
        %v3262 = vadd.f32 %v1033, %v3261
        %v3263 = vpop.f32.mrf.mxu0
        %v3264 = vadd.f32 %v1033, %v3263
        %3265 = vdwg.mxu0
        %3266 = vmatpush.bf16.msra.mxu0 %v2389
        %3267 = vmatpush.bf16.msra.mxu0 %v2377
        %3268 = vmatpush.bf16.msra.mxu0 %v2365
        %3269 = vmatpush.bf16.msra.mxu0 %v2353
        %3270 = vmatpush.bf16.msra.mxu0 %v2341
        %3271 = vmatpush.bf16.msra.mxu0 %v2329
        %3272 = vmatpush.bf16.msra.mxu0 %v2317
        %3273 = vmatpush.bf16.msra.mxu0 %v2305
        %3274 = vmatmul.bf16.gmra.mxu0 %v637
        %v3275 = vpop.f32.mrf.mxu0
        %v3276 = vadd.f32 %v3262, %v3275
        %v3277 = vpop.f32.mrf.mxu0
        %v3278 = vadd.f32 %v3264, %v3277
        %3279 = vdwg.mxu0
        %3280 = vmatpush.bf16.msra.mxu0 %v2485
        %3281 = vmatpush.bf16.msra.mxu0 %v2473
        %3282 = vmatpush.bf16.msra.mxu0 %v2461
        %3283 = vmatpush.bf16.msra.mxu0 %v2449
        %3284 = vmatpush.bf16.msra.mxu0 %v2437
        %3285 = vmatpush.bf16.msra.mxu0 %v2425
        %3286 = vmatpush.bf16.msra.mxu0 %v2413
        %3287 = vmatpush.bf16.msra.mxu0 %v2401
        %3288 = vmatmul.bf16.gmra.mxu0 %v638
        %v3289 = vpop.f32.mrf.mxu0
        %v3290 = vadd.f32 %v3276, %v3289
        %v3291 = vpop.f32.mrf.mxu0
        %v3292 = vadd.f32 %v3278, %v3291
        %3293 = vdwg.mxu0
        %3294 = vmatpush.bf16.msra.mxu0 %v2581
        %3295 = vmatpush.bf16.msra.mxu0 %v2569
        %3296 = vmatpush.bf16.msra.mxu0 %v2557
        %3297 = vmatpush.bf16.msra.mxu0 %v2545
        %3298 = vmatpush.bf16.msra.mxu0 %v2533
        %3299 = vmatpush.bf16.msra.mxu0 %v2521
        %3300 = vmatpush.bf16.msra.mxu0 %v2509
        %3301 = vmatpush.bf16.msra.mxu0 %v2497
        %3302 = vmatmul.bf16.gmra.mxu0 %v639
        %v3303 = vpop.f32.mrf.mxu0
        %v3304 = vadd.f32 %v3290, %v3303
        %v3305 = vpop.f32.mrf.mxu0
        %v3306 = vadd.f32 %v3292, %v3305
        %3307 = vdwg.mxu0
        %3308 = vmatpush.bf16.msra.mxu0 %v2294
        %3309 = vmatpush.bf16.msra.mxu0 %v2282
        %3310 = vmatpush.bf16.msra.mxu0 %v2270
        %3311 = vmatpush.bf16.msra.mxu0 %v2258
        %3312 = vmatpush.bf16.msra.mxu0 %v2246
        %3313 = vmatpush.bf16.msra.mxu0 %v2234
        %3314 = vmatpush.bf16.msra.mxu0 %v2222
        %3315 = vmatpush.bf16.msra.mxu0 %v2210
        %3316 = vmatmul.bf16.gmra.mxu0 %v636
        %v3317 = vpop.f32.mrf.mxu0
        %v3318 = vadd.f32 %v1034, %v3317
        %v3319 = vpop.f32.mrf.mxu0
        %v3320 = vadd.f32 %v1034, %v3319
        %3321 = vdwg.mxu0
        %3322 = vmatpush.bf16.msra.mxu0 %v2390
        %3323 = vmatpush.bf16.msra.mxu0 %v2378
        %3324 = vmatpush.bf16.msra.mxu0 %v2366
        %3325 = vmatpush.bf16.msra.mxu0 %v2354
        %3326 = vmatpush.bf16.msra.mxu0 %v2342
        %3327 = vmatpush.bf16.msra.mxu0 %v2330
        %3328 = vmatpush.bf16.msra.mxu0 %v2318
        %3329 = vmatpush.bf16.msra.mxu0 %v2306
        %3330 = vmatmul.bf16.gmra.mxu0 %v637
        %v3331 = vpop.f32.mrf.mxu0
        %v3332 = vadd.f32 %v3318, %v3331
        %v3333 = vpop.f32.mrf.mxu0
        %v3334 = vadd.f32 %v3320, %v3333
        %3335 = vdwg.mxu0
        %3336 = vmatpush.bf16.msra.mxu0 %v2486
        %3337 = vmatpush.bf16.msra.mxu0 %v2474
        %3338 = vmatpush.bf16.msra.mxu0 %v2462
        %3339 = vmatpush.bf16.msra.mxu0 %v2450
        %3340 = vmatpush.bf16.msra.mxu0 %v2438
        %3341 = vmatpush.bf16.msra.mxu0 %v2426
        %3342 = vmatpush.bf16.msra.mxu0 %v2414
        %3343 = vmatpush.bf16.msra.mxu0 %v2402
        %3344 = vmatmul.bf16.gmra.mxu0 %v638
        %v3345 = vpop.f32.mrf.mxu0
        %v3346 = vadd.f32 %v3332, %v3345
        %v3347 = vpop.f32.mrf.mxu0
        %v3348 = vadd.f32 %v3334, %v3347
        %3349 = vdwg.mxu0
        %3350 = vmatpush.bf16.msra.mxu0 %v2582
        %3351 = vmatpush.bf16.msra.mxu0 %v2570
        %3352 = vmatpush.bf16.msra.mxu0 %v2558
        %3353 = vmatpush.bf16.msra.mxu0 %v2546
        %3354 = vmatpush.bf16.msra.mxu0 %v2534
        %3355 = vmatpush.bf16.msra.mxu0 %v2522
        %3356 = vmatpush.bf16.msra.mxu0 %v2510
        %3357 = vmatpush.bf16.msra.mxu0 %v2498
        %3358 = vmatmul.bf16.gmra.mxu0 %v639
        %v3359 = vpop.f32.mrf.mxu0
        %v3360 = vadd.f32 %v3346, %v3359
        %v3361 = vpop.f32.mrf.mxu0
        %v3362 = vadd.f32 %v3348, %v3361
        %3363 = vdwg.mxu0
        %3364 = vmatpush.bf16.msra.mxu0 %v2295
        %3365 = vmatpush.bf16.msra.mxu0 %v2283
        %3366 = vmatpush.bf16.msra.mxu0 %v2271
        %3367 = vmatpush.bf16.msra.mxu0 %v2259
        %3368 = vmatpush.bf16.msra.mxu0 %v2247
        %3369 = vmatpush.bf16.msra.mxu0 %v2235
        %3370 = vmatpush.bf16.msra.mxu0 %v2223
        %3371 = vmatpush.bf16.msra.mxu0 %v2211
        %3372 = vmatmul.bf16.gmra.mxu0 %v636
        %v3373 = vpop.f32.mrf.mxu0
        %v3374 = vadd.f32 %v1035, %v3373
        %v3375 = vpop.f32.mrf.mxu0
        %v3376 = vadd.f32 %v1035, %v3375
        %3377 = vdwg.mxu0
        %3378 = vmatpush.bf16.msra.mxu0 %v2391
        %3379 = vmatpush.bf16.msra.mxu0 %v2379
        %3380 = vmatpush.bf16.msra.mxu0 %v2367
        %3381 = vmatpush.bf16.msra.mxu0 %v2355
        %3382 = vmatpush.bf16.msra.mxu0 %v2343
        %3383 = vmatpush.bf16.msra.mxu0 %v2331
        %3384 = vmatpush.bf16.msra.mxu0 %v2319
        %3385 = vmatpush.bf16.msra.mxu0 %v2307
        %3386 = vmatmul.bf16.gmra.mxu0 %v637
        %v3387 = vpop.f32.mrf.mxu0
        %v3388 = vadd.f32 %v3374, %v3387
        %v3389 = vpop.f32.mrf.mxu0
        %v3390 = vadd.f32 %v3376, %v3389
        %3391 = vdwg.mxu0
        %3392 = vmatpush.bf16.msra.mxu0 %v2487
        %3393 = vmatpush.bf16.msra.mxu0 %v2475
        %3394 = vmatpush.bf16.msra.mxu0 %v2463
        %3395 = vmatpush.bf16.msra.mxu0 %v2451
        %3396 = vmatpush.bf16.msra.mxu0 %v2439
        %3397 = vmatpush.bf16.msra.mxu0 %v2427
        %3398 = vmatpush.bf16.msra.mxu0 %v2415
        %3399 = vmatpush.bf16.msra.mxu0 %v2403
        %3400 = vmatmul.bf16.gmra.mxu0 %v638
        %v3401 = vpop.f32.mrf.mxu0
        %v3402 = vadd.f32 %v3388, %v3401
        %v3403 = vpop.f32.mrf.mxu0
        %v3404 = vadd.f32 %v3390, %v3403
        %3405 = vdwg.mxu0
        %3406 = vmatpush.bf16.msra.mxu0 %v2583
        %3407 = vmatpush.bf16.msra.mxu0 %v2571
        %3408 = vmatpush.bf16.msra.mxu0 %v2559
        %3409 = vmatpush.bf16.msra.mxu0 %v2547
        %3410 = vmatpush.bf16.msra.mxu0 %v2535
        %3411 = vmatpush.bf16.msra.mxu0 %v2523
        %3412 = vmatpush.bf16.msra.mxu0 %v2511
        %3413 = vmatpush.bf16.msra.mxu0 %v2499
        %3414 = vmatmul.bf16.gmra.mxu0 %v639
        %v3415 = vpop.f32.mrf.mxu0
        %v3416 = vadd.f32 %v3402, %v3415
        %v3417 = vpop.f32.mrf.mxu0
        %v3418 = vadd.f32 %v3404, %v3417
        %3419 = vdwg.mxu0
        %3420 = vmatpush.bf16.msra.mxu0 %v2296
        %3421 = vmatpush.bf16.msra.mxu0 %v2284
        %3422 = vmatpush.bf16.msra.mxu0 %v2272
        %3423 = vmatpush.bf16.msra.mxu0 %v2260
        %3424 = vmatpush.bf16.msra.mxu0 %v2248
        %3425 = vmatpush.bf16.msra.mxu0 %v2236
        %3426 = vmatpush.bf16.msra.mxu0 %v2224
        %3427 = vmatpush.bf16.msra.mxu0 %v2212
        %3428 = vmatmul.bf16.gmra.mxu0 %v636
        %v3429 = vpop.f32.mrf.mxu0
        %v3430 = vadd.f32 %v1036, %v3429
        %v3431 = vpop.f32.mrf.mxu0
        %v3432 = vadd.f32 %v1036, %v3431
        %3433 = vdwg.mxu0
        %3434 = vmatpush.bf16.msra.mxu0 %v2392
        %3435 = vmatpush.bf16.msra.mxu0 %v2380
        %3436 = vmatpush.bf16.msra.mxu0 %v2368
        %3437 = vmatpush.bf16.msra.mxu0 %v2356
        %3438 = vmatpush.bf16.msra.mxu0 %v2344
        %3439 = vmatpush.bf16.msra.mxu0 %v2332
        %3440 = vmatpush.bf16.msra.mxu0 %v2320
        %3441 = vmatpush.bf16.msra.mxu0 %v2308
        %3442 = vmatmul.bf16.gmra.mxu0 %v637
        %v3443 = vpop.f32.mrf.mxu0
        %v3444 = vadd.f32 %v3430, %v3443
        %v3445 = vpop.f32.mrf.mxu0
        %v3446 = vadd.f32 %v3432, %v3445
        %3447 = vdwg.mxu0
        %3448 = vmatpush.bf16.msra.mxu0 %v2488
        %3449 = vmatpush.bf16.msra.mxu0 %v2476
        %3450 = vmatpush.bf16.msra.mxu0 %v2464
        %3451 = vmatpush.bf16.msra.mxu0 %v2452
        %3452 = vmatpush.bf16.msra.mxu0 %v2440
        %3453 = vmatpush.bf16.msra.mxu0 %v2428
        %3454 = vmatpush.bf16.msra.mxu0 %v2416
        %3455 = vmatpush.bf16.msra.mxu0 %v2404
        %3456 = vmatmul.bf16.gmra.mxu0 %v638
        %v3457 = vpop.f32.mrf.mxu0
        %v3458 = vadd.f32 %v3444, %v3457
        %v3459 = vpop.f32.mrf.mxu0
        %v3460 = vadd.f32 %v3446, %v3459
        %3461 = vdwg.mxu0
        %3462 = vmatpush.bf16.msra.mxu0 %v2584
        %3463 = vmatpush.bf16.msra.mxu0 %v2572
        %3464 = vmatpush.bf16.msra.mxu0 %v2560
        %3465 = vmatpush.bf16.msra.mxu0 %v2548
        %3466 = vmatpush.bf16.msra.mxu0 %v2536
        %3467 = vmatpush.bf16.msra.mxu0 %v2524
        %3468 = vmatpush.bf16.msra.mxu0 %v2512
        %3469 = vmatpush.bf16.msra.mxu0 %v2500
        %3470 = vmatmul.bf16.gmra.mxu0 %v639
        %v3471 = vpop.f32.mrf.mxu0
        %v3472 = vadd.f32 %v3458, %v3471
        %v3473 = vpop.f32.mrf.mxu0
        %v3474 = vadd.f32 %v3460, %v3473
        %3475 = vdwg.mxu0
        %3476 = vmatpush.bf16.msra.mxu0 %v2297
        %3477 = vmatpush.bf16.msra.mxu0 %v2285
        %3478 = vmatpush.bf16.msra.mxu0 %v2273
        %3479 = vmatpush.bf16.msra.mxu0 %v2261
        %3480 = vmatpush.bf16.msra.mxu0 %v2249
        %3481 = vmatpush.bf16.msra.mxu0 %v2237
        %3482 = vmatpush.bf16.msra.mxu0 %v2225
        %3483 = vmatpush.bf16.msra.mxu0 %v2213
        %3484 = vmatmul.bf16.gmra.mxu0 %v636
        %v3485 = vpop.f32.mrf.mxu0
        %v3486 = vadd.f32 %v1037, %v3485
        %v3487 = vpop.f32.mrf.mxu0
        %v3488 = vadd.f32 %v1037, %v3487
        %3489 = vdwg.mxu0
        %3490 = vmatpush.bf16.msra.mxu0 %v2393
        %3491 = vmatpush.bf16.msra.mxu0 %v2381
        %3492 = vmatpush.bf16.msra.mxu0 %v2369
        %3493 = vmatpush.bf16.msra.mxu0 %v2357
        %3494 = vmatpush.bf16.msra.mxu0 %v2345
        %3495 = vmatpush.bf16.msra.mxu0 %v2333
        %3496 = vmatpush.bf16.msra.mxu0 %v2321
        %3497 = vmatpush.bf16.msra.mxu0 %v2309
        %3498 = vmatmul.bf16.gmra.mxu0 %v637
        %v3499 = vpop.f32.mrf.mxu0
        %v3500 = vadd.f32 %v3486, %v3499
        %v3501 = vpop.f32.mrf.mxu0
        %v3502 = vadd.f32 %v3488, %v3501
        %3503 = vdwg.mxu0
        %3504 = vmatpush.bf16.msra.mxu0 %v2489
        %3505 = vmatpush.bf16.msra.mxu0 %v2477
        %3506 = vmatpush.bf16.msra.mxu0 %v2465
        %3507 = vmatpush.bf16.msra.mxu0 %v2453
        %3508 = vmatpush.bf16.msra.mxu0 %v2441
        %3509 = vmatpush.bf16.msra.mxu0 %v2429
        %3510 = vmatpush.bf16.msra.mxu0 %v2417
        %3511 = vmatpush.bf16.msra.mxu0 %v2405
        %3512 = vmatmul.bf16.gmra.mxu0 %v638
        %v3513 = vpop.f32.mrf.mxu0
        %v3514 = vadd.f32 %v3500, %v3513
        %v3515 = vpop.f32.mrf.mxu0
        %v3516 = vadd.f32 %v3502, %v3515
        %3517 = vdwg.mxu0
        %3518 = vmatpush.bf16.msra.mxu0 %v2585
        %3519 = vmatpush.bf16.msra.mxu0 %v2573
        %3520 = vmatpush.bf16.msra.mxu0 %v2561
        %3521 = vmatpush.bf16.msra.mxu0 %v2549
        %3522 = vmatpush.bf16.msra.mxu0 %v2537
        %3523 = vmatpush.bf16.msra.mxu0 %v2525
        %3524 = vmatpush.bf16.msra.mxu0 %v2513
        %3525 = vmatpush.bf16.msra.mxu0 %v2501
        %3526 = vmatmul.bf16.gmra.mxu0 %v639
        %v3527 = vpop.f32.mrf.mxu0
        %v3528 = vadd.f32 %v3514, %v3527
        %v3529 = vpop.f32.mrf.mxu0
        %v3530 = vadd.f32 %v3516, %v3529
        %3531 = vdwg.mxu0
        %3532 = vmatpush.bf16.msra.mxu0 %v2298
        %3533 = vmatpush.bf16.msra.mxu0 %v2286
        %3534 = vmatpush.bf16.msra.mxu0 %v2274
        %3535 = vmatpush.bf16.msra.mxu0 %v2262
        %3536 = vmatpush.bf16.msra.mxu0 %v2250
        %3537 = vmatpush.bf16.msra.mxu0 %v2238
        %3538 = vmatpush.bf16.msra.mxu0 %v2226
        %3539 = vmatpush.bf16.msra.mxu0 %v2214
        %3540 = vmatmul.bf16.gmra.mxu0 %v636
        %v3541 = vpop.f32.mrf.mxu0
        %v3542 = vadd.f32 %v1038, %v3541
        %v3543 = vpop.f32.mrf.mxu0
        %v3544 = vadd.f32 %v1038, %v3543
        %3545 = vdwg.mxu0
        %3546 = vmatpush.bf16.msra.mxu0 %v2394
        %3547 = vmatpush.bf16.msra.mxu0 %v2382
        %3548 = vmatpush.bf16.msra.mxu0 %v2370
        %3549 = vmatpush.bf16.msra.mxu0 %v2358
        %3550 = vmatpush.bf16.msra.mxu0 %v2346
        %3551 = vmatpush.bf16.msra.mxu0 %v2334
        %3552 = vmatpush.bf16.msra.mxu0 %v2322
        %3553 = vmatpush.bf16.msra.mxu0 %v2310
        %3554 = vmatmul.bf16.gmra.mxu0 %v637
        %v3555 = vpop.f32.mrf.mxu0
        %v3556 = vadd.f32 %v3542, %v3555
        %v3557 = vpop.f32.mrf.mxu0
        %v3558 = vadd.f32 %v3544, %v3557
        %3559 = vdwg.mxu0
        %3560 = vmatpush.bf16.msra.mxu0 %v2490
        %3561 = vmatpush.bf16.msra.mxu0 %v2478
        %3562 = vmatpush.bf16.msra.mxu0 %v2466
        %3563 = vmatpush.bf16.msra.mxu0 %v2454
        %3564 = vmatpush.bf16.msra.mxu0 %v2442
        %3565 = vmatpush.bf16.msra.mxu0 %v2430
        %3566 = vmatpush.bf16.msra.mxu0 %v2418
        %3567 = vmatpush.bf16.msra.mxu0 %v2406
        %3568 = vmatmul.bf16.gmra.mxu0 %v638
        %v3569 = vpop.f32.mrf.mxu0
        %v3570 = vadd.f32 %v3556, %v3569
        %v3571 = vpop.f32.mrf.mxu0
        %v3572 = vadd.f32 %v3558, %v3571
        %3573 = vdwg.mxu0
        %3574 = vmatpush.bf16.msra.mxu0 %v2586
        %3575 = vmatpush.bf16.msra.mxu0 %v2574
        %3576 = vmatpush.bf16.msra.mxu0 %v2562
        %3577 = vmatpush.bf16.msra.mxu0 %v2550
        %3578 = vmatpush.bf16.msra.mxu0 %v2538
        %3579 = vmatpush.bf16.msra.mxu0 %v2526
        %3580 = vmatpush.bf16.msra.mxu0 %v2514
        %3581 = vmatpush.bf16.msra.mxu0 %v2502
        %3582 = vmatmul.bf16.gmra.mxu0 %v639
        %v3583 = vpop.f32.mrf.mxu0
        %v3584 = vadd.f32 %v3570, %v3583
        %v3585 = vpop.f32.mrf.mxu0
        %v3586 = vadd.f32 %v3572, %v3585
        %3587 = vdwg.mxu0
        %3588 = vmatpush.bf16.msra.mxu0 %v2299
        %3589 = vmatpush.bf16.msra.mxu0 %v2287
        %3590 = vmatpush.bf16.msra.mxu0 %v2275
        %3591 = vmatpush.bf16.msra.mxu0 %v2263
        %3592 = vmatpush.bf16.msra.mxu0 %v2251
        %3593 = vmatpush.bf16.msra.mxu0 %v2239
        %3594 = vmatpush.bf16.msra.mxu0 %v2227
        %3595 = vmatpush.bf16.msra.mxu0 %v2215
        %3596 = vmatmul.bf16.gmra.mxu0 %v636
        %v3597 = vpop.f32.mrf.mxu0
        %v3598 = vadd.f32 %v1039, %v3597
        %v3599 = vpop.f32.mrf.mxu0
        %v3600 = vadd.f32 %v1039, %v3599
        %3601 = vdwg.mxu0
        %3602 = vmatpush.bf16.msra.mxu0 %v2395
        %3603 = vmatpush.bf16.msra.mxu0 %v2383
        %3604 = vmatpush.bf16.msra.mxu0 %v2371
        %3605 = vmatpush.bf16.msra.mxu0 %v2359
        %3606 = vmatpush.bf16.msra.mxu0 %v2347
        %3607 = vmatpush.bf16.msra.mxu0 %v2335
        %3608 = vmatpush.bf16.msra.mxu0 %v2323
        %3609 = vmatpush.bf16.msra.mxu0 %v2311
        %3610 = vmatmul.bf16.gmra.mxu0 %v637
        %v3611 = vpop.f32.mrf.mxu0
        %v3612 = vadd.f32 %v3598, %v3611
        %v3613 = vpop.f32.mrf.mxu0
        %v3614 = vadd.f32 %v3600, %v3613
        %3615 = vdwg.mxu0
        %3616 = vmatpush.bf16.msra.mxu0 %v2491
        %3617 = vmatpush.bf16.msra.mxu0 %v2479
        %3618 = vmatpush.bf16.msra.mxu0 %v2467
        %3619 = vmatpush.bf16.msra.mxu0 %v2455
        %3620 = vmatpush.bf16.msra.mxu0 %v2443
        %3621 = vmatpush.bf16.msra.mxu0 %v2431
        %3622 = vmatpush.bf16.msra.mxu0 %v2419
        %3623 = vmatpush.bf16.msra.mxu0 %v2407
        %3624 = vmatmul.bf16.gmra.mxu0 %v638
        %v3625 = vpop.f32.mrf.mxu0
        %v3626 = vadd.f32 %v3612, %v3625
        %v3627 = vpop.f32.mrf.mxu0
        %v3628 = vadd.f32 %v3614, %v3627
        %3629 = vdwg.mxu0
        %3630 = vmatpush.bf16.msra.mxu0 %v2587
        %3631 = vmatpush.bf16.msra.mxu0 %v2575
        %3632 = vmatpush.bf16.msra.mxu0 %v2563
        %3633 = vmatpush.bf16.msra.mxu0 %v2551
        %3634 = vmatpush.bf16.msra.mxu0 %v2539
        %3635 = vmatpush.bf16.msra.mxu0 %v2527
        %3636 = vmatpush.bf16.msra.mxu0 %v2515
        %3637 = vmatpush.bf16.msra.mxu0 %v2503
        %3638 = vmatmul.bf16.gmra.mxu0 %v639
        %v3639 = vpop.f32.mrf.mxu0
        %v3640 = vadd.f32 %v3626, %v3639
        %v3641 = vpop.f32.mrf.mxu0
        %v3642 = vadd.f32 %v3628, %v3641
        %3643 = vdwg.mxu0
        %v3644 = vtanh.pop %v3024
        %v3645 = vtanh.pop %v3080
        %v3646 = vtanh.pop %v3136
        %v3647 = vtanh.pop %v3192
        %v3648 = vtanh.pop %v3248
        %v3649 = vtanh.pop %v3304
        %v3650 = vtanh.pop %v3360
        %v3651 = vtanh.pop %v3416
        %v3652 = vtanh.pop %v3472
        %v3653 = vtanh.pop %v3528
        %v3654 = vtanh.pop %v3584
        %v3655 = vtanh.pop %v3640
        %v3656 = vtanh.pop %v3026
        %v3657 = vtanh.pop %v3082
        %v3658 = vtanh.pop %v3138
        %v3659 = vtanh.pop %v3194
        %v3660 = vtanh.pop %v3250
        %v3661 = vtanh.pop %v3306
        %v3662 = vtanh.pop %v3362
        %v3663 = vtanh.pop %v3418
        %v3664 = vtanh.pop %v3474
        %v3665 = vtanh.pop %v3530
        %v3666 = vtanh.pop %v3586
        %v3667 = vtanh.pop %v3642
        %3668 = vst [vmem:[%s335] sm:$0xff] %v3644
        %3669 = vst [vmem:[%s335 + $0x8] sm:$0xff] %v3645
        %3670 = vst [vmem:[%s335 + $0x10] sm:$0xff] %v3646
        %3671 = vst [vmem:[%s335 + $0x18] sm:$0xff] %v3647
        %3672 = vst [vmem:[%s335 + $0x20] sm:$0xff] %v3648
        %3673 = vst [vmem:[%s335 + $0x28] sm:$0xff] %v3649
        %3674 = vst [vmem:[%s335 + $0x30] sm:$0xff] %v3650
        %3675 = vst [vmem:[%s335 + $0x38] sm:$0xff] %v3651
        %3676 = vst [vmem:[%s335 + $0x40] sm:$0xff] %v3652
        %3677 = vst [vmem:[%s335 + $0x48] sm:$0xff] %v3653
        %3678 = vst [vmem:[%s335 + $0x50] sm:$0xff] %v3654
        %3679 = vst [vmem:[%s335 + $0x58] sm:$0xff] %v3655
        %3680 = vst [vmem:[%s335 + $0x60] sm:$0xff] %v3656
        %3681 = vst [vmem:[%s335 + $0x68] sm:$0xff] %v3657
        %3682 = vst [vmem:[%s335 + $0x70] sm:$0xff] %v3658
        %3683 = vst [vmem:[%s335 + $0x78] sm:$0xff] %v3659
        %3684 = vst [vmem:[%s335 + $0x80] sm:$0xff] %v3660
        %3685 = vst [vmem:[%s335 + $0x88] sm:$0xff] %v3661
        %3686 = vst [vmem:[%s335 + $0x90] sm:$0xff] %v3662
        %3687 = vst [vmem:[%s335 + $0x98] sm:$0xff] %v3663
        %3688 = vst [vmem:[%s335 + $0xa0] sm:$0xff] %v3664
        %3689 = vst [vmem:[%s335 + $0xa8] sm:$0xff] %v3665
        %3690 = vst [vmem:[%s335 + $0xb0] sm:$0xff] %v3666
        %3691 = vst [vmem:[%s335 + $0xb8] sm:$0xff] %v3667
        %s3692 = sand.u32 %s160, 1
        %s3693 = sand.u32 %s160, 1
        %s3694 = smul.addr %s3693, 192
        %s3695 = scalar_lea.vmem [#allocation8], %s3694
        // Predicated region
        $region57: #{generator_forward.1} parent=39 // pred_check
          %p3696 = pneg %p170
        $region58: #{generator_forward.1} parent=39 // pred_check_branch
          %3698 = sbr.rel (%p3696) target = $region60
        $region59: #{generator_forward.1} parent=39 // pred_region
          %s3699 = smul.u32 2, %s22
          %s3700 = smul.u32 12, %s23
          %s3701 = smul.addr %s3699, 24
          %s3702 = sadd.s32 %s3700, %s3701
          %s3703 = smul.addr %s3702, 8
          %s3704 = scalar_lea.vmem %s5, %s3703
          // Predicated region
          $region61: #{generator_forward.1} parent=59 // pred_check
            _
          $region62: #{generator_forward.1} parent=59 // pred_check_branch
            %3706 = sbr.rel (0) target = $region64
          $region63: #{generator_forward.1} parent=59 // pred_region
            // Predicated region
            $region65: #{generator_forward.1} parent=63 // pred_check
              _
            $region66: #{generator_forward.1} parent=63 // pred_check_branch
              %3708 = sbr.rel (0) target = $region68
            $region67: #{generator_forward.1} parent=63 // pred_region
              loop: start=0, step=1, limit=1
              $region69: #{generator_forward.1} parent=67 // loop_pre_header
                _
              $region70: #{generator_forward.1} parent=67 // loop_header
                %s3710 = sphi 0, %s3714
                %p3711 = scmp.ge.s32.totalorder %s3710, 1
                %s3715 = sphi %s3695, %s3695
                %s3716 = sphi %s3704, %s3704
              $region71: #{generator_forward.1} parent=67 // loop_header_branch
                %3713 = sbr.rel (%p3711) target = $region75
              $region72: #{generator_forward.1} parent=67 // loop_body
                %v3717 = vld [vmem:[%s3715] sm:$0xff]
                %3718 = vst [vmem:[%s3716] sm:$0xff] %v3717
                %v3719 = vld [vmem:[%s3715 + $0x8] sm:$0xff]
                %3720 = vst [vmem:[%s3716 + $0x8] sm:$0xff] %v3719
                %v3721 = vld [vmem:[%s3715 + $0x10] sm:$0xff]
                %3722 = vst [vmem:[%s3716 + $0x10] sm:$0xff] %v3721
                %v3723 = vld [vmem:[%s3715 + $0x18] sm:$0xff]
                %3724 = vst [vmem:[%s3716 + $0x18] sm:$0xff] %v3723
                %v3725 = vld [vmem:[%s3715 + $0x20] sm:$0xff]
                %3726 = vst [vmem:[%s3716 + $0x20] sm:$0xff] %v3725
                %v3727 = vld [vmem:[%s3715 + $0x28] sm:$0xff]
                %3728 = vst [vmem:[%s3716 + $0x28] sm:$0xff] %v3727
                %v3729 = vld [vmem:[%s3715 + $0x30] sm:$0xff]
                %3730 = vst [vmem:[%s3716 + $0x30] sm:$0xff] %v3729
                %v3731 = vld [vmem:[%s3715 + $0x38] sm:$0xff]
                %3732 = vst [vmem:[%s3716 + $0x38] sm:$0xff] %v3731
                %v3733 = vld [vmem:[%s3715 + $0x40] sm:$0xff]
                %3734 = vst [vmem:[%s3716 + $0x40] sm:$0xff] %v3733
                %v3735 = vld [vmem:[%s3715 + $0x48] sm:$0xff]
                %3736 = vst [vmem:[%s3716 + $0x48] sm:$0xff] %v3735
                %v3737 = vld [vmem:[%s3715 + $0x50] sm:$0xff]
                %3738 = vst [vmem:[%s3716 + $0x50] sm:$0xff] %v3737
                %v3739 = vld [vmem:[%s3715 + $0x58] sm:$0xff]
                %3740 = vst [vmem:[%s3716 + $0x58] sm:$0xff] %v3739
                %v3741 = vld [vmem:[%s3715 + $0x60] sm:$0xff]
                %3742 = vst [vmem:[%s3716 + $0xc0] sm:$0xff] %v3741
                %v3743 = vld [vmem:[%s3715 + $0x68] sm:$0xff]
                %3744 = vst [vmem:[%s3716 + $0xc8] sm:$0xff] %v3743
                %v3745 = vld [vmem:[%s3715 + $0x70] sm:$0xff]
                %3746 = vst [vmem:[%s3716 + $0xd0] sm:$0xff] %v3745
                %v3747 = vld [vmem:[%s3715 + $0x78] sm:$0xff]
                %3748 = vst [vmem:[%s3716 + $0xd8] sm:$0xff] %v3747
                %v3749 = vld [vmem:[%s3715 + $0x80] sm:$0xff]
                %3750 = vst [vmem:[%s3716 + $0xe0] sm:$0xff] %v3749
                %v3751 = vld [vmem:[%s3715 + $0x88] sm:$0xff]
                %3752 = vst [vmem:[%s3716 + $0xe8] sm:$0xff] %v3751
                %v3753 = vld [vmem:[%s3715 + $0x90] sm:$0xff]
                %3754 = vst [vmem:[%s3716 + $0xf0] sm:$0xff] %v3753
                %v3755 = vld [vmem:[%s3715 + $0x98] sm:$0xff]
                %3756 = vst [vmem:[%s3716 + $0xf8] sm:$0xff] %v3755
                %v3757 = vld [vmem:[%s3715 + $0xa0] sm:$0xff]
                %3758 = vst [vmem:[%s3716 + $0x100] sm:$0xff] %v3757
                %v3759 = vld [vmem:[%s3715 + $0xa8] sm:$0xff]
                %3760 = vst [vmem:[%s3716 + $0x108] sm:$0xff] %v3759
                %v3761 = vld [vmem:[%s3715 + $0xb0] sm:$0xff]
                %3762 = vst [vmem:[%s3716 + $0x110] sm:$0xff] %v3761
                %v3763 = vld [vmem:[%s3715 + $0xb8] sm:$0xff]
                %3764 = vst [vmem:[%s3716 + $0x118] sm:$0xff] %v3763
              $region73: #{generator_forward.1} parent=67 // loop_footer
                %s3714 = sadd.s32 1, %s3710
              $region74: #{generator_forward.1} parent=67 // loop_footer_branch
                %3709 = sbr.rel target = $region70
              $region75: #{generator_forward.1} parent=67 // loop_exit
                _
            $region68: #{generator_forward.1} parent=63 // pred_fallthru
              _
            // Predicated region
            $region76: #{generator_forward.1} parent=63 // pred_check
              _
            $region77: #{generator_forward.1} parent=63 // pred_check_branch
              %3766 = sbr.rel target = $region79
            $region78: #{generator_forward.1} parent=63 // pred_region
              _
            $region79: #{generator_forward.1} parent=63 // pred_fallthru
              _
          $region64: #{generator_forward.1} parent=59 // pred_fallthru
            _
          %3767 = vnop
        $region60: #{generator_forward.1} parent=39 // pred_fallthru
          _
      $region40: #{generator_forward.1} parent=5 // pred_fallthru
        _
      %p3768 = scmp.le.s32.totalorder 2, %s13
      // Predicated region
      $region80: #{generator_forward.1} parent=5 // pred_check
        %p3769 = pneg %p3768
      $region81: #{generator_forward.1} parent=5 // pred_check_branch
        %3771 = sbr.rel (%p3769) target = $region83
      $region82: #{generator_forward.1} parent=5 // pred_region
        %s3772 = ssub.s32 %s13, 2
        // Predicated region
        $region84: #{generator_forward.1} parent=82 // pred_check
          %p3773 = pneg %p176
        $region85: #{generator_forward.1} parent=82 // pred_check_branch
          %3775 = sbr.rel (%p3773) target = $region87
        $region86: #{generator_forward.1} parent=82 // pred_region
          %s3776 = sand.u32 %s161, 1
          %s3777 = sand.u32 %s161, 1
          %s3778 = smul.addr %s3777, 192
          %s3779 = scalar_lea.vmem [#allocation8], %s3778
        $region87: #{generator_forward.1} parent=82 // pred_fallthru
          _
      $region83: #{generator_forward.1} parent=5 // pred_fallthru
        _
    $region6: #{generator_forward.1} parent=1 // loop_footer
      %s17 = sadd.s32 1, %s13
    $region7: #{generator_forward.1} parent=1 // loop_footer_branch
      %12 = sbr.rel target = $region3
    $region8: #{generator_forward.1} parent=1 // loop_exit
      _
    %3780 = vsyncpa [#allocation3], 1
    %s3781 = scalar_lea.sflag [#allocation3], 1
    %3782 = vsyncpa %s3781, 1
    %3783 = vsyncpa [#allocation5], 1

</llo_original>
